<compile_context>
chip_gen: v5e
topology: v5e:2x2
jax: 0.10.0
libtpu: 0.0.40
codegen_flags: <defaults>
</compile_context>

<pallas_src>
import jax
import jax.numpy as jnp
from jax.experimental import pallas as pl
from jax.experimental.pallas import tpu as pltpu

_BN_EPS = 1e-5
_WOFF = 8   # sublane-aligned column offset of the real data inside the halo scratch


# ---------------- fused Bottleneck kernel ----------------

def _bottleneck_kernel(x_ref, s1_ref, b1_ref, w1_ref, s2_ref, b2_ref,
                       w2_ref, pass_ref, o_ref, hpad_ref):
    # x_ref:   (1, H, W, Cin)            f32   one batch image (NHWC)
    # w1_ref:  (Cin, 4g)                 bf16  1x1 conv weight
    # w2_ref:  (9, 4g, Cout)             bf16  3x3 conv weight, zero-padded to Cout cols
    # pass_ref:(Cin, Cout)               f32   identity embedded at channel offset g
    # o_ref:   (1, H, W, Cout)           f32   Cout = g + Cin   (= torch.cat([out, x], 1))
    # hpad_ref:(H+2, W+2*_WOFF, 4g)      f32   VMEM halo scratch for the 3x3 conv
    _, h, w, cin = x_ref.shape
    c4 = w1_ref.shape[1]
    cout = o_ref.shape[3]

    xf = x_ref[...].reshape(h * w, cin)                               # pixels x channels

    # BN1 + ReLU fused with the 1x1 conv (channel matmul on the MXU).
    y = jnp.maximum(xf * s1_ref[...] + b1_ref[...], 0.0)
    hmid = jnp.dot(y.astype(jnp.bfloat16), w1_ref[...],
                   preferred_element_type=jnp.float32)                # (H*W, 4g)

    # BN2 + ReLU fused into the matmul epilogue (no extra pass / launch).
    hmid = jnp.maximum(hmid * s2_ref[...] + b2_ref[...], 0.0)

    # In-kernel im2col: zero halo-padded VMEM scratch.  The write is sublane-
    # aligned (row offset 1 is on an untiled dim, column offset _WOFF = 8).
    hpad_ref[...] = jnp.zeros(hpad_ref.shape, hpad_ref.dtype)
    hpad_ref[1:h + 1, _WOFF:_WOFF + w, :] = hmid.reshape(h, w, c4)

    # Channel concat fused as an exact identity-embedding matmul: acc starts as
    # [0 ... 0, x] over the full Cout lanes (f32 dot of x with a 0/1 matrix).
    acc = jnp.dot(xf, pass_ref[...], preferred_element_type=jnp.float32)

    # 3x3 conv (stride 1, pad 1) as 9 shifted-window matmuls accumulated in f32.
    # w2 columns [g:Cout) are zero, so the passthrough lanes are untouched.
    for dh in range(3):
        for dw in range(3):
            win = hpad_ref[dh:dh + h, _WOFF - 1 + dw:_WOFF - 1 + dw + w, :]
            acc = acc + jnp.dot(win.reshape(h * w, c4).astype(jnp.bfloat16),
                                w2_ref[dh * 3 + dw],
                                preferred_element_type=jnp.float32)

    # Single lane-dense store of the full concatenated slab.
    o_ref[...] = acc.reshape(1, h, w, cout).astype(o_ref.dtype)


# ---------------- wrapper ----------------

def bottleneck_forward(params, x_nchw):
    """PyTorch-equivalent forward: NCHW in, NCHW out with growth+in_planes channels."""
    x = jnp.transpose(x_nchw, (0, 2, 3, 1)).astype(jnp.float32)       # NCHW -> NHWC
    n, h, w, cin = x.shape
    w1 = params["w1"]                                                 # (cin, 4g) bf16
    w2ext = params["w2ext"]                                           # (9, 4g, cout) bf16
    passthrough = params["passthrough"]                               # (cin, cout) f32
    c4 = w1.shape[1]
    cout = w2ext.shape[2]

    out_nhwc = pl.pallas_call(
        _bottleneck_kernel,
        out_shape=jax.ShapeDtypeStruct((n, h, w, cout), jnp.float32),
        grid=(n,),
        in_specs=[
            pl.BlockSpec((1, h, w, cin), lambda i: (i, 0, 0, 0)),     # x, one image/step
            pl.BlockSpec((1, cin), lambda i: (0, 0)),                 # bn1 scale
            pl.BlockSpec((1, cin), lambda i: (0, 0)),                 # bn1 bias
            pl.BlockSpec((cin, c4), lambda i: (0, 0)),                # conv1 weight
            pl.BlockSpec((1, c4), lambda i: (0, 0)),                  # bn2 scale
            pl.BlockSpec((1, c4), lambda i: (0, 0)),                  # bn2 bias
            pl.BlockSpec((9, c4, cout), lambda i: (0, 0, 0)),         # conv2 weight (9 taps)
            pl.BlockSpec((cin, cout), lambda i: (0, 0)),              # x passthrough matrix
        ],
        out_specs=pl.BlockSpec((1, h, w, cout), lambda i: (i, 0, 0, 0)),
        scratch_shapes=[pltpu.VMEM((h + 2, w + 2 * _WOFF, c4), jnp.float32)],
        compiler_params=pltpu.CompilerParams(
            dimension_semantics=("parallel",)),
    )(x, params["s1"], params["b1"], w1, params["s2"], params["b2"],
      w2ext, passthrough)

    return jnp.transpose(out_nhwc, (0, 3, 1, 2))                      # NHWC -> NCHW


# ---------------- pure-JAX reference (for a sanity check) ----------------

def bottleneck_reference(params, x_nchw):
    x = jnp.transpose(x_nchw, (0, 2, 3, 1)).astype(jnp.float32)
    w1 = params["w1"].astype(jnp.float32)
    w2 = params["w2"].astype(jnp.float32)                             # (9, 4g, g)
    g = w2.shape[2]
    y = jnp.maximum(x * params["s1"][0] + params["b1"][0], 0.0)
    h = jnp.einsum("nhwc,cd->nhwd", y, w1)
    h = jnp.maximum(h * params["s2"][0] + params["b2"][0], 0.0)
    w_hwio = w2.reshape(3, 3, w2.shape[1], g)
    out = jax.lax.conv_general_dilated(
        h, w_hwio, window_strides=(1, 1), padding="SAME",
        dimension_numbers=("NHWC", "HWIO", "NHWC"))
    out = jnp.concatenate([out, x], axis=-1)
    return jnp.transpose(out, (0, 3, 1, 2))


# ---------------- parameters ----------------

def _fold_bn(gamma, beta, running_mean, running_var, eps=_BN_EPS):
    scale = gamma / jnp.sqrt(running_var + eps)
    bias = beta - running_mean * scale
    return scale, bias


def init_params(key, in_planes, growth_rate):
    c4 = 4 * growth_rate
    cout = growth_rate + in_planes
    ks = jax.random.split(key, 10)

    g1 = 1.0 + 0.05 * jax.random.normal(ks[0], (in_planes,), jnp.float32)
    be1 = 0.05 * jax.random.normal(ks[1], (in_planes,), jnp.float32)
    rm1 = 0.1 * jax.random.normal(ks[2], (in_planes,), jnp.float32)
    rv1 = 1.0 + 0.1 * jax.random.uniform(ks[3], (in_planes,), jnp.float32)
    s1, b1 = _fold_bn(g1, be1, rm1, rv1)

    g2 = 1.0 + 0.05 * jax.random.normal(ks[4], (c4,), jnp.float32)
    be2 = 0.05 * jax.random.normal(ks[5], (c4,), jnp.float32)
    rm2 = 0.1 * jax.random.normal(ks[6], (c4,), jnp.float32)
    rv2 = 1.0 + 0.1 * jax.random.uniform(ks[7], (c4,), jnp.float32)
    s2, b2 = _fold_bn(g2, be2, rm2, rv2)

    # conv1.weight is (4g, cin, 1, 1) in PyTorch -> stored here as (cin, 4g).
    w1 = 0.1 * jax.random.normal(ks[8], (in_planes, c4), jnp.float32)
    # conv2.weight is (g, 4g, 3, 3) in PyTorch -> stored as (kh*3+kw, 4g, g),
    # i.e. torch_w.permute(2, 3, 1, 0).reshape(9, 4g, g).
    w2 = 0.1 * jax.random.normal(ks[9], (9, c4, growth_rate), jnp.float32)

    # Kernel-ready weights: zero-pad conv2 columns to the full concat width and
    # build the exact 0/1 passthrough matrix embedding x at channel offset g.
    w2ext = jnp.zeros((9, c4, cout), jnp.float32).at[:, :, :growth_rate].set(w2)
    passthrough = jnp.zeros((in_planes, cout), jnp.float32).at[:, growth_rate:].set(
        jnp.eye(in_planes, dtype=jnp.float32))

    return dict(
        s1=s1.reshape(1, -1), b1=b1.reshape(1, -1),
        s2=s2.reshape(1, -1), b2=b2.reshape(1, -1),
        w1=w1.astype(jnp.bfloat16),
        w2=w2.astype(jnp.bfloat16),          # unpadded taps (reference only)
        w2ext=w2ext.astype(jnp.bfloat16),    # padded taps used by the kernel
        passthrough=passthrough,
    )


if __name__ == "__main__":
    key = jax.random.PRNGKey(0)
    kp, kx = jax.random.split(key)

    # Small shapes consistent with a DenseNet bottleneck; channel counts chosen
    # lane-friendly: 1x1-conv output = 4*32 = 128, concat output = 96 + 32 = 128.
    batch, in_planes, growth_rate, spatial = 2, 96, 32, 16

    params = init_params(kp, in_planes, growth_rate)
    x = jax.random.normal(kx, (batch, in_planes, spatial, spatial), jnp.float32)

    out = jax.jit(bottleneck_forward)(params, x)
    jax.block_until_ready(out)

    assert out.shape == (batch, in_planes + growth_rate, spatial, spatial)
    assert out.dtype == jnp.float32

    ref = bottleneck_reference(params, x)
    max_err = float(jnp.max(jnp.abs(out - ref)))
    assert max_err < 0.15, f"mismatch vs reference: max abs err = {max_err}"

    print("KERNEL_OK")
</pallas_src>

<mosaic_0001>
module attributes {stable_mosaic.version = 11 : i64} {
  func.func @_bottleneck_kernel(%arg0: i32, %arg1: memref<1x16x16x96xf32, #tpu.memory_space<vmem>>, %arg2: memref<1x96xf32, #tpu.memory_space<vmem>>, %arg3: memref<1x96xf32, #tpu.memory_space<vmem>>, %arg4: memref<96x128xbf16, #tpu.memory_space<vmem>>, %arg5: memref<1x128xf32, #tpu.memory_space<vmem>>, %arg6: memref<1x128xf32, #tpu.memory_space<vmem>>, %arg7: memref<9x128x128xbf16, #tpu.memory_space<vmem>>, %arg8: memref<96x128xf32, #tpu.memory_space<vmem>>, %arg9: memref<1x16x16x128xf32, #tpu.memory_space<vmem>>, %arg10: memref<18x32x128xf32, #tpu.memory_space<vmem>>) attributes {dimension_semantics = [#tpu.dimension_semantics<parallel>], iteration_bounds = array<i64: 2>, scalar_prefetch = 0 : i64, scratch_operands = 1 : i64, tpu.core_type = #tpu.core_type<tc>, window_params = [{transform_indices = @transform_0, window_bounds = array<i64: 1, 16, 16, 96>}, {pipeline_mode = #tpu.pipeline_mode<synchronous>, transform_indices = @transform_1, window_bounds = array<i64: 1, 96>}, {pipeline_mode = #tpu.pipeline_mode<synchronous>, transform_indices = @transform_2, window_bounds = array<i64: 1, 96>}, {pipeline_mode = #tpu.pipeline_mode<synchronous>, transform_indices = @transform_3, window_bounds = array<i64: 96, 128>}, {pipeline_mode = #tpu.pipeline_mode<synchronous>, transform_indices = @transform_4, window_bounds = array<i64: 1, 128>}, {pipeline_mode = #tpu.pipeline_mode<synchronous>, transform_indices = @transform_5, window_bounds = array<i64: 1, 128>}, {pipeline_mode = #tpu.pipeline_mode<synchronous>, transform_indices = @transform_6, window_bounds = array<i64: 9, 128, 128>}, {pipeline_mode = #tpu.pipeline_mode<synchronous>, transform_indices = @transform_7, window_bounds = array<i64: 96, 128>}, {transform_indices = @transform_8, window_bounds = array<i64: 1, 16, 16, 128>}]} {
    %c0 = arith.constant 0 : index
    %c0_0 = arith.constant 0 : index
    %c0_1 = arith.constant 0 : index
    %c0_2 = arith.constant 0 : index
    %0 = vector.load %arg1[%c0, %c0_0, %c0_1, %c0_2] : memref<1x16x16x96xf32, #tpu.memory_space<vmem>>, vector<1x16x16x96xf32>
    %1 = vector.shape_cast %0 : vector<1x16x16x96xf32> to vector<256x96xf32>
    %c0_3 = arith.constant 0 : index
    %c0_4 = arith.constant 0 : index
    %2 = vector.load %arg2[%c0_3, %c0_4] : memref<1x96xf32, #tpu.memory_space<vmem>>, vector<1x96xf32>
    %3 = vector.broadcast %2 : vector<1x96xf32> to vector<256x96xf32>
    %4 = arith.mulf %1, %3 : vector<256x96xf32>
    %c0_5 = arith.constant 0 : index
    %c0_6 = arith.constant 0 : index
    %5 = vector.load %arg3[%c0_5, %c0_6] : memref<1x96xf32, #tpu.memory_space<vmem>>, vector<1x96xf32>
    %6 = vector.broadcast %5 : vector<1x96xf32> to vector<256x96xf32>
    %7 = arith.addf %4, %6 : vector<256x96xf32>
    %cst = arith.constant 0.000000e+00 : f32
    %8 = vector.broadcast %cst : f32 to vector<256x96xf32>
    %9 = arith.maximumf %7, %8 : vector<256x96xf32>
    %10 = arith.truncf %9 : vector<256x96xf32> to vector<256x96xbf16>
    %c0_7 = arith.constant 0 : index
    %c0_8 = arith.constant 0 : index
    %11 = vector.load %arg4[%c0_7, %c0_8] : memref<96x128xbf16, #tpu.memory_space<vmem>>, vector<96x128xbf16>
    %cst_9 = arith.constant dense<0.000000e+00> : vector<256x128xf32>
    %12 = tpu.matmul %10, %11, %cst_9 {dimension_numbers = #tpu.dot_dimension_numbers<[1], [0], [0], [1], [0, 0, 1, 1], [], []>} : vector<256x96xbf16>, vector<96x128xbf16>, vector<256x128xf32> -> vector<256x128xf32>
    %c0_10 = arith.constant 0 : index
    %c0_11 = arith.constant 0 : index
    %13 = vector.load %arg5[%c0_10, %c0_11] : memref<1x128xf32, #tpu.memory_space<vmem>>, vector<1x128xf32>
    %14 = vector.broadcast %13 : vector<1x128xf32> to vector<256x128xf32>
    %15 = arith.mulf %12, %14 : vector<256x128xf32>
    %c0_12 = arith.constant 0 : index
    %c0_13 = arith.constant 0 : index
    %16 = vector.load %arg6[%c0_12, %c0_13] : memref<1x128xf32, #tpu.memory_space<vmem>>, vector<1x128xf32>
    %17 = vector.broadcast %16 : vector<1x128xf32> to vector<256x128xf32>
    %18 = arith.addf %15, %17 : vector<256x128xf32>
    %cst_14 = arith.constant 0.000000e+00 : f32
    %19 = vector.broadcast %cst_14 : f32 to vector<256x128xf32>
    %20 = arith.maximumf %18, %19 : vector<256x128xf32>
    %cst_15 = arith.constant 0.000000e+00 : f32
    %21 = vector.broadcast %cst_15 : f32 to vector<18x32x128xf32>
    %c0_16 = arith.constant 0 : index
    %c0_17 = arith.constant 0 : index
    %c0_18 = arith.constant 0 : index
    %22 = vector.load %arg10[%c0_16, %c0_17, %c0_18] : memref<18x32x128xf32, #tpu.memory_space<vmem>>, vector<18x32x128xf32>
    tpu.vector_store %arg10[%c0_16, %c0_17, %c0_18], %21 {strides = array<i32>} : memref<18x32x128xf32, #tpu.memory_space<vmem>>, vector<18x32x128xf32>,
    %23 = vector.shape_cast %20 : vector<256x128xf32> to vector<16x16x128xf32>
    %c1 = arith.constant 1 : index
    %c8 = arith.constant 8 : index
    %c0_19 = arith.constant 0 : index
    %24 = vector.load %arg10[%c1, %c8, %c0_19] : memref<18x32x128xf32, #tpu.memory_space<vmem>>, vector<16x16x128xf32>
    tpu.vector_store %arg10[%c1, %c8, %c0_19], %23 {strides = array<i32>} : memref<18x32x128xf32, #tpu.memory_space<vmem>>, vector<16x16x128xf32>,
    %c0_20 = arith.constant 0 : index
    %c0_21 = arith.constant 0 : index
    %25 = vector.load %arg8[%c0_20, %c0_21] : memref<96x128xf32, #tpu.memory_space<vmem>>, vector<96x128xf32>
    %cst_22 = arith.constant dense<0.000000e+00> : vector<256x128xf32>
    %26 = tpu.matmul %1, %25, %cst_22 {dimension_numbers = #tpu.dot_dimension_numbers<[1], [0], [0], [1], [0, 0, 1, 1], [], []>} : vector<256x96xf32>, vector<96x128xf32>, vector<256x128xf32> -> vector<256x128xf32>
    %c0_23 = arith.constant 0 : index
    %c7 = arith.constant 7 : index
    %c0_24 = arith.constant 0 : index
    %27 = vector.load %arg10[%c0_23, %c7, %c0_24] : memref<18x32x128xf32, #tpu.memory_space<vmem>>, vector<16x16x128xf32>
    %28 = vector.shape_cast %27 : vector<16x16x128xf32> to vector<256x128xf32>
    %29 = arith.truncf %28 : vector<256x128xf32> to vector<256x128xbf16>
    %c0_25 = arith.constant 0 : index
    %c0_26 = arith.constant 0 : index
    %c0_27 = arith.constant 0 : index
    %30 = vector.load %arg7[%c0_25, %c0_26, %c0_27] : memref<9x128x128xbf16, #tpu.memory_space<vmem>>, vector<1x128x128xbf16>
    %31 = vector.shape_cast %30 : vector<1x128x128xbf16> to vector<128x128xbf16>
    %cst_28 = arith.constant dense<0.000000e+00> : vector<256x128xf32>
    %32 = tpu.matmul %29, %31, %cst_28 {dimension_numbers = #tpu.dot_dimension_numbers<[1], [0], [0], [1], [0, 0, 1, 1], [], []>} : vector<256x128xbf16>, vector<128x128xbf16>, vector<256x128xf32> -> vector<256x128xf32>
    %33 = arith.addf %26, %32 : vector<256x128xf32>
    %c0_29 = arith.constant 0 : index
    %c8_30 = arith.constant 8 : index
    %c0_31 = arith.constant 0 : index
    %34 = vector.load %arg10[%c0_29, %c8_30, %c0_31] : memref<18x32x128xf32, #tpu.memory_space<vmem>>, vector<16x16x128xf32>
    %35 = vector.shape_cast %34 : vector<16x16x128xf32> to vector<256x128xf32>
    %36 = arith.truncf %35 : vector<256x128xf32> to vector<256x128xbf16>
    %c1_32 = arith.constant 1 : index
    %c0_33 = arith.constant 0 : index
    %c0_34 = arith.constant 0 : index
    %37 = vector.load %arg7[%c1_32, %c0_33, %c0_34] : memref<9x128x128xbf16, #tpu.memory_space<vmem>>, vector<1x128x128xbf16>
    %38 = vector.shape_cast %37 : vector<1x128x128xbf16> to vector<128x128xbf16>
    %cst_35 = arith.constant dense<0.000000e+00> : vector<256x128xf32>
    %39 = tpu.matmul %36, %38, %cst_35 {dimension_numbers = #tpu.dot_dimension_numbers<[1], [0], [0], [1], [0, 0, 1, 1], [], []>} : vector<256x128xbf16>, vector<128x128xbf16>, vector<256x128xf32> -> vector<256x128xf32>
    %40 = arith.addf %33, %39 : vector<256x128xf32>
    %c0_36 = arith.constant 0 : index
    %c9 = arith.constant 9 : index
    %c0_37 = arith.constant 0 : index
    %41 = vector.load %arg10[%c0_36, %c9, %c0_37] : memref<18x32x128xf32, #tpu.memory_space<vmem>>, vector<16x16x128xf32>
    %42 = vector.shape_cast %41 : vector<16x16x128xf32> to vector<256x128xf32>
    %43 = arith.truncf %42 : vector<256x128xf32> to vector<256x128xbf16>
    %c2 = arith.constant 2 : index
    %c0_38 = arith.constant 0 : index
    %c0_39 = arith.constant 0 : index
    %44 = vector.load %arg7[%c2, %c0_38, %c0_39] : memref<9x128x128xbf16, #tpu.memory_space<vmem>>, vector<1x128x128xbf16>
    %45 = vector.shape_cast %44 : vector<1x128x128xbf16> to vector<128x128xbf16>
    %cst_40 = arith.constant dense<0.000000e+00> : vector<256x128xf32>
    %46 = tpu.matmul %43, %45, %cst_40 {dimension_numbers = #tpu.dot_dimension_numbers<[1], [0], [0], [1], [0, 0, 1, 1], [], []>} : vector<256x128xbf16>, vector<128x128xbf16>, vector<256x128xf32> -> vector<256x128xf32>
    %47 = arith.addf %40, %46 : vector<256x128xf32>
    %c1_41 = arith.constant 1 : index
    %c7_42 = arith.constant 7 : index
    %c0_43 = arith.constant 0 : index
    %48 = vector.load %arg10[%c1_41, %c7_42, %c0_43] : memref<18x32x128xf32, #tpu.memory_space<vmem>>, vector<16x16x128xf32>
    %49 = vector.shape_cast %48 : vector<16x16x128xf32> to vector<256x128xf32>
    %50 = arith.truncf %49 : vector<256x128xf32> to vector<256x128xbf16>
    %c3 = arith.constant 3 : index
    %c0_44 = arith.constant 0 : index
    %c0_45 = arith.constant 0 : index
    %51 = vector.load %arg7[%c3, %c0_44, %c0_45] : memref<9x128x128xbf16, #tpu.memory_space<vmem>>, vector<1x128x128xbf16>
    %52 = vector.shape_cast %51 : vector<1x128x128xbf16> to vector<128x128xbf16>
    %cst_46 = arith.constant dense<0.000000e+00> : vector<256x128xf32>
    %53 = tpu.matmul %50, %52, %cst_46 {dimension_numbers = #tpu.dot_dimension_numbers<[1], [0], [0], [1], [0, 0, 1, 1], [], []>} : vector<256x128xbf16>, vector<128x128xbf16>, vector<256x128xf32> -> vector<256x128xf32>
    %54 = arith.addf %47, %53 : vector<256x128xf32>
    %c1_47 = arith.constant 1 : index
    %c8_48 = arith.constant 8 : index
    %c0_49 = arith.constant 0 : index
    %55 = vector.load %arg10[%c1_47, %c8_48, %c0_49] : memref<18x32x128xf32, #tpu.memory_space<vmem>>, vector<16x16x128xf32>
    %56 = vector.shape_cast %55 : vector<16x16x128xf32> to vector<256x128xf32>
    %57 = arith.truncf %56 : vector<256x128xf32> to vector<256x128xbf16>
    %c4 = arith.constant 4 : index
    %c0_50 = arith.constant 0 : index
    %c0_51 = arith.constant 0 : index
    %58 = vector.load %arg7[%c4, %c0_50, %c0_51] : memref<9x128x128xbf16, #tpu.memory_space<vmem>>, vector<1x128x128xbf16>
    %59 = vector.shape_cast %58 : vector<1x128x128xbf16> to vector<128x128xbf16>
    %cst_52 = arith.constant dense<0.000000e+00> : vector<256x128xf32>
    %60 = tpu.matmul %57, %59, %cst_52 {dimension_numbers = #tpu.dot_dimension_numbers<[1], [0], [0], [1], [0, 0, 1, 1], [], []>} : vector<256x128xbf16>, vector<128x128xbf16>, vector<256x128xf32> -> vector<256x128xf32>
    %61 = arith.addf %54, %60 : vector<256x128xf32>
    %c1_53 = arith.constant 1 : index
    %c9_54 = arith.constant 9 : index
    %c0_55 = arith.constant 0 : index
    %62 = vector.load %arg10[%c1_53, %c9_54, %c0_55] : memref<18x32x128xf32, #tpu.memory_space<vmem>>, vector<16x16x128xf32>
    %63 = vector.shape_cast %62 : vector<16x16x128xf32> to vector<256x128xf32>
    %64 = arith.truncf %63 : vector<256x128xf32> to vector<256x128xbf16>
    %c5 = arith.constant 5 : index
    %c0_56 = arith.constant 0 : index
    %c0_57 = arith.constant 0 : index
    %65 = vector.load %arg7[%c5, %c0_56, %c0_57] : memref<9x128x128xbf16, #tpu.memory_space<vmem>>, vector<1x128x128xbf16>
    %66 = vector.shape_cast %65 : vector<1x128x128xbf16> to vector<128x128xbf16>
    %cst_58 = arith.constant dense<0.000000e+00> : vector<256x128xf32>
    %67 = tpu.matmul %64, %66, %cst_58 {dimension_numbers = #tpu.dot_dimension_numbers<[1], [0], [0], [1], [0, 0, 1, 1], [], []>} : vector<256x128xbf16>, vector<128x128xbf16>, vector<256x128xf32> -> vector<256x128xf32>
    %68 = arith.addf %61, %67 : vector<256x128xf32>
    %c2_59 = arith.constant 2 : index
    %c7_60 = arith.constant 7 : index
    %c0_61 = arith.constant 0 : index
    %69 = vector.load %arg10[%c2_59, %c7_60, %c0_61] : memref<18x32x128xf32, #tpu.memory_space<vmem>>, vector<16x16x128xf32>
    %70 = vector.shape_cast %69 : vector<16x16x128xf32> to vector<256x128xf32>
    %71 = arith.truncf %70 : vector<256x128xf32> to vector<256x128xbf16>
    %c6 = arith.constant 6 : index
    %c0_62 = arith.constant 0 : index
    %c0_63 = arith.constant 0 : index
    %72 = vector.load %arg7[%c6, %c0_62, %c0_63] : memref<9x128x128xbf16, #tpu.memory_space<vmem>>, vector<1x128x128xbf16>
    %73 = vector.shape_cast %72 : vector<1x128x128xbf16> to vector<128x128xbf16>
    %cst_64 = arith.constant dense<0.000000e+00> : vector<256x128xf32>
    %74 = tpu.matmul %71, %73, %cst_64 {dimension_numbers = #tpu.dot_dimension_numbers<[1], [0], [0], [1], [0, 0, 1, 1], [], []>} : vector<256x128xbf16>, vector<128x128xbf16>, vector<256x128xf32> -> vector<256x128xf32>
    %75 = arith.addf %68, %74 : vector<256x128xf32>
    %c2_65 = arith.constant 2 : index
    %c8_66 = arith.constant 8 : index
    %c0_67 = arith.constant 0 : index
    %76 = vector.load %arg10[%c2_65, %c8_66, %c0_67] : memref<18x32x128xf32, #tpu.memory_space<vmem>>, vector<16x16x128xf32>
    %77 = vector.shape_cast %76 : vector<16x16x128xf32> to vector<256x128xf32>
    %78 = arith.truncf %77 : vector<256x128xf32> to vector<256x128xbf16>
    %c7_68 = arith.constant 7 : index
    %c0_69 = arith.constant 0 : index
    %c0_70 = arith.constant 0 : index
    %79 = vector.load %arg7[%c7_68, %c0_69, %c0_70] : memref<9x128x128xbf16, #tpu.memory_space<vmem>>, vector<1x128x128xbf16>
    %80 = vector.shape_cast %79 : vector<1x128x128xbf16> to vector<128x128xbf16>
    %cst_71 = arith.constant dense<0.000000e+00> : vector<256x128xf32>
    %81 = tpu.matmul %78, %80, %cst_71 {dimension_numbers = #tpu.dot_dimension_numbers<[1], [0], [0], [1], [0, 0, 1, 1], [], []>} : vector<256x128xbf16>, vector<128x128xbf16>, vector<256x128xf32> -> vector<256x128xf32>
    %82 = arith.addf %75, %81 : vector<256x128xf32>
    %c2_72 = arith.constant 2 : index
    %c9_73 = arith.constant 9 : index
    %c0_74 = arith.constant 0 : index
    %83 = vector.load %arg10[%c2_72, %c9_73, %c0_74] : memref<18x32x128xf32, #tpu.memory_space<vmem>>, vector<16x16x128xf32>
    %84 = vector.shape_cast %83 : vector<16x16x128xf32> to vector<256x128xf32>
    %85 = arith.truncf %84 : vector<256x128xf32> to vector<256x128xbf16>
    %c8_75 = arith.constant 8 : index
    %c0_76 = arith.constant 0 : index
    %c0_77 = arith.constant 0 : index
    %86 = vector.load %arg7[%c8_75, %c0_76, %c0_77] : memref<9x128x128xbf16, #tpu.memory_space<vmem>>, vector<1x128x128xbf16>
    %87 = vector.shape_cast %86 : vector<1x128x128xbf16> to vector<128x128xbf16>
    %cst_78 = arith.constant dense<0.000000e+00> : vector<256x128xf32>
    %88 = tpu.matmul %85, %87, %cst_78 {dimension_numbers = #tpu.dot_dimension_numbers<[1], [0], [0], [1], [0, 0, 1, 1], [], []>} : vector<256x128xbf16>, vector<128x128xbf16>, vector<256x128xf32> -> vector<256x128xf32>
    %89 = arith.addf %82, %88 : vector<256x128xf32>
    %90 = vector.shape_cast %89 : vector<256x128xf32> to vector<1x16x16x128xf32>
    %c0_79 = arith.constant 0 : index
    %c0_80 = arith.constant 0 : index
    %c0_81 = arith.constant 0 : index
    %c0_82 = arith.constant 0 : index
    %91 = vector.load %arg9[%c0_79, %c0_80, %c0_81, %c0_82] : memref<1x16x16x128xf32, #tpu.memory_space<vmem>>, vector<1x16x16x128xf32>
    tpu.vector_store %arg9[%c0_79, %c0_80, %c0_81, %c0_82], %90 {strides = array<i32>} : memref<1x16x16x128xf32, #tpu.memory_space<vmem>>, vector<1x16x16x128xf32>,
    return
  }
  func.func @transform_0(%arg0: i32) -> (i32, i32, i32, i32) {
    %c0_i32 = arith.constant 0 : i32
    %c0_i32_0 = arith.constant 0 : i32
    %c0_i32_1 = arith.constant 0 : i32
    %c0_i32_2 = arith.constant 0 : i32
    return %arg0, %c0_i32, %c0_i32_0, %c0_i32_1 : i32, i32, i32, i32
  }
  func.func @transform_1(%arg0: i32) -> (i32, i32) {
    %c0_i32 = arith.constant 0 : i32
    %c0_i32_0 = arith.constant 0 : i32
    %c0_i32_1 = arith.constant 0 : i32
    return %c0_i32, %c0_i32_0 : i32, i32
  }
  func.func @transform_2(%arg0: i32) -> (i32, i32) {
    %c0_i32 = arith.constant 0 : i32
    %c0_i32_0 = arith.constant 0 : i32
    %c0_i32_1 = arith.constant 0 : i32
    return %c0_i32, %c0_i32_0 : i32, i32
  }
  func.func @transform_3(%arg0: i32) -> (i32, i32) {
    %c0_i32 = arith.constant 0 : i32
    %c0_i32_0 = arith.constant 0 : i32
    %c0_i32_1 = arith.constant 0 : i32
    return %c0_i32, %c0_i32_0 : i32, i32
  }
  func.func @transform_4(%arg0: i32) -> (i32, i32) {
    %c0_i32 = arith.constant 0 : i32
    %c0_i32_0 = arith.constant 0 : i32
    %c0_i32_1 = arith.constant 0 : i32
    return %c0_i32, %c0_i32_0 : i32, i32
  }
  func.func @transform_5(%arg0: i32) -> (i32, i32) {
    %c0_i32 = arith.constant 0 : i32
    %c0_i32_0 = arith.constant 0 : i32
    %c0_i32_1 = arith.constant 0 : i32
    return %c0_i32, %c0_i32_0 : i32, i32
  }
  func.func @transform_6(%arg0: i32) -> (i32, i32, i32) {
    %c0_i32 = arith.constant 0 : i32
    %c0_i32_0 = arith.constant 0 : i32
    %c0_i32_1 = arith.constant 0 : i32
    %c0_i32_2 = arith.constant 0 : i32
    return %c0_i32, %c0_i32_0, %c0_i32_1 : i32, i32, i32
  }
  func.func @transform_7(%arg0: i32) -> (i32, i32) {
    %c0_i32 = arith.constant 0 : i32
    %c0_i32_0 = arith.constant 0 : i32
    %c0_i32_1 = arith.constant 0 : i32
    return %c0_i32, %c0_i32_0 : i32, i32
  }
  func.func @transform_8(%arg0: i32) -> (i32, i32, i32, i32) {
    %c0_i32 = arith.constant 0 : i32
    %c0_i32_0 = arith.constant 0 : i32
    %c0_i32_1 = arith.constant 0 : i32
    %c0_i32_2 = arith.constant 0 : i32
    return %arg0, %c0_i32, %c0_i32_0, %c0_i32_1 : i32, i32, i32, i32
  }
}

</mosaic_0001>

<llo_original>
// kernel: bottleneck_forward.1
$region0: #{bottleneck_forward.1}
  #allocation0 [shape = 'u32[]', space=smem, size = 0x4, offset = 0x4, fixed_abs, tag = 'smem constant byte address 0x4 - core index']
  #allocation1 [shape = 'u32[72,128]{1,0:T(1,128)}', space=vmem, size = 0x9000, scoped, tag = 'internal scratch']
  #allocation2 [shape = 'f32[18,32,128]{2,1,0:T(8,128)}', space=vmem, size = 0x48000, scoped, tag = 'scratch operand']
  %s0 = inlined_call_operand.hbm [shape: f32[2,16,16,96], index: 0, kind: input, shape index: {}]
  %s1 = inlined_call_operand.vmem [shape: f32[1,96], index: 1, kind: input, shape index: {}]
  %s2 = inlined_call_operand.hbm [shape: f32[1,96], index: 2, kind: input, shape index: {}]
  %s3 = inlined_call_operand.hbm [shape: bf16[96,128], index: 3, kind: input, shape index: {}]
  %s4 = inlined_call_operand.vmem [shape: f32[1,128], index: 4, kind: input, shape index: {}]
  %s5 = inlined_call_operand.hbm [shape: f32[1,128], index: 5, kind: input, shape index: {}]
  %s6 = inlined_call_operand.hbm [shape: bf16[9,128,128], index: 6, kind: input, shape index: {}]
  %s7 = inlined_call_operand.hbm [shape: f32[96,128], index: 7, kind: input, shape index: {}]
  %s8 = inlined_call_operand.hbm [shape: f32[2,16,16,128], index: 8, kind: output, shape index: {}]
  %s9 = sld [smem:[#allocation0]]
  $region89: #{bottleneck_forward.1} parent=0
    _
  %s11 = ssub.s32 1, %s9
  %s12 = scalar_select 0, %s11, %s9
  $region1: #{bottleneck_forward.1} parent=0
    #allocation3 [shape = 'u8[262144]{0}', space=vmem, size = 0x40000, scoped, tag = 'input window, operand 0']
    #allocation4 [shape = 's32[2]{0}', space=sflag, size = 0x8, scoped, tag = 'scoped memory for bottleneck_forward.1']
    #allocation5 [shape = 's32[2]{0}', space=sflag, size = 0x8, scoped, tag = 'scoped memory for bottleneck_forward.1']
    #allocation6 [shape = 'u8[512]{0}', space=vmem, size = 0x400, scoped, tag = 'input window, operand 2, single buffered']
    #allocation7 [shape = 's32[1]{0}', space=sflag, size = 0x4, scoped, tag = 'scoped memory for bottleneck_forward.1']
    #allocation8 [shape = 'u8[24576]{0}', space=vmem, size = 0x6000, scoped, tag = 'input window, operand 3, single buffered']
    #allocation9 [shape = 'u8[512]{0}', space=vmem, size = 0x400, scoped, tag = 'input window, operand 5, single buffered']
    #allocation10 [shape = 's32[1]{0}', space=sflag, size = 0x4, scoped, tag = 'scoped memory for bottleneck_forward.1']
    #allocation11 [shape = 'u8[294912]{0}', space=vmem, size = 0x48000, scoped, tag = 'input window, operand 6, single buffered']
    #allocation12 [shape = 'u8[49152]{0}', space=vmem, size = 0xc000, scoped, tag = 'input window, operand 7, single buffered']
    #allocation13 [shape = 's32[1]{0}', space=sflag, size = 0x4, scoped, tag = 'scoped memory for bottleneck_forward.1']
    #allocation14 [shape = 'u8[262144]{0}', space=vmem, size = 0x40000, scoped, tag = 'output window, operand 0']
    %13 = vsyncpa [#allocation4], 0
    %s14 = scalar_lea.sflag [#allocation4], 1
    %15 = vsyncpa %s14, 0
    %16 = vsyncpa [#allocation7], 0
    %17 = vsyncpa [#allocation10], 0
    %18 = vsyncpa [#allocation13], 0
    %19 = vsyncpa [#allocation5], 0
    %s20 = scalar_lea.sflag [#allocation5], 1
    %21 = vsyncpa %s20, 0
    loop: start=0, step=1, limit=4
    $region2: #{bottleneck_forward.1} parent=1 // loop_pre_header
      _
    $region3: #{bottleneck_forward.1} parent=1 // loop_header
      %s23 = sphi 0, %s27
      %p24 = scmp.ge.s32.totalorder %s23, 4
      %s33 = sphi 0, %s35
      %s36 = sphi 0, %s33
      %s37 = sphi 0, %s36
      %s53 = sphi 0, %s37
      %s57 = sphi 0, %s57
      %s59 = sphi 0, %s57
      %s60 = sphi 0, %s59
      %s74 = sphi 0, %s60
      %s78 = sphi 0, %s78
      %s80 = sphi 0, %s78
      %s81 = sphi 0, %s80
      %s95 = sphi 0, %s81
      %s99 = sphi 0, %s99
      %s101 = sphi 0, %s99
      %s102 = sphi 0, %s101
      %s116 = sphi 0, %s102
      %s120 = sphi 0, %s120
      %s122 = sphi 0, %s120
      %s123 = sphi 0, %s122
      %s137 = sphi 0, %s123
      %s141 = sphi 0, %s141
      %s143 = sphi 0, %s141
      %s144 = sphi 0, %s143
      %s158 = sphi 0, %s144
      %s162 = sphi 0, %s162
      %s164 = sphi 0, %s162
      %s165 = sphi 0, %s164
      %s179 = sphi 0, %s165
      %s183 = sphi 0, %s183
      %s185 = sphi 0, %s183
      %s186 = sphi 0, %s185
      %s200 = sphi 0, %s186
      %s206 = sphi 0, %s208
      %s209 = sphi 0, %s206
      %s210 = sphi 0, %s209
      %s226 = sphi 0, %s210
    $region4: #{bottleneck_forward.1} parent=1 // loop_header_branch
      %26 = sbr.rel (%p24) target = $region8
    $region5: #{bottleneck_forward.1} parent=1 // loop_body
      %s28 = ssub.s32 %s23, 1
      %s29 = ssub.s32 %s23, 2
      %s30 = sadd.s32 %s23, 1
      %s31 = ssub.s32 %s23, %s30
      %p32 = scmp.eq.s32.totalorder %s31, 0
      %s34 = sadd.s32 %s33, 1
      %s35 = scalar_select %p32, %s33, %s34
      %p38 = pneg %p32
      %p39 = scmp.eq.s32.totalorder %s23, 1
      %p40 = por %p38, %p39
      %p41 = scmp.ne.s32.totalorder %s33, %s36
      %p42 = scmp.eq.s32.totalorder %s23, 0
      %p43 = por %p41, %p42
      %p44 = scmp.ne.s32.totalorder %s33, %s36
      %p45 = scmp.eq.s32.totalorder %s28, 1
      %p46 = por %p44, %p45
      %p47 = scmp.ne.s32.totalorder %s36, %s37
      %p48 = scmp.eq.s32.totalorder %s28, 0
      %p49 = por %p47, %p48
      %p50 = scmp.ne.s32.totalorder %s36, %s37
      %p51 = scmp.eq.s32.totalorder %s29, 1
      %p52 = por %p50, %p51
      %p54 = scmp.ne.s32.totalorder %s37, %s53
      %p55 = scmp.eq.s32.totalorder %s29, 0
      %p56 = por %p54, %p55
      %s58 = sadd.s32 %s57, 1
      %p61 = scmp.eq.s32.totalorder %s23, 1
      %p62 = scmp.ne.s32.totalorder %s57, %s59
      %p63 = scmp.eq.s32.totalorder %s23, 0
      %p64 = por %p62, %p63
      %p65 = scmp.ne.s32.totalorder %s57, %s59
      %p66 = scmp.eq.s32.totalorder %s28, 1
      %p67 = por %p65, %p66
      %p68 = scmp.ne.s32.totalorder %s59, %s60
      %p69 = scmp.eq.s32.totalorder %s28, 0
      %p70 = por %p68, %p69
      %p71 = scmp.ne.s32.totalorder %s59, %s60
      %p72 = scmp.eq.s32.totalorder %s29, 1
      %p73 = por %p71, %p72
      %p75 = scmp.ne.s32.totalorder %s60, %s74
      %p76 = scmp.eq.s32.totalorder %s29, 0
      %p77 = por %p75, %p76
      %s79 = sadd.s32 %s78, 1
      %p82 = scmp.eq.s32.totalorder %s23, 1
      %p83 = scmp.ne.s32.totalorder %s78, %s80
      %p84 = scmp.eq.s32.totalorder %s23, 0
      %p85 = por %p83, %p84
      %p86 = scmp.ne.s32.totalorder %s78, %s80
      %p87 = scmp.eq.s32.totalorder %s28, 1
      %p88 = por %p86, %p87
      %p89 = scmp.ne.s32.totalorder %s80, %s81
      %p90 = scmp.eq.s32.totalorder %s28, 0
      %p91 = por %p89, %p90
      %p92 = scmp.ne.s32.totalorder %s80, %s81
      %p93 = scmp.eq.s32.totalorder %s29, 1
      %p94 = por %p92, %p93
      %p96 = scmp.ne.s32.totalorder %s81, %s95
      %p97 = scmp.eq.s32.totalorder %s29, 0
      %p98 = por %p96, %p97
      %s100 = sadd.s32 %s99, 1
      %p103 = scmp.eq.s32.totalorder %s23, 1
      %p104 = scmp.ne.s32.totalorder %s99, %s101
      %p105 = scmp.eq.s32.totalorder %s23, 0
      %p106 = por %p104, %p105
      %p107 = scmp.ne.s32.totalorder %s99, %s101
      %p108 = scmp.eq.s32.totalorder %s28, 1
      %p109 = por %p107, %p108
      %p110 = scmp.ne.s32.totalorder %s101, %s102
      %p111 = scmp.eq.s32.totalorder %s28, 0
      %p112 = por %p110, %p111
      %p113 = scmp.ne.s32.totalorder %s101, %s102
      %p114 = scmp.eq.s32.totalorder %s29, 1
      %p115 = por %p113, %p114
      %p117 = scmp.ne.s32.totalorder %s102, %s116
      %p118 = scmp.eq.s32.totalorder %s29, 0
      %p119 = por %p117, %p118
      %s121 = sadd.s32 %s120, 1
      %p124 = scmp.eq.s32.totalorder %s23, 1
      %p125 = scmp.ne.s32.totalorder %s120, %s122
      %p126 = scmp.eq.s32.totalorder %s23, 0
      %p127 = por %p125, %p126
      %p128 = scmp.ne.s32.totalorder %s120, %s122
      %p129 = scmp.eq.s32.totalorder %s28, 1
      %p130 = por %p128, %p129
      %p131 = scmp.ne.s32.totalorder %s122, %s123
      %p132 = scmp.eq.s32.totalorder %s28, 0
      %p133 = por %p131, %p132
      %p134 = scmp.ne.s32.totalorder %s122, %s123
      %p135 = scmp.eq.s32.totalorder %s29, 1
      %p136 = por %p134, %p135
      %p138 = scmp.ne.s32.totalorder %s123, %s137
      %p139 = scmp.eq.s32.totalorder %s29, 0
      %p140 = por %p138, %p139
      %s142 = sadd.s32 %s141, 1
      %p145 = scmp.eq.s32.totalorder %s23, 1
      %p146 = scmp.ne.s32.totalorder %s141, %s143
      %p147 = scmp.eq.s32.totalorder %s23, 0
      %p148 = por %p146, %p147
      %p149 = scmp.ne.s32.totalorder %s141, %s143
      %p150 = scmp.eq.s32.totalorder %s28, 1
      %p151 = por %p149, %p150
      %p152 = scmp.ne.s32.totalorder %s143, %s144
      %p153 = scmp.eq.s32.totalorder %s28, 0
      %p154 = por %p152, %p153
      %p155 = scmp.ne.s32.totalorder %s143, %s144
      %p156 = scmp.eq.s32.totalorder %s29, 1
      %p157 = por %p155, %p156
      %p159 = scmp.ne.s32.totalorder %s144, %s158
      %p160 = scmp.eq.s32.totalorder %s29, 0
      %p161 = por %p159, %p160
      %s163 = sadd.s32 %s162, 1
      %p166 = scmp.eq.s32.totalorder %s23, 1
      %p167 = scmp.ne.s32.totalorder %s162, %s164
      %p168 = scmp.eq.s32.totalorder %s23, 0
      %p169 = por %p167, %p168
      %p170 = scmp.ne.s32.totalorder %s162, %s164
      %p171 = scmp.eq.s32.totalorder %s28, 1
      %p172 = por %p170, %p171
      %p173 = scmp.ne.s32.totalorder %s164, %s165
      %p174 = scmp.eq.s32.totalorder %s28, 0
      %p175 = por %p173, %p174
      %p176 = scmp.ne.s32.totalorder %s164, %s165
      %p177 = scmp.eq.s32.totalorder %s29, 1
      %p178 = por %p176, %p177
      %p180 = scmp.ne.s32.totalorder %s165, %s179
      %p181 = scmp.eq.s32.totalorder %s29, 0
      %p182 = por %p180, %p181
      %s184 = sadd.s32 %s183, 1
      %p187 = scmp.eq.s32.totalorder %s23, 1
      %p188 = scmp.ne.s32.totalorder %s183, %s185
      %p189 = scmp.eq.s32.totalorder %s23, 0
      %p190 = por %p188, %p189
      %p191 = scmp.ne.s32.totalorder %s183, %s185
      %p192 = scmp.eq.s32.totalorder %s28, 1
      %p193 = por %p191, %p192
      %p194 = scmp.ne.s32.totalorder %s185, %s186
      %p195 = scmp.eq.s32.totalorder %s28, 0
      %p196 = por %p194, %p195
      %p197 = scmp.ne.s32.totalorder %s185, %s186
      %p198 = scmp.eq.s32.totalorder %s29, 1
      %p199 = por %p197, %p198
      %p201 = scmp.ne.s32.totalorder %s186, %s200
      %p202 = scmp.eq.s32.totalorder %s29, 0
      %p203 = por %p201, %p202
      %s204 = ssub.s32 %s23, %s30
      %p205 = scmp.eq.s32.totalorder %s204, 0
      %s207 = sadd.s32 %s206, 1
      %s208 = scalar_select %p205, %s206, %s207
      %p211 = pneg %p205
      %p212 = scmp.eq.s32.totalorder %s23, 1
      %p213 = por %p211, %p212
      %p214 = scmp.ne.s32.totalorder %s206, %s209
      %p215 = scmp.eq.s32.totalorder %s23, 0
      %p216 = por %p214, %p215
      %p217 = scmp.ne.s32.totalorder %s206, %s209
      %p218 = scmp.eq.s32.totalorder %s28, 1
      %p219 = por %p217, %p218
      %p220 = scmp.ne.s32.totalorder %s209, %s210
      %p221 = scmp.eq.s32.totalorder %s28, 0
      %p222 = por %p220, %p221
      %p223 = scmp.ne.s32.totalorder %s209, %s210
      %p224 = scmp.eq.s32.totalorder %s29, 1
      %p225 = por %p223, %p224
      %p227 = scmp.ne.s32.totalorder %s210, %s226
      %p228 = scmp.eq.s32.totalorder %s29, 0
      %p229 = por %p227, %p228
      %p230 = scmp.le.s32.totalorder 1, %s23
      %p231 = scmp.lt.s32.totalorder %s23, 3
      %p232 = pnand %p230, %p231
      %p233 = pneg %p232
      // Predicated region
      $region9: #{bottleneck_forward.1} parent=5 // pred_check
        _
      $region10: #{bottleneck_forward.1} parent=5 // pred_check_branch
        %235 = sbr.rel (%p232) target = $region12
      $region11: #{bottleneck_forward.1} parent=5 // pred_region
        %s236 = ssub.s32 %s23, 1
        // Predicated region
        $region13: #{bottleneck_forward.1} parent=11 // pred_check
          %p237 = pneg %p70
        $region14: #{bottleneck_forward.1} parent=11 // pred_check_branch
          %239 = sbr.rel (%p237) target = $region16
        $region15: #{bottleneck_forward.1} parent=11 // pred_region
          _
        $region16: #{bottleneck_forward.1} parent=11 // pred_fallthru
          _
        // Predicated region
        $region17: #{bottleneck_forward.1} parent=11 // pred_check
          %p240 = pneg %p91
        $region18: #{bottleneck_forward.1} parent=11 // pred_check_branch
          %242 = sbr.rel (%p240) target = $region20
        $region19: #{bottleneck_forward.1} parent=11 // pred_region
          %244 = vsyncadd [#allocation7], 0
          %s246 = sshll.u32 %s2, 4
          %s247 = int_to_ptr.hbm [resolvable:$true] %s246
          %s248 = sshll.u32 [#allocation6], 4
          %s249 = int_to_ptr.vmem [resolvable:$true] %s248
          %251 = dma.hbm_to_vmem [thread:$0]  %s247, 16, %s249, [#allocation7]
        $region20: #{bottleneck_forward.1} parent=11 // pred_fallthru
          _
        // Predicated region
        $region21: #{bottleneck_forward.1} parent=11 // pred_check
          %p252 = pneg %p112
        $region22: #{bottleneck_forward.1} parent=11 // pred_check_branch
          %254 = sbr.rel (%p252) target = $region24
        $region23: #{bottleneck_forward.1} parent=11 // pred_region
          %256 = vsyncadd [#allocation7], 0
          %s257 = sshll.u32 %s3, 4
          %s258 = int_to_ptr.hbm [resolvable:$true] %s257
          %s259 = sshll.u32 [#allocation8], 4
          %s260 = int_to_ptr.vmem [resolvable:$true] %s259
          %265 = dma.hbm_to_vmem [thread:$0]  %s258, 768, %s260, [#allocation7], 64, 64, 4
        $region24: #{bottleneck_forward.1} parent=11 // pred_fallthru
          _
        // Predicated region
        $region25: #{bottleneck_forward.1} parent=11 // pred_check
          %p266 = pneg %p133
        $region26: #{bottleneck_forward.1} parent=11 // pred_check_branch
          %268 = sbr.rel (%p266) target = $region28
        $region27: #{bottleneck_forward.1} parent=11 // pred_region
          _
        $region28: #{bottleneck_forward.1} parent=11 // pred_fallthru
          _
        // Predicated region
        $region29: #{bottleneck_forward.1} parent=11 // pred_check
          %p269 = pneg %p154
        $region30: #{bottleneck_forward.1} parent=11 // pred_check_branch
          %271 = sbr.rel (%p269) target = $region32
        $region31: #{bottleneck_forward.1} parent=11 // pred_region
          %273 = vsyncadd [#allocation10], 0
          %s275 = sshll.u32 %s5, 4
          %s276 = int_to_ptr.hbm [resolvable:$true] %s275
          %s277 = sshll.u32 [#allocation9], 4
          %s278 = int_to_ptr.vmem [resolvable:$true] %s277
          %280 = dma.hbm_to_vmem [thread:$0]  %s276, 16, %s278, [#allocation10]
        $region32: #{bottleneck_forward.1} parent=11 // pred_fallthru
          _
        // Predicated region
        $region33: #{bottleneck_forward.1} parent=11 // pred_check
          %p281 = pneg %p175
        $region34: #{bottleneck_forward.1} parent=11 // pred_check_branch
          %283 = sbr.rel (%p281) target = $region36
        $region35: #{bottleneck_forward.1} parent=11 // pred_region
          %285 = vsyncadd [#allocation10], 0
          %s286 = sshll.u32 %s6, 4
          %s287 = int_to_ptr.hbm [resolvable:$true] %s286
          %s288 = sshll.u32 [#allocation11], 4
          %s289 = int_to_ptr.vmem [resolvable:$true] %s288
          %294 = dma.hbm_to_vmem [thread:$0]  %s287, 9216, %s289, [#allocation10], 64, 64, 4
        $region36: #{bottleneck_forward.1} parent=11 // pred_fallthru
          _
        // Predicated region
        $region37: #{bottleneck_forward.1} parent=11 // pred_check
          %p295 = pneg %p196
        $region38: #{bottleneck_forward.1} parent=11 // pred_check_branch
          %297 = sbr.rel (%p295) target = $region40
        $region39: #{bottleneck_forward.1} parent=11 // pred_region
          %299 = vsyncadd [#allocation13], 0
          %s300 = sshll.u32 %s7, 4
          %s301 = int_to_ptr.hbm [resolvable:$true] %s300
          %s302 = sshll.u32 [#allocation12], 4
          %s303 = int_to_ptr.vmem [resolvable:$true] %s302
          %308 = dma.hbm_to_vmem [thread:$0]  %s301, 1536, %s303, [#allocation13], 128, 128, 8
        $region40: #{bottleneck_forward.1} parent=11 // pred_fallthru
          _
      $region12: #{bottleneck_forward.1} parent=5 // pred_fallthru
        _
      %p309 = scmp.lt.s32.totalorder %s23, 2
      // Predicated region
      $region41: #{bottleneck_forward.1} parent=5 // pred_check
        %p310 = pneg %p309
      $region42: #{bottleneck_forward.1} parent=5 // pred_check_branch
        %312 = sbr.rel (%p310) target = $region44
      $region43: #{bottleneck_forward.1} parent=5 // pred_region
        // Predicated region
        $region45: #{bottleneck_forward.1} parent=43 // pred_check
          %p313 = pneg %p43
        $region46: #{bottleneck_forward.1} parent=43 // pred_check_branch
          %315 = sbr.rel (%p313) target = $region48
        $region47: #{bottleneck_forward.1} parent=43 // pred_region
          %s316 = sand.u32 %s33, 1
          %s317 = scalar_lea.sflag [#allocation4], %s316
          %s318 = sand.u32 %s33, 1
          %s319 = smul.addr %s318, 256
          %s320 = scalar_lea.vmem [#allocation3], %s319
          %322 = vsyncadd %s317, 0
          %s323 = smul.addr %s23, 32
          %s324 = smul.addr %s323, 8
          %s325 = scalar_lea.hbm %s0, %s324
          %s326 = sshll.u32 %s325, 4
          %s327 = int_to_ptr.hbm [resolvable:$true] %s326
          %s328 = sshll.u32 %s320, 4
          %s329 = int_to_ptr.vmem [resolvable:$true] %s328
          %334 = dma.hbm_to_vmem [thread:$0]  %s327, 4096, %s329, %s317, 128, 128, 8
        $region48: #{bottleneck_forward.1} parent=43 // pred_fallthru
          _
      $region44: #{bottleneck_forward.1} parent=5 // pred_fallthru
        _
      %p335 = scmp.le.s32.totalorder 1, %s23
      %p336 = scmp.lt.s32.totalorder %s23, 3
      %p337 = pnand %p335, %p336
      %p338 = pneg %p337
      // Predicated region
      $region49: #{bottleneck_forward.1} parent=5 // pred_check
        _
      $region50: #{bottleneck_forward.1} parent=5 // pred_check_branch
        %340 = sbr.rel (%p337) target = $region52
      $region51: #{bottleneck_forward.1} parent=5 // pred_region
        %s341 = ssub.s32 %s23, 1
        %s342 = sand.u32 %s36, 1
        %s343 = scalar_lea.sflag [#allocation4], %s342
        %s344 = sand.u32 %s36, 1
        %s345 = smul.addr %s344, 256
        %s346 = scalar_lea.vmem [#allocation3], %s345
        // Predicated region
        $region53: #{bottleneck_forward.1} parent=51 // pred_check
          %p347 = pneg %p49
        $region54: #{bottleneck_forward.1} parent=51 // pred_check_branch
          %349 = sbr.rel (%p347) target = $region56
        $region55: #{bottleneck_forward.1} parent=51 // pred_region
          %351 = dma.done %s343, 4096
        $region56: #{bottleneck_forward.1} parent=51 // pred_fallthru
          _
        // Predicated region
        $region57: #{bottleneck_forward.1} parent=51 // pred_check
          %p352 = pneg %p91
        $region58: #{bottleneck_forward.1} parent=51 // pred_check_branch
          %354 = sbr.rel (%p352) target = $region60
        $region59: #{bottleneck_forward.1} parent=51 // pred_region
          %356 = dma.done [#allocation7], 16
        $region60: #{bottleneck_forward.1} parent=51 // pred_fallthru
          _
        // Predicated region
        $region61: #{bottleneck_forward.1} parent=51 // pred_check
          %p357 = pneg %p112
        $region62: #{bottleneck_forward.1} parent=51 // pred_check_branch
          %359 = sbr.rel (%p357) target = $region64
        $region63: #{bottleneck_forward.1} parent=51 // pred_region
          %361 = dma.done [#allocation7], 768
        $region64: #{bottleneck_forward.1} parent=51 // pred_fallthru
          _
        // Predicated region
        $region65: #{bottleneck_forward.1} parent=51 // pred_check
          %p362 = pneg %p154
        $region66: #{bottleneck_forward.1} parent=51 // pred_check_branch
          %364 = sbr.rel (%p362) target = $region68
        $region67: #{bottleneck_forward.1} parent=51 // pred_region
          %366 = dma.done [#allocation10], 16
        $region68: #{bottleneck_forward.1} parent=51 // pred_fallthru
          _
        // Predicated region
        $region69: #{bottleneck_forward.1} parent=51 // pred_check
          %p367 = pneg %p175
        $region70: #{bottleneck_forward.1} parent=51 // pred_check_branch
          %369 = sbr.rel (%p367) target = $region72
        $region71: #{bottleneck_forward.1} parent=51 // pred_region
          %371 = dma.done [#allocation10], 9216
        $region72: #{bottleneck_forward.1} parent=51 // pred_fallthru
          _
        // Predicated region
        $region73: #{bottleneck_forward.1} parent=51 // pred_check
          %p372 = pneg %p196
        $region74: #{bottleneck_forward.1} parent=51 // pred_check_branch
          %374 = sbr.rel (%p372) target = $region76
        $region75: #{bottleneck_forward.1} parent=51 // pred_region
          %376 = dma.done [#allocation13], 1536
        $region76: #{bottleneck_forward.1} parent=51 // pred_fallthru
          _
        %s377 = sand.u32 %s36, 1
        %s378 = scalar_lea.sflag [#allocation4], %s377
        %s379 = sand.u32 %s36, 1
        %s380 = smul.addr %s379, 256
        %s381 = scalar_lea.vmem [#allocation3], %s380
        %p382 = pneg %p49
        %p383 = pneg %p46
        %p384 = pneg %p70
        %p385 = pneg %p67
        %p386 = pneg %p91
        %p387 = pneg %p88
        %p388 = pneg %p112
        %p389 = pneg %p109
        %p390 = pneg %p133
        %p391 = pneg %p130
        %p392 = pneg %p154
        %p393 = pneg %p151
        %p394 = pneg %p175
        %p395 = pneg %p172
        %p396 = pneg %p196
        %p397 = pneg %p193
        %p398 = pneg %p222
        %p399 = pneg %p219
        %s400 = sand.u32 %s209, 1
        %s401 = scalar_lea.sflag [#allocation5], %s400
        %s402 = sand.u32 %s209, 1
        %s403 = smul.addr %s402, 256
        %s404 = scalar_lea.vmem [#allocation14], %s403
        %v406 = vld [vmem:[%s346] sm:$0xff]
        %v407 = vld [vmem:[%s346 + $0x8] sm:$0xff]
        %v408 = vld [vmem:[%s346 + $0x10] sm:$0xff]
        %v409 = vld [vmem:[%s346 + $0x18] sm:$0xff]
        %v410 = vld [vmem:[%s346 + $0x20] sm:$0xff]
        %v411 = vld [vmem:[%s346 + $0x28] sm:$0xff]
        %v412 = vld [vmem:[%s346 + $0x30] sm:$0xff]
        %v413 = vld [vmem:[%s346 + $0x38] sm:$0xff]
        %v414 = vld [vmem:[%s346 + $0x40] sm:$0xff]
        %v415 = vld [vmem:[%s346 + $0x48] sm:$0xff]
        %v416 = vld [vmem:[%s346 + $0x50] sm:$0xff]
        %v417 = vld [vmem:[%s346 + $0x58] sm:$0xff]
        %v418 = vld [vmem:[%s346 + $0x60] sm:$0xff]
        %v419 = vld [vmem:[%s346 + $0x68] sm:$0xff]
        %v420 = vld [vmem:[%s346 + $0x70] sm:$0xff]
        %v421 = vld [vmem:[%s346 + $0x78] sm:$0xff]
        %v422 = vld [vmem:[%s346 + $0x80] sm:$0xff]
        %v423 = vld [vmem:[%s346 + $0x88] sm:$0xff]
        %v424 = vld [vmem:[%s346 + $0x90] sm:$0xff]
        %v425 = vld [vmem:[%s346 + $0x98] sm:$0xff]
        %v426 = vld [vmem:[%s346 + $0xa0] sm:$0xff]
        %v427 = vld [vmem:[%s346 + $0xa8] sm:$0xff]
        %v428 = vld [vmem:[%s346 + $0xb0] sm:$0xff]
        %v429 = vld [vmem:[%s346 + $0xb8] sm:$0xff]
        %v430 = vld [vmem:[%s346 + $0xc0] sm:$0xff]
        %v431 = vld [vmem:[%s346 + $0xc8] sm:$0xff]
        %v432 = vld [vmem:[%s346 + $0xd0] sm:$0xff]
        %v433 = vld [vmem:[%s346 + $0xd8] sm:$0xff]
        %v434 = vld [vmem:[%s346 + $0xe0] sm:$0xff]
        %v435 = vld [vmem:[%s346 + $0xe8] sm:$0xff]
        %v436 = vld [vmem:[%s346 + $0xf0] sm:$0xff]
        %v437 = vld [vmem:[%s346 + $0xf8] sm:$0xff]
        %v438 = vld [vmem:[%s1] sm:$0x1]
        %v440 = vperm.slane %v438, 0
        %v442 = vmul.f32 %v406, %v440
        %v443 = vmul.f32 %v407, %v440
        %v444 = vmul.f32 %v408, %v440
        %v445 = vmul.f32 %v409, %v440
        %v446 = vmul.f32 %v410, %v440
        %v447 = vmul.f32 %v411, %v440
        %v448 = vmul.f32 %v412, %v440
        %v449 = vmul.f32 %v413, %v440
        %v450 = vmul.f32 %v414, %v440
        %v451 = vmul.f32 %v415, %v440
        %v452 = vmul.f32 %v416, %v440
        %v453 = vmul.f32 %v417, %v440
        %v454 = vmul.f32 %v418, %v440
        %v455 = vmul.f32 %v419, %v440
        %v456 = vmul.f32 %v420, %v440
        %v457 = vmul.f32 %v421, %v440
        %v458 = vmul.f32 %v422, %v440
        %v459 = vmul.f32 %v423, %v440
        %v460 = vmul.f32 %v424, %v440
        %v461 = vmul.f32 %v425, %v440
        %v462 = vmul.f32 %v426, %v440
        %v463 = vmul.f32 %v427, %v440
        %v464 = vmul.f32 %v428, %v440
        %v465 = vmul.f32 %v429, %v440
        %v466 = vmul.f32 %v430, %v440
        %v467 = vmul.f32 %v431, %v440
        %v468 = vmul.f32 %v432, %v440
        %v469 = vmul.f32 %v433, %v440
        %v470 = vmul.f32 %v434, %v440
        %v471 = vmul.f32 %v435, %v440
        %v472 = vmul.f32 %v436, %v440
        %v473 = vmul.f32 %v437, %v440
        %v474 = vld [vmem:[#allocation6] sm:$0x1]
        %v476 = vperm.slane %v474, 0
        %v478 = vadd.f32 %v442, %v476
        %v479 = vadd.f32 %v443, %v476
        %v480 = vadd.f32 %v444, %v476
        %v481 = vadd.f32 %v445, %v476
        %v482 = vadd.f32 %v446, %v476
        %v483 = vadd.f32 %v447, %v476
        %v484 = vadd.f32 %v448, %v476
        %v485 = vadd.f32 %v449, %v476
        %v486 = vadd.f32 %v450, %v476
        %v487 = vadd.f32 %v451, %v476
        %v488 = vadd.f32 %v452, %v476
        %v489 = vadd.f32 %v453, %v476
        %v490 = vadd.f32 %v454, %v476
        %v491 = vadd.f32 %v455, %v476
        %v492 = vadd.f32 %v456, %v476
        %v493 = vadd.f32 %v457, %v476
        %v494 = vadd.f32 %v458, %v476
        %v495 = vadd.f32 %v459, %v476
        %v496 = vadd.f32 %v460, %v476
        %v497 = vadd.f32 %v461, %v476
        %v498 = vadd.f32 %v462, %v476
        %v499 = vadd.f32 %v463, %v476
        %v500 = vadd.f32 %v464, %v476
        %v501 = vadd.f32 %v465, %v476
        %v502 = vadd.f32 %v466, %v476
        %v503 = vadd.f32 %v467, %v476
        %v504 = vadd.f32 %v468, %v476
        %v505 = vadd.f32 %v469, %v476
        %v506 = vadd.f32 %v470, %v476
        %v507 = vadd.f32 %v471, %v476
        %v508 = vadd.f32 %v472, %v476
        %v509 = vadd.f32 %v473, %v476
        %v510 = vmax.f32 %v478, 0.0
        %v511 = vmax.f32 %v479, 0.0
        %v512 = vmax.f32 %v480, 0.0
        %v513 = vmax.f32 %v481, 0.0
        %v514 = vmax.f32 %v482, 0.0
        %v515 = vmax.f32 %v483, 0.0
        %v516 = vmax.f32 %v484, 0.0
        %v517 = vmax.f32 %v485, 0.0
        %v518 = vmax.f32 %v486, 0.0
        %v519 = vmax.f32 %v487, 0.0
        %v520 = vmax.f32 %v488, 0.0
        %v521 = vmax.f32 %v489, 0.0
        %v522 = vmax.f32 %v490, 0.0
        %v523 = vmax.f32 %v491, 0.0
        %v524 = vmax.f32 %v492, 0.0
        %v525 = vmax.f32 %v493, 0.0
        %v526 = vmax.f32 %v494, 0.0
        %v527 = vmax.f32 %v495, 0.0
        %v528 = vmax.f32 %v496, 0.0
        %v529 = vmax.f32 %v497, 0.0
        %v530 = vmax.f32 %v498, 0.0
        %v531 = vmax.f32 %v499, 0.0
        %v532 = vmax.f32 %v500, 0.0
        %v533 = vmax.f32 %v501, 0.0
        %v534 = vmax.f32 %v502, 0.0
        %v535 = vmax.f32 %v503, 0.0
        %v536 = vmax.f32 %v504, 0.0
        %v537 = vmax.f32 %v505, 0.0
        %v538 = vmax.f32 %v506, 0.0
        %v539 = vmax.f32 %v507, 0.0
        %v540 = vmax.f32 %v508, 0.0
        %v541 = vmax.f32 %v509, 0.0
        %v542 = vpack.c.bf16 %v511, %v510
        %v543 = vpack.c.bf16 %v513, %v512
        %v544 = vpack.c.bf16 %v515, %v514
        %v545 = vpack.c.bf16 %v517, %v516
        %v546 = vpack.c.bf16 %v519, %v518
        %v547 = vpack.c.bf16 %v521, %v520
        %v548 = vpack.c.bf16 %v523, %v522
        %v549 = vpack.c.bf16 %v525, %v524
        %v550 = vpack.c.bf16 %v527, %v526
        %v551 = vpack.c.bf16 %v529, %v528
        %v552 = vpack.c.bf16 %v531, %v530
        %v553 = vpack.c.bf16 %v533, %v532
        %v554 = vpack.c.bf16 %v535, %v534
        %v555 = vpack.c.bf16 %v537, %v536
        %v556 = vpack.c.bf16 %v539, %v538
        %v557 = vpack.c.bf16 %v541, %v540
        %v558 = vld [vmem:[#allocation8] sm:$0xf]
        %v559 = vld [vmem:[#allocation8 + $0x4] sm:$0xf]
        %v560 = vld [vmem:[#allocation8 + $0x8] sm:$0xf]
        %v561 = vld [vmem:[#allocation8 + $0xc] sm:$0xf]
        %v562 = vld [vmem:[#allocation8 + $0x10] sm:$0xf]
        %v563 = vld [vmem:[#allocation8 + $0x14] sm:$0xf]
        %v564 = vld [vmem:[#allocation8 + $0x18] sm:$0xf]
        %v565 = vld [vmem:[#allocation8 + $0x1c] sm:$0xf]
        %v566 = vld [vmem:[#allocation8 + $0x20] sm:$0xf]
        %v567 = vld [vmem:[#allocation8 + $0x24] sm:$0xf]
        %v568 = vld [vmem:[#allocation8 + $0x28] sm:$0xf]
        %v569 = vld [vmem:[#allocation8 + $0x2c] sm:$0xf]
        %v582 = vunpack.c.l.b16 %v558
        %v583 = vunpack.c.l.b16 %v559
        %v584 = vunpack.c.l.b16 %v560
        %v585 = vunpack.c.l.b16 %v561
        %v586 = vunpack.c.l.b16 %v562
        %v587 = vunpack.c.l.b16 %v563
        %v588 = vunpack.c.l.b16 %v564
        %v589 = vunpack.c.l.b16 %v565
        %v590 = vunpack.c.l.b16 %v566
        %v591 = vunpack.c.l.b16 %v567
        %v592 = vunpack.c.l.b16 %v568
        %v593 = vunpack.c.l.b16 %v569
        %v594 = vpack.c.b16 %v583, %v582
        %v595 = vpack.c.b16 %v585, %v584
        %v596 = vpack.c.b16 %v587, %v586
        %v597 = vpack.c.b16 %v589, %v588
        %v598 = vpack.c.b16 %v591, %v590
        %v599 = vpack.c.b16 %v593, %v592
        %vm606 = vcmask 785408
        %v608 = vsel %vm606, %v542, 0
        %v611 = vsel %vm606, %v543, 0
        %v614 = vsel %vm606, %v544, 0
        %v617 = vsel %vm606, %v545, 0
        %v620 = vsel %vm606, %v546, 0
        %v623 = vsel %vm606, %v547, 0
        %v626 = vsel %vm606, %v548, 0
        %v629 = vsel %vm606, %v549, 0
        %v632 = vsel %vm606, %v550, 0
        %v635 = vsel %vm606, %v551, 0
        %v638 = vsel %vm606, %v552, 0
        %v641 = vsel %vm606, %v553, 0
        %v644 = vsel %vm606, %v554, 0
        %v647 = vsel %vm606, %v555, 0
        %v650 = vsel %vm606, %v556, 0
        %v653 = vsel %vm606, %v557, 0
        %655 = vmatpush.bf16.msra.mxu0 0
        %656 = vmatpush.bf16.msra.mxu0 0
        %657 = vmatpush.bf16.msra.mxu0 %v599
        %658 = vmatpush.bf16.msra.mxu0 %v598
        %659 = vmatpush.bf16.msra.mxu0 %v597
        %660 = vmatpush.bf16.msra.mxu0 %v596
        %661 = vmatpush.bf16.msra.mxu0 %v595
        %662 = vmatpush.bf16.msra.mxu0 %v594
        %663 = vmatmul.bf16.gmra.mxu0 %v608
        %v664 = vpop.f32.mrf.mxu0
        %v665 = vadd.f32 0.0, %v664
        %v666 = vpop.f32.mrf.mxu0
        %v667 = vadd.f32 0.0, %v666
        %668 = vmatmul.bf16.gmra.mxu0 %v611
        %v669 = vpop.f32.mrf.mxu0
        %v670 = vadd.f32 0.0, %v669
        %v671 = vpop.f32.mrf.mxu0
        %v672 = vadd.f32 0.0, %v671
        %673 = vmatmul.bf16.gmra.mxu0 %v614
        %v674 = vpop.f32.mrf.mxu0
        %v675 = vadd.f32 0.0, %v674
        %v676 = vpop.f32.mrf.mxu0
        %v677 = vadd.f32 0.0, %v676
        %678 = vmatmul.bf16.gmra.mxu0 %v617
        %v679 = vpop.f32.mrf.mxu0
        %v680 = vadd.f32 0.0, %v679
        %v681 = vpop.f32.mrf.mxu0
        %v682 = vadd.f32 0.0, %v681
        %683 = vmatmul.bf16.gmra.mxu0 %v620
        %v684 = vpop.f32.mrf.mxu0
        %v685 = vadd.f32 0.0, %v684
        %v686 = vpop.f32.mrf.mxu0
        %v687 = vadd.f32 0.0, %v686
        %688 = vmatmul.bf16.gmra.mxu0 %v623
        %v689 = vpop.f32.mrf.mxu0
        %v690 = vadd.f32 0.0, %v689
        %v691 = vpop.f32.mrf.mxu0
        %v692 = vadd.f32 0.0, %v691
        %693 = vmatmul.bf16.gmra.mxu0 %v626
        %v694 = vpop.f32.mrf.mxu0
        %v695 = vadd.f32 0.0, %v694
        %v696 = vpop.f32.mrf.mxu0
        %v697 = vadd.f32 0.0, %v696
        %698 = vmatmul.bf16.gmra.mxu0 %v629
        %v699 = vpop.f32.mrf.mxu0
        %v700 = vadd.f32 0.0, %v699
        %v701 = vpop.f32.mrf.mxu0
        %v702 = vadd.f32 0.0, %v701
        %703 = vmatmul.bf16.gmra.mxu0 %v632
        %v704 = vpop.f32.mrf.mxu0
        %v705 = vadd.f32 0.0, %v704
        %v706 = vpop.f32.mrf.mxu0
        %v707 = vadd.f32 0.0, %v706
        %708 = vmatmul.bf16.gmra.mxu0 %v635
        %v709 = vpop.f32.mrf.mxu0
        %v710 = vadd.f32 0.0, %v709
        %v711 = vpop.f32.mrf.mxu0
        %v712 = vadd.f32 0.0, %v711
        %713 = vmatmul.bf16.gmra.mxu0 %v638
        %v714 = vpop.f32.mrf.mxu0
        %v715 = vadd.f32 0.0, %v714
        %v716 = vpop.f32.mrf.mxu0
        %v717 = vadd.f32 0.0, %v716
        %718 = vmatmul.bf16.gmra.mxu0 %v641
        %v719 = vpop.f32.mrf.mxu0
        %v720 = vadd.f32 0.0, %v719
        %v721 = vpop.f32.mrf.mxu0
        %v722 = vadd.f32 0.0, %v721
        %723 = vmatmul.bf16.gmra.mxu0 %v644
        %v724 = vpop.f32.mrf.mxu0
        %v725 = vadd.f32 0.0, %v724
        %v726 = vpop.f32.mrf.mxu0
        %v727 = vadd.f32 0.0, %v726
        %728 = vmatmul.bf16.gmra.mxu0 %v647
        %v729 = vpop.f32.mrf.mxu0
        %v730 = vadd.f32 0.0, %v729
        %v731 = vpop.f32.mrf.mxu0
        %v732 = vadd.f32 0.0, %v731
        %733 = vmatmul.bf16.gmra.mxu0 %v650
        %v734 = vpop.f32.mrf.mxu0
        %v735 = vadd.f32 0.0, %v734
        %v736 = vpop.f32.mrf.mxu0
        %v737 = vadd.f32 0.0, %v736
        %738 = vmatmul.bf16.gmra.mxu0 %v653
        %v739 = vpop.f32.mrf.mxu0
        %v740 = vadd.f32 0.0, %v739
        %v741 = vpop.f32.mrf.mxu0
        %v742 = vadd.f32 0.0, %v741
        %743 = vdwg.mxu0
        %v744 = vld [vmem:[%s4] sm:$0x1]
        %v746 = vperm.slane %v744, 0
        %v748 = vmul.f32 %v665, %v746
        %v749 = vmul.f32 %v667, %v746
        %v750 = vmul.f32 %v670, %v746
        %v751 = vmul.f32 %v672, %v746
        %v752 = vmul.f32 %v675, %v746
        %v753 = vmul.f32 %v677, %v746
        %v754 = vmul.f32 %v680, %v746
        %v755 = vmul.f32 %v682, %v746
        %v756 = vmul.f32 %v685, %v746
        %v757 = vmul.f32 %v687, %v746
        %v758 = vmul.f32 %v690, %v746
        %v759 = vmul.f32 %v692, %v746
        %v760 = vmul.f32 %v695, %v746
        %v761 = vmul.f32 %v697, %v746
        %v762 = vmul.f32 %v700, %v746
        %v763 = vmul.f32 %v702, %v746
        %v764 = vmul.f32 %v705, %v746
        %v765 = vmul.f32 %v707, %v746
        %v766 = vmul.f32 %v710, %v746
        %v767 = vmul.f32 %v712, %v746
        %v768 = vmul.f32 %v715, %v746
        %v769 = vmul.f32 %v717, %v746
        %v770 = vmul.f32 %v720, %v746
        %v771 = vmul.f32 %v722, %v746
        %v772 = vmul.f32 %v725, %v746
        %v773 = vmul.f32 %v727, %v746
        %v774 = vmul.f32 %v730, %v746
        %v775 = vmul.f32 %v732, %v746
        %v776 = vmul.f32 %v735, %v746
        %v777 = vmul.f32 %v737, %v746
        %v778 = vmul.f32 %v740, %v746
        %v779 = vmul.f32 %v742, %v746
        %v780 = vld [vmem:[#allocation9] sm:$0x1]
        %v782 = vperm.slane %v780, 0
        %v784 = vadd.f32 %v748, %v782
        %v785 = vadd.f32 %v749, %v782
        %v786 = vadd.f32 %v750, %v782
        %v787 = vadd.f32 %v751, %v782
        %v788 = vadd.f32 %v752, %v782
        %v789 = vadd.f32 %v753, %v782
        %v790 = vadd.f32 %v754, %v782
        %v791 = vadd.f32 %v755, %v782
        %v792 = vadd.f32 %v756, %v782
        %v793 = vadd.f32 %v757, %v782
        %v794 = vadd.f32 %v758, %v782
        %v795 = vadd.f32 %v759, %v782
        %v796 = vadd.f32 %v760, %v782
        %v797 = vadd.f32 %v761, %v782
        %v798 = vadd.f32 %v762, %v782
        %v799 = vadd.f32 %v763, %v782
        %v800 = vadd.f32 %v764, %v782
        %v801 = vadd.f32 %v765, %v782
        %v802 = vadd.f32 %v766, %v782
        %v803 = vadd.f32 %v767, %v782
        %v804 = vadd.f32 %v768, %v782
        %v805 = vadd.f32 %v769, %v782
        %v806 = vadd.f32 %v770, %v782
        %v807 = vadd.f32 %v771, %v782
        %v808 = vadd.f32 %v772, %v782
        %v809 = vadd.f32 %v773, %v782
        %v810 = vadd.f32 %v774, %v782
        %v811 = vadd.f32 %v775, %v782
        %v812 = vadd.f32 %v776, %v782
        %v813 = vadd.f32 %v777, %v782
        %v814 = vadd.f32 %v778, %v782
        %v815 = vadd.f32 %v779, %v782
        %v816 = vmax.f32 %v784, 0.0
        %v817 = vmax.f32 %v785, 0.0
        %v818 = vmax.f32 %v786, 0.0
        %v819 = vmax.f32 %v787, 0.0
        %v820 = vmax.f32 %v788, 0.0
        %v821 = vmax.f32 %v789, 0.0
        %v822 = vmax.f32 %v790, 0.0
        %v823 = vmax.f32 %v791, 0.0
        %v824 = vmax.f32 %v792, 0.0
        %v825 = vmax.f32 %v793, 0.0
        %v826 = vmax.f32 %v794, 0.0
        %v827 = vmax.f32 %v795, 0.0
        %v828 = vmax.f32 %v796, 0.0
        %v829 = vmax.f32 %v797, 0.0
        %v830 = vmax.f32 %v798, 0.0
        %v831 = vmax.f32 %v799, 0.0
        %v832 = vmax.f32 %v800, 0.0
        %v833 = vmax.f32 %v801, 0.0
        %v834 = vmax.f32 %v802, 0.0
        %v835 = vmax.f32 %v803, 0.0
        %v836 = vmax.f32 %v804, 0.0
        %v837 = vmax.f32 %v805, 0.0
        %v838 = vmax.f32 %v806, 0.0
        %v839 = vmax.f32 %v807, 0.0
        %v840 = vmax.f32 %v808, 0.0
        %v841 = vmax.f32 %v809, 0.0
        %v842 = vmax.f32 %v810, 0.0
        %v843 = vmax.f32 %v811, 0.0
        %v844 = vmax.f32 %v812, 0.0
        %v845 = vmax.f32 %v813, 0.0
        %v846 = vmax.f32 %v814, 0.0
        %v847 = vmax.f32 %v815, 0.0
        %848 = vst [vmem:[#allocation2] sm:$0xff] 0.0
        %849 = vst [vmem:[#allocation2 + $0x8] sm:$0xff] 0.0
        %850 = vst [vmem:[#allocation2 + $0x10] sm:$0xff] 0.0
        %851 = vst [vmem:[#allocation2 + $0x18] sm:$0xff] 0.0
        %852 = vst [vmem:[#allocation2 + $0x20] sm:$0xff] 0.0
        %853 = vst [vmem:[#allocation2 + $0x28] sm:$0xff] 0.0
        %854 = vst [vmem:[#allocation2 + $0x30] sm:$0xff] 0.0
        %855 = vst [vmem:[#allocation2 + $0x38] sm:$0xff] 0.0
        %856 = vst [vmem:[#allocation2 + $0x40] sm:$0xff] 0.0
        %857 = vst [vmem:[#allocation2 + $0x48] sm:$0xff] 0.0
        %858 = vst [vmem:[#allocation2 + $0x50] sm:$0xff] 0.0
        %859 = vst [vmem:[#allocation2 + $0x58] sm:$0xff] 0.0
        %860 = vst [vmem:[#allocation2 + $0x60] sm:$0xff] 0.0
        %861 = vst [vmem:[#allocation2 + $0x68] sm:$0xff] 0.0
        %862 = vst [vmem:[#allocation2 + $0x70] sm:$0xff] 0.0
        %863 = vst [vmem:[#allocation2 + $0x78] sm:$0xff] 0.0
        %864 = vst [vmem:[#allocation2 + $0x80] sm:$0xff] 0.0
        %865 = vst [vmem:[#allocation2 + $0x88] sm:$0xff] 0.0
        %866 = vst [vmem:[#allocation2 + $0x90] sm:$0xff] 0.0
        %867 = vst [vmem:[#allocation2 + $0x98] sm:$0xff] 0.0
        %868 = vst [vmem:[#allocation2 + $0xa0] sm:$0xff] 0.0
        %869 = vst [vmem:[#allocation2 + $0xa8] sm:$0xff] 0.0
        %870 = vst [vmem:[#allocation2 + $0xb0] sm:$0xff] 0.0
        %871 = vst [vmem:[#allocation2 + $0xb8] sm:$0xff] 0.0
        %872 = vst [vmem:[#allocation2 + $0xc0] sm:$0xff] 0.0
        %873 = vst [vmem:[#allocation2 + $0xc8] sm:$0xff] 0.0
        %874 = vst [vmem:[#allocation2 + $0xd0] sm:$0xff] 0.0
        %875 = vst [vmem:[#allocation2 + $0xd8] sm:$0xff] 0.0
        %876 = vst [vmem:[#allocation2 + $0xe0] sm:$0xff] 0.0
        %877 = vst [vmem:[#allocation2 + $0xe8] sm:$0xff] 0.0
        %878 = vst [vmem:[#allocation2 + $0xf0] sm:$0xff] 0.0
        %879 = vst [vmem:[#allocation2 + $0xf8] sm:$0xff] 0.0
        %880 = vst [vmem:[#allocation2 + $0x100] sm:$0xff] 0.0
        %881 = vst [vmem:[#allocation2 + $0x108] sm:$0xff] 0.0
        %882 = vst [vmem:[#allocation2 + $0x110] sm:$0xff] 0.0
        %883 = vst [vmem:[#allocation2 + $0x118] sm:$0xff] 0.0
        %884 = vst [vmem:[#allocation2 + $0x120] sm:$0xff] 0.0
        %885 = vst [vmem:[#allocation2 + $0x128] sm:$0xff] 0.0
        %886 = vst [vmem:[#allocation2 + $0x130] sm:$0xff] 0.0
        %887 = vst [vmem:[#allocation2 + $0x138] sm:$0xff] 0.0
        %888 = vst [vmem:[#allocation2 + $0x140] sm:$0xff] 0.0
        %889 = vst [vmem:[#allocation2 + $0x148] sm:$0xff] 0.0
        %890 = vst [vmem:[#allocation2 + $0x150] sm:$0xff] 0.0
        %891 = vst [vmem:[#allocation2 + $0x158] sm:$0xff] 0.0
        %892 = vst [vmem:[#allocation2 + $0x160] sm:$0xff] 0.0
        %893 = vst [vmem:[#allocation2 + $0x168] sm:$0xff] 0.0
        %894 = vst [vmem:[#allocation2 + $0x170] sm:$0xff] 0.0
        %895 = vst [vmem:[#allocation2 + $0x178] sm:$0xff] 0.0
        %896 = vst [vmem:[#allocation2 + $0x180] sm:$0xff] 0.0
        %897 = vst [vmem:[#allocation2 + $0x188] sm:$0xff] 0.0
        %898 = vst [vmem:[#allocation2 + $0x190] sm:$0xff] 0.0
        %899 = vst [vmem:[#allocation2 + $0x198] sm:$0xff] 0.0
        %900 = vst [vmem:[#allocation2 + $0x1a0] sm:$0xff] 0.0
        %901 = vst [vmem:[#allocation2 + $0x1a8] sm:$0xff] 0.0
        %902 = vst [vmem:[#allocation2 + $0x1b0] sm:$0xff] 0.0
        %903 = vst [vmem:[#allocation2 + $0x1b8] sm:$0xff] 0.0
        %904 = vst [vmem:[#allocation2 + $0x1c0] sm:$0xff] 0.0
        %905 = vst [vmem:[#allocation2 + $0x1c8] sm:$0xff] 0.0
        %906 = vst [vmem:[#allocation2 + $0x1d0] sm:$0xff] 0.0
        %907 = vst [vmem:[#allocation2 + $0x1d8] sm:$0xff] 0.0
        %908 = vst [vmem:[#allocation2 + $0x1e0] sm:$0xff] 0.0
        %909 = vst [vmem:[#allocation2 + $0x1e8] sm:$0xff] 0.0
        %910 = vst [vmem:[#allocation2 + $0x1f0] sm:$0xff] 0.0
        %911 = vst [vmem:[#allocation2 + $0x1f8] sm:$0xff] 0.0
        %912 = vst [vmem:[#allocation2 + $0x200] sm:$0xff] 0.0
        %913 = vst [vmem:[#allocation2 + $0x208] sm:$0xff] 0.0
        %914 = vst [vmem:[#allocation2 + $0x210] sm:$0xff] 0.0
        %915 = vst [vmem:[#allocation2 + $0x218] sm:$0xff] 0.0
        %916 = vst [vmem:[#allocation2 + $0x220] sm:$0xff] 0.0
        %917 = vst [vmem:[#allocation2 + $0x228] sm:$0xff] 0.0
        %918 = vst [vmem:[#allocation2 + $0x230] sm:$0xff] 0.0
        %919 = vst [vmem:[#allocation2 + $0x238] sm:$0xff] 0.0
        %s920 = scalar_lea.vmem [#allocation2], 32
        %921 = vst [vmem:[%s920 + $0x8] sm:$0xff] %v816
        %922 = vst [vmem:[%s920 + $0x10] sm:$0xff] %v817
        %923 = vst [vmem:[%s920 + $0x28] sm:$0xff] %v818
        %924 = vst [vmem:[%s920 + $0x30] sm:$0xff] %v819
        %925 = vst [vmem:[%s920 + $0x48] sm:$0xff] %v820
        %926 = vst [vmem:[%s920 + $0x50] sm:$0xff] %v821
        %927 = vst [vmem:[%s920 + $0x68] sm:$0xff] %v822
        %928 = vst [vmem:[%s920 + $0x70] sm:$0xff] %v823
        %929 = vst [vmem:[%s920 + $0x88] sm:$0xff] %v824
        %930 = vst [vmem:[%s920 + $0x90] sm:$0xff] %v825
        %931 = vst [vmem:[%s920 + $0xa8] sm:$0xff] %v826
        %932 = vst [vmem:[%s920 + $0xb0] sm:$0xff] %v827
        %933 = vst [vmem:[%s920 + $0xc8] sm:$0xff] %v828
        %934 = vst [vmem:[%s920 + $0xd0] sm:$0xff] %v829
        %935 = vst [vmem:[%s920 + $0xe8] sm:$0xff] %v830
        %936 = vst [vmem:[%s920 + $0xf0] sm:$0xff] %v831
        %937 = vst [vmem:[%s920 + $0x108] sm:$0xff] %v832
        %938 = vst [vmem:[%s920 + $0x110] sm:$0xff] %v833
        %939 = vst [vmem:[%s920 + $0x128] sm:$0xff] %v834
        %940 = vst [vmem:[%s920 + $0x130] sm:$0xff] %v835
        %941 = vst [vmem:[%s920 + $0x148] sm:$0xff] %v836
        %942 = vst [vmem:[%s920 + $0x150] sm:$0xff] %v837
        %943 = vst [vmem:[%s920 + $0x168] sm:$0xff] %v838
        %944 = vst [vmem:[%s920 + $0x170] sm:$0xff] %v839
        %945 = vst [vmem:[%s920 + $0x188] sm:$0xff] %v840
        %946 = vst [vmem:[%s920 + $0x190] sm:$0xff] %v841
        %947 = vst [vmem:[%s920 + $0x1a8] sm:$0xff] %v842
        %948 = vst [vmem:[%s920 + $0x1b0] sm:$0xff] %v843
        %949 = vst [vmem:[%s920 + $0x1c8] sm:$0xff] %v844
        %950 = vst [vmem:[%s920 + $0x1d0] sm:$0xff] %v845
        %951 = vst [vmem:[%s920 + $0x1e8] sm:$0xff] %v846
        %952 = vst [vmem:[%s920 + $0x1f0] sm:$0xff] %v847
        %v953 = vld [vmem:[#allocation12] sm:$0xff]
        %v954 = vld [vmem:[#allocation12 + $0x8] sm:$0xff]
        %v955 = vld [vmem:[#allocation12 + $0x10] sm:$0xff]
        %v956 = vld [vmem:[#allocation12 + $0x18] sm:$0xff]
        %v957 = vld [vmem:[#allocation12 + $0x20] sm:$0xff]
        %v958 = vld [vmem:[#allocation12 + $0x28] sm:$0xff]
        %v959 = vld [vmem:[#allocation12 + $0x30] sm:$0xff]
        %v960 = vld [vmem:[#allocation12 + $0x38] sm:$0xff]
        %v961 = vld [vmem:[#allocation12 + $0x40] sm:$0xff]
        %v962 = vld [vmem:[#allocation12 + $0x48] sm:$0xff]
        %v963 = vld [vmem:[#allocation12 + $0x50] sm:$0xff]
        %v964 = vld [vmem:[#allocation12 + $0x58] sm:$0xff]
        %v965 = vld [vmem:[#allocation2 + $0x7] sm:$0xff]
        %v966 = vld [vmem:[#allocation2 + $0xf] sm:$0xff]
        %v967 = vld [vmem:[#allocation2 + $0x27] sm:$0xff]
        %v968 = vld [vmem:[#allocation2 + $0x2f] sm:$0xff]
        %v969 = vld [vmem:[#allocation2 + $0x47] sm:$0xff]
        %v970 = vld [vmem:[#allocation2 + $0x4f] sm:$0xff]
        %v971 = vld [vmem:[#allocation2 + $0x67] sm:$0xff]
        %v972 = vld [vmem:[#allocation2 + $0x6f] sm:$0xff]
        %v973 = vld [vmem:[#allocation2 + $0x87] sm:$0xff]
        %v974 = vld [vmem:[#allocation2 + $0x8f] sm:$0xff]
        %v975 = vld [vmem:[#allocation2 + $0xa7] sm:$0xff]
        %v976 = vld [vmem:[#allocation2 + $0xaf] sm:$0xff]
        %v977 = vld [vmem:[#allocation2 + $0xc7] sm:$0xff]
        %v978 = vld [vmem:[#allocation2 + $0xcf] sm:$0xff]
        %v979 = vld [vmem:[#allocation2 + $0xe7] sm:$0xff]
        %v980 = vld [vmem:[#allocation2 + $0xef] sm:$0xff]
        %v981 = vld [vmem:[#allocation2 + $0x107] sm:$0xff]
        %v982 = vld [vmem:[#allocation2 + $0x10f] sm:$0xff]
        %v983 = vld [vmem:[#allocation2 + $0x127] sm:$0xff]
        %v984 = vld [vmem:[#allocation2 + $0x12f] sm:$0xff]
        %v985 = vld [vmem:[#allocation2 + $0x147] sm:$0xff]
        %v986 = vld [vmem:[#allocation2 + $0x14f] sm:$0xff]
        %v987 = vld [vmem:[#allocation2 + $0x167] sm:$0xff]
        %v988 = vld [vmem:[#allocation2 + $0x16f] sm:$0xff]
        %v989 = vld [vmem:[#allocation2 + $0x187] sm:$0xff]
        %v990 = vld [vmem:[#allocation2 + $0x18f] sm:$0xff]
        %v991 = vld [vmem:[#allocation2 + $0x1a7] sm:$0xff]
        %v992 = vld [vmem:[#allocation2 + $0x1af] sm:$0xff]
        %v993 = vld [vmem:[#allocation2 + $0x1c7] sm:$0xff]
        %v994 = vld [vmem:[#allocation2 + $0x1cf] sm:$0xff]
        %v995 = vld [vmem:[#allocation2 + $0x1e7] sm:$0xff]
        %v996 = vld [vmem:[#allocation2 + $0x1ef] sm:$0xff]
        %v997 = vpack.c.bf16 %v966, %v965
        %v998 = vpack.c.bf16 %v968, %v967
        %v999 = vpack.c.bf16 %v970, %v969
        %v1000 = vpack.c.bf16 %v972, %v971
        %v1001 = vpack.c.bf16 %v974, %v973
        %v1002 = vpack.c.bf16 %v976, %v975
        %v1003 = vpack.c.bf16 %v978, %v977
        %v1004 = vpack.c.bf16 %v980, %v979
        %v1005 = vpack.c.bf16 %v982, %v981
        %v1006 = vpack.c.bf16 %v984, %v983
        %v1007 = vpack.c.bf16 %v986, %v985
        %v1008 = vpack.c.bf16 %v988, %v987
        %v1009 = vpack.c.bf16 %v990, %v989
        %v1010 = vpack.c.bf16 %v992, %v991
        %v1011 = vpack.c.bf16 %v994, %v993
        %v1012 = vpack.c.bf16 %v996, %v995
        %v1013 = vld [vmem:[#allocation11] sm:$0xf]
        %v1014 = vld [vmem:[#allocation11 + $0x4] sm:$0xf]
        %v1015 = vld [vmem:[#allocation11 + $0x8] sm:$0xf]
        %v1016 = vld [vmem:[#allocation11 + $0xc] sm:$0xf]
        %v1017 = vld [vmem:[#allocation11 + $0x10] sm:$0xf]
        %v1018 = vld [vmem:[#allocation11 + $0x14] sm:$0xf]
        %v1019 = vld [vmem:[#allocation11 + $0x18] sm:$0xf]
        %v1020 = vld [vmem:[#allocation11 + $0x1c] sm:$0xf]
        %v1021 = vld [vmem:[#allocation11 + $0x20] sm:$0xf]
        %v1022 = vld [vmem:[#allocation11 + $0x24] sm:$0xf]
        %v1023 = vld [vmem:[#allocation11 + $0x28] sm:$0xf]
        %v1024 = vld [vmem:[#allocation11 + $0x2c] sm:$0xf]
        %v1025 = vld [vmem:[#allocation11 + $0x30] sm:$0xf]
        %v1026 = vld [vmem:[#allocation11 + $0x34] sm:$0xf]
        %v1027 = vld [vmem:[#allocation11 + $0x38] sm:$0xf]
        %v1028 = vld [vmem:[#allocation11 + $0x3c] sm:$0xf]
        %v1045 = vunpack.c.l.b16 %v1013
        %v1046 = vunpack.c.l.b16 %v1014
        %v1047 = vunpack.c.l.b16 %v1015
        %v1048 = vunpack.c.l.b16 %v1016
        %v1049 = vunpack.c.l.b16 %v1017
        %v1050 = vunpack.c.l.b16 %v1018
        %v1051 = vunpack.c.l.b16 %v1019
        %v1052 = vunpack.c.l.b16 %v1020
        %v1053 = vunpack.c.l.b16 %v1021
        %v1054 = vunpack.c.l.b16 %v1022
        %v1055 = vunpack.c.l.b16 %v1023
        %v1056 = vunpack.c.l.b16 %v1024
        %v1057 = vunpack.c.l.b16 %v1025
        %v1058 = vunpack.c.l.b16 %v1026
        %v1059 = vunpack.c.l.b16 %v1027
        %v1060 = vunpack.c.l.b16 %v1028
        %v1061 = vpack.c.b16 %v1046, %v1045
        %v1062 = vpack.c.b16 %v1048, %v1047
        %v1063 = vpack.c.b16 %v1050, %v1049
        %v1064 = vpack.c.b16 %v1052, %v1051
        %v1065 = vpack.c.b16 %v1054, %v1053
        %v1066 = vpack.c.b16 %v1056, %v1055
        %v1067 = vpack.c.b16 %v1058, %v1057
        %v1068 = vpack.c.b16 %v1060, %v1059
        %1077 = vmatpush.bf16.msra.mxu0 %v1068
        %1078 = vmatpush.bf16.msra.mxu0 %v1067
        %1079 = vmatpush.bf16.msra.mxu0 %v1066
        %1080 = vmatpush.bf16.msra.mxu0 %v1065
        %1081 = vmatpush.bf16.msra.mxu0 %v1064
        %1082 = vmatpush.bf16.msra.mxu0 %v1063
        %1083 = vmatpush.bf16.msra.mxu0 %v1062
        %1084 = vmatpush.bf16.msra.mxu0 %v1061
        %1085 = vmatmul.bf16.gmra.mxu0 %v997
        %v1086 = vpop.f32.mrf.mxu0
        %v1087 = vadd.f32 0.0, %v1086
        %v1088 = vpop.f32.mrf.mxu0
        %v1089 = vadd.f32 0.0, %v1088
        %1090 = vmatmul.bf16.gmra.mxu0 %v998
        %v1091 = vpop.f32.mrf.mxu0
        %v1092 = vadd.f32 0.0, %v1091
        %v1093 = vpop.f32.mrf.mxu0
        %v1094 = vadd.f32 0.0, %v1093
        %1095 = vmatmul.bf16.gmra.mxu0 %v999
        %v1096 = vpop.f32.mrf.mxu0
        %v1097 = vadd.f32 0.0, %v1096
        %v1098 = vpop.f32.mrf.mxu0
        %v1099 = vadd.f32 0.0, %v1098
        %1100 = vmatmul.bf16.gmra.mxu0 %v1000
        %v1101 = vpop.f32.mrf.mxu0
        %v1102 = vadd.f32 0.0, %v1101
        %v1103 = vpop.f32.mrf.mxu0
        %v1104 = vadd.f32 0.0, %v1103
        %1105 = vmatmul.bf16.gmra.mxu0 %v1001
        %v1106 = vpop.f32.mrf.mxu0
        %v1107 = vadd.f32 0.0, %v1106
        %v1108 = vpop.f32.mrf.mxu0
        %v1109 = vadd.f32 0.0, %v1108
        %1110 = vmatmul.bf16.gmra.mxu0 %v1002
        %v1111 = vpop.f32.mrf.mxu0
        %v1112 = vadd.f32 0.0, %v1111
        %v1113 = vpop.f32.mrf.mxu0
        %v1114 = vadd.f32 0.0, %v1113
        %1115 = vmatmul.bf16.gmra.mxu0 %v1003
        %v1116 = vpop.f32.mrf.mxu0
        %v1117 = vadd.f32 0.0, %v1116
        %v1118 = vpop.f32.mrf.mxu0
        %v1119 = vadd.f32 0.0, %v1118
        %1120 = vmatmul.bf16.gmra.mxu0 %v1004
        %v1121 = vpop.f32.mrf.mxu0
        %v1122 = vadd.f32 0.0, %v1121
        %v1123 = vpop.f32.mrf.mxu0
        %v1124 = vadd.f32 0.0, %v1123
        %1125 = vmatmul.bf16.gmra.mxu0 %v1005
        %v1126 = vpop.f32.mrf.mxu0
        %v1127 = vadd.f32 0.0, %v1126
        %v1128 = vpop.f32.mrf.mxu0
        %v1129 = vadd.f32 0.0, %v1128
        %1130 = vmatmul.bf16.gmra.mxu0 %v1006
        %v1131 = vpop.f32.mrf.mxu0
        %v1132 = vadd.f32 0.0, %v1131
        %v1133 = vpop.f32.mrf.mxu0
        %v1134 = vadd.f32 0.0, %v1133
        %1135 = vmatmul.bf16.gmra.mxu0 %v1007
        %v1136 = vpop.f32.mrf.mxu0
        %v1137 = vadd.f32 0.0, %v1136
        %v1138 = vpop.f32.mrf.mxu0
        %v1139 = vadd.f32 0.0, %v1138
        %1140 = vmatmul.bf16.gmra.mxu0 %v1008
        %v1141 = vpop.f32.mrf.mxu0
        %v1142 = vadd.f32 0.0, %v1141
        %v1143 = vpop.f32.mrf.mxu0
        %v1144 = vadd.f32 0.0, %v1143
        %1145 = vmatmul.bf16.gmra.mxu0 %v1009
        %v1146 = vpop.f32.mrf.mxu0
        %v1147 = vadd.f32 0.0, %v1146
        %v1148 = vpop.f32.mrf.mxu0
        %v1149 = vadd.f32 0.0, %v1148
        %1150 = vmatmul.bf16.gmra.mxu0 %v1010
        %v1151 = vpop.f32.mrf.mxu0
        %v1152 = vadd.f32 0.0, %v1151
        %v1153 = vpop.f32.mrf.mxu0
        %v1154 = vadd.f32 0.0, %v1153
        %1155 = vmatmul.bf16.gmra.mxu0 %v1011
        %v1156 = vpop.f32.mrf.mxu0
        %v1157 = vadd.f32 0.0, %v1156
        %v1158 = vpop.f32.mrf.mxu0
        %v1159 = vadd.f32 0.0, %v1158
        %1160 = vmatmul.bf16.gmra.mxu0 %v1012
        %v1161 = vpop.f32.mrf.mxu0
        %v1162 = vadd.f32 0.0, %v1161
        %v1163 = vpop.f32.mrf.mxu0
        %v1164 = vadd.f32 0.0, %v1163
        %1165 = vdwg.mxu0
        %v1167 = vsel %vm606, %v406, 0
        %v1170 = vsel %vm606, %v407, 0
        %v1173 = vsel %vm606, %v408, 0
        %v1176 = vsel %vm606, %v409, 0
        %v1179 = vsel %vm606, %v410, 0
        %v1182 = vsel %vm606, %v411, 0
        %v1185 = vsel %vm606, %v412, 0
        %v1188 = vsel %vm606, %v413, 0
        %v1191 = vsel %vm606, %v414, 0
        %v1194 = vsel %vm606, %v415, 0
        %v1197 = vsel %vm606, %v416, 0
        %v1200 = vsel %vm606, %v417, 0
        %v1203 = vsel %vm606, %v418, 0
        %v1206 = vsel %vm606, %v419, 0
        %v1209 = vsel %vm606, %v420, 0
        %v1212 = vsel %vm606, %v421, 0
        %v1215 = vsel %vm606, %v422, 0
        %v1218 = vsel %vm606, %v423, 0
        %v1221 = vsel %vm606, %v424, 0
        %v1224 = vsel %vm606, %v425, 0
        %v1227 = vsel %vm606, %v426, 0
        %v1230 = vsel %vm606, %v427, 0
        %v1233 = vsel %vm606, %v428, 0
        %v1236 = vsel %vm606, %v429, 0
        %v1239 = vsel %vm606, %v430, 0
        %v1242 = vsel %vm606, %v431, 0
        %v1245 = vsel %vm606, %v432, 0
        %v1248 = vsel %vm606, %v433, 0
        %v1251 = vsel %vm606, %v434, 0
        %v1254 = vsel %vm606, %v435, 0
        %v1257 = vsel %vm606, %v436, 0
        %v1260 = vsel %vm606, %v437, 0
        %1262 = vmatpush.msra.mxu0 0.0
        %1263 = vmatpush.msra.mxu0 0.0
        %1264 = vmatpush.msra.mxu0 0.0
        %1265 = vmatpush.msra.mxu0 0.0
        %1266 = vmatpush.msra.mxu0 %v964
        %1267 = vmatpush.msra.mxu0 %v963
        %1268 = vmatpush.msra.mxu0 %v962
        %1269 = vmatpush.msra.mxu0 %v961
        %1270 = vmatpush.msra.mxu0 %v960
        %1271 = vmatpush.msra.mxu0 %v959
        %1272 = vmatpush.msra.mxu0 %v958
        %1273 = vmatpush.msra.mxu0 %v957
        %1274 = vmatpush.msra.mxu0 %v956
        %1275 = vmatpush.msra.mxu0 %v955
        %1276 = vmatpush.msra.mxu0 %v954
        %1277 = vmatpush.msra.mxu0 %v953
        %1278 = vmatmul.f32.gmra.mxu0 %v1167
        %v1279 = vpop.f32.mrf.mxu0
        %v1280 = vadd.f32 %v1087, %v1279
        %1281 = vmatmul.f32.gmra.mxu0 %v1170
        %v1282 = vpop.f32.mrf.mxu0
        %v1283 = vadd.f32 %v1089, %v1282
        %1284 = vmatmul.f32.gmra.mxu0 %v1173
        %v1285 = vpop.f32.mrf.mxu0
        %v1286 = vadd.f32 %v1092, %v1285
        %1287 = vmatmul.f32.gmra.mxu0 %v1176
        %v1288 = vpop.f32.mrf.mxu0
        %v1289 = vadd.f32 %v1094, %v1288
        %1290 = vmatmul.f32.gmra.mxu0 %v1179
        %v1291 = vpop.f32.mrf.mxu0
        %v1292 = vadd.f32 %v1097, %v1291
        %1293 = vmatmul.f32.gmra.mxu0 %v1182
        %v1294 = vpop.f32.mrf.mxu0
        %v1295 = vadd.f32 %v1099, %v1294
        %1296 = vmatmul.f32.gmra.mxu0 %v1185
        %v1297 = vpop.f32.mrf.mxu0
        %v1298 = vadd.f32 %v1102, %v1297
        %1299 = vmatmul.f32.gmra.mxu0 %v1188
        %v1300 = vpop.f32.mrf.mxu0
        %v1301 = vadd.f32 %v1104, %v1300
        %1302 = vmatmul.f32.gmra.mxu0 %v1191
        %v1303 = vpop.f32.mrf.mxu0
        %v1304 = vadd.f32 %v1107, %v1303
        %1305 = vmatmul.f32.gmra.mxu0 %v1194
        %v1306 = vpop.f32.mrf.mxu0
        %v1307 = vadd.f32 %v1109, %v1306
        %1308 = vmatmul.f32.gmra.mxu0 %v1197
        %v1309 = vpop.f32.mrf.mxu0
        %v1310 = vadd.f32 %v1112, %v1309
        %1311 = vmatmul.f32.gmra.mxu0 %v1200
        %v1312 = vpop.f32.mrf.mxu0
        %v1313 = vadd.f32 %v1114, %v1312
        %1314 = vmatmul.f32.gmra.mxu0 %v1203
        %v1315 = vpop.f32.mrf.mxu0
        %v1316 = vadd.f32 %v1117, %v1315
        %1317 = vmatmul.f32.gmra.mxu0 %v1206
        %v1318 = vpop.f32.mrf.mxu0
        %v1319 = vadd.f32 %v1119, %v1318
        %1320 = vmatmul.f32.gmra.mxu0 %v1209
        %v1321 = vpop.f32.mrf.mxu0
        %v1322 = vadd.f32 %v1122, %v1321
        %1323 = vmatmul.f32.gmra.mxu0 %v1212
        %v1324 = vpop.f32.mrf.mxu0
        %v1325 = vadd.f32 %v1124, %v1324
        %1326 = vmatmul.f32.gmra.mxu0 %v1215
        %v1327 = vpop.f32.mrf.mxu0
        %v1328 = vadd.f32 %v1127, %v1327
        %1329 = vmatmul.f32.gmra.mxu0 %v1218
        %v1330 = vpop.f32.mrf.mxu0
        %v1331 = vadd.f32 %v1129, %v1330
        %1332 = vmatmul.f32.gmra.mxu0 %v1221
        %v1333 = vpop.f32.mrf.mxu0
        %v1334 = vadd.f32 %v1132, %v1333
        %1335 = vmatmul.f32.gmra.mxu0 %v1224
        %v1336 = vpop.f32.mrf.mxu0
        %v1337 = vadd.f32 %v1134, %v1336
        %1338 = vmatmul.f32.gmra.mxu0 %v1227
        %v1339 = vpop.f32.mrf.mxu0
        %v1340 = vadd.f32 %v1137, %v1339
        %1341 = vmatmul.f32.gmra.mxu0 %v1230
        %v1342 = vpop.f32.mrf.mxu0
        %v1343 = vadd.f32 %v1139, %v1342
        %1344 = vmatmul.f32.gmra.mxu0 %v1233
        %v1345 = vpop.f32.mrf.mxu0
        %v1346 = vadd.f32 %v1142, %v1345
        %1347 = vmatmul.f32.gmra.mxu0 %v1236
        %v1348 = vpop.f32.mrf.mxu0
        %v1349 = vadd.f32 %v1144, %v1348
        %1350 = vmatmul.f32.gmra.mxu0 %v1239
        %v1351 = vpop.f32.mrf.mxu0
        %v1352 = vadd.f32 %v1147, %v1351
        %1353 = vmatmul.f32.gmra.mxu0 %v1242
        %v1354 = vpop.f32.mrf.mxu0
        %v1355 = vadd.f32 %v1149, %v1354
        %1356 = vmatmul.f32.gmra.mxu0 %v1245
        %v1357 = vpop.f32.mrf.mxu0
        %v1358 = vadd.f32 %v1152, %v1357
        %1359 = vmatmul.f32.gmra.mxu0 %v1248
        %v1360 = vpop.f32.mrf.mxu0
        %v1361 = vadd.f32 %v1154, %v1360
        %1362 = vmatmul.f32.gmra.mxu0 %v1251
        %v1363 = vpop.f32.mrf.mxu0
        %v1364 = vadd.f32 %v1157, %v1363
        %1365 = vmatmul.f32.gmra.mxu0 %v1254
        %v1366 = vpop.f32.mrf.mxu0
        %v1367 = vadd.f32 %v1159, %v1366
        %1368 = vmatmul.f32.gmra.mxu0 %v1257
        %v1369 = vpop.f32.mrf.mxu0
        %v1370 = vadd.f32 %v1162, %v1369
        %1371 = vmatmul.f32.gmra.mxu0 %v1260
        %v1372 = vpop.f32.mrf.mxu0
        %v1373 = vadd.f32 %v1164, %v1372
        %1374 = vdwg.mxu0
        %v1375 = vld [vmem:[#allocation2 + $0x8] sm:$0xff]
        %v1376 = vld [vmem:[#allocation2 + $0x10] sm:$0xff]
        %v1377 = vld [vmem:[#allocation2 + $0x28] sm:$0xff]
        %v1378 = vld [vmem:[#allocation2 + $0x30] sm:$0xff]
        %v1379 = vld [vmem:[#allocation2 + $0x48] sm:$0xff]
        %v1380 = vld [vmem:[#allocation2 + $0x50] sm:$0xff]
        %v1381 = vld [vmem:[#allocation2 + $0x68] sm:$0xff]
        %v1382 = vld [vmem:[#allocation2 + $0x70] sm:$0xff]
        %v1383 = vld [vmem:[#allocation2 + $0x88] sm:$0xff]
        %v1384 = vld [vmem:[#allocation2 + $0x90] sm:$0xff]
        %v1385 = vld [vmem:[#allocation2 + $0xa8] sm:$0xff]
        %v1386 = vld [vmem:[#allocation2 + $0xb0] sm:$0xff]
        %v1387 = vld [vmem:[#allocation2 + $0xc8] sm:$0xff]
        %v1388 = vld [vmem:[#allocation2 + $0xd0] sm:$0xff]
        %v1389 = vld [vmem:[#allocation2 + $0xe8] sm:$0xff]
        %v1390 = vld [vmem:[#allocation2 + $0xf0] sm:$0xff]
        %v1391 = vld [vmem:[#allocation2 + $0x108] sm:$0xff]
        %v1392 = vld [vmem:[#allocation2 + $0x110] sm:$0xff]
        %v1393 = vld [vmem:[#allocation2 + $0x128] sm:$0xff]
        %v1394 = vld [vmem:[#allocation2 + $0x130] sm:$0xff]
        %v1395 = vld [vmem:[#allocation2 + $0x148] sm:$0xff]
        %v1396 = vld [vmem:[#allocation2 + $0x150] sm:$0xff]
        %v1397 = vld [vmem:[#allocation2 + $0x168] sm:$0xff]
        %v1398 = vld [vmem:[#allocation2 + $0x170] sm:$0xff]
        %v1399 = vld [vmem:[#allocation2 + $0x188] sm:$0xff]
        %v1400 = vld [vmem:[#allocation2 + $0x190] sm:$0xff]
        %v1401 = vld [vmem:[#allocation2 + $0x1a8] sm:$0xff]
        %v1402 = vld [vmem:[#allocation2 + $0x1b0] sm:$0xff]
        %v1403 = vld [vmem:[#allocation2 + $0x1c8] sm:$0xff]
        %v1404 = vld [vmem:[#allocation2 + $0x1d0] sm:$0xff]
        %v1405 = vld [vmem:[#allocation2 + $0x1e8] sm:$0xff]
        %v1406 = vld [vmem:[#allocation2 + $0x1f0] sm:$0xff]
        %v1407 = vpack.c.bf16 %v1376, %v1375
        %v1408 = vpack.c.bf16 %v1378, %v1377
        %v1409 = vpack.c.bf16 %v1380, %v1379
        %v1410 = vpack.c.bf16 %v1382, %v1381
        %v1411 = vpack.c.bf16 %v1384, %v1383
        %v1412 = vpack.c.bf16 %v1386, %v1385
        %v1413 = vpack.c.bf16 %v1388, %v1387
        %v1414 = vpack.c.bf16 %v1390, %v1389
        %v1415 = vpack.c.bf16 %v1392, %v1391
        %v1416 = vpack.c.bf16 %v1394, %v1393
        %v1417 = vpack.c.bf16 %v1396, %v1395
        %v1418 = vpack.c.bf16 %v1398, %v1397
        %v1419 = vpack.c.bf16 %v1400, %v1399
        %v1420 = vpack.c.bf16 %v1402, %v1401
        %v1421 = vpack.c.bf16 %v1404, %v1403
        %v1422 = vpack.c.bf16 %v1406, %v1405
        %s1423 = scalar_lea.vmem [#allocation11], 64
        %v1424 = vld [vmem:[%s1423] sm:$0xf]
        %v1425 = vld [vmem:[%s1423 + $0x4] sm:$0xf]
        %v1426 = vld [vmem:[%s1423 + $0x8] sm:$0xf]
        %v1427 = vld [vmem:[%s1423 + $0xc] sm:$0xf]
        %v1428 = vld [vmem:[%s1423 + $0x10] sm:$0xf]
        %v1429 = vld [vmem:[%s1423 + $0x14] sm:$0xf]
        %v1430 = vld [vmem:[%s1423 + $0x18] sm:$0xf]
        %v1431 = vld [vmem:[%s1423 + $0x1c] sm:$0xf]
        %v1432 = vld [vmem:[%s1423 + $0x20] sm:$0xf]
        %v1433 = vld [vmem:[%s1423 + $0x24] sm:$0xf]
        %v1434 = vld [vmem:[%s1423 + $0x28] sm:$0xf]
        %v1435 = vld [vmem:[%s1423 + $0x2c] sm:$0xf]
        %v1436 = vld [vmem:[%s1423 + $0x30] sm:$0xf]
        %v1437 = vld [vmem:[%s1423 + $0x34] sm:$0xf]
        %v1438 = vld [vmem:[%s1423 + $0x38] sm:$0xf]
        %v1439 = vld [vmem:[%s1423 + $0x3c] sm:$0xf]
        %v1456 = vunpack.c.l.b16 %v1424
        %v1457 = vunpack.c.l.b16 %v1425
        %v1458 = vunpack.c.l.b16 %v1426
        %v1459 = vunpack.c.l.b16 %v1427
        %v1460 = vunpack.c.l.b16 %v1428
        %v1461 = vunpack.c.l.b16 %v1429
        %v1462 = vunpack.c.l.b16 %v1430
        %v1463 = vunpack.c.l.b16 %v1431
        %v1464 = vunpack.c.l.b16 %v1432
        %v1465 = vunpack.c.l.b16 %v1433
        %v1466 = vunpack.c.l.b16 %v1434
        %v1467 = vunpack.c.l.b16 %v1435
        %v1468 = vunpack.c.l.b16 %v1436
        %v1469 = vunpack.c.l.b16 %v1437
        %v1470 = vunpack.c.l.b16 %v1438
        %v1471 = vunpack.c.l.b16 %v1439
        %v1472 = vpack.c.b16 %v1457, %v1456
        %v1473 = vpack.c.b16 %v1459, %v1458
        %v1474 = vpack.c.b16 %v1461, %v1460
        %v1475 = vpack.c.b16 %v1463, %v1462
        %v1476 = vpack.c.b16 %v1465, %v1464
        %v1477 = vpack.c.b16 %v1467, %v1466
        %v1478 = vpack.c.b16 %v1469, %v1468
        %v1479 = vpack.c.b16 %v1471, %v1470
        %1488 = vmatpush.bf16.msra.mxu0 %v1479
        %1489 = vmatpush.bf16.msra.mxu0 %v1478
        %1490 = vmatpush.bf16.msra.mxu0 %v1477
        %1491 = vmatpush.bf16.msra.mxu0 %v1476
        %1492 = vmatpush.bf16.msra.mxu0 %v1475
        %1493 = vmatpush.bf16.msra.mxu0 %v1474
        %1494 = vmatpush.bf16.msra.mxu0 %v1473
        %1495 = vmatpush.bf16.msra.mxu0 %v1472
        %1496 = vmatmul.bf16.gmra.mxu0 %v1407
        %v1497 = vpop.f32.mrf.mxu0
        %v1498 = vadd.f32 0.0, %v1497
        %v1499 = vpop.f32.mrf.mxu0
        %v1500 = vadd.f32 0.0, %v1499
        %1501 = vmatmul.bf16.gmra.mxu0 %v1408
        %v1502 = vpop.f32.mrf.mxu0
        %v1503 = vadd.f32 0.0, %v1502
        %v1504 = vpop.f32.mrf.mxu0
        %v1505 = vadd.f32 0.0, %v1504
        %1506 = vmatmul.bf16.gmra.mxu0 %v1409
        %v1507 = vpop.f32.mrf.mxu0
        %v1508 = vadd.f32 0.0, %v1507
        %v1509 = vpop.f32.mrf.mxu0
        %v1510 = vadd.f32 0.0, %v1509
        %1511 = vmatmul.bf16.gmra.mxu0 %v1410
        %v1512 = vpop.f32.mrf.mxu0
        %v1513 = vadd.f32 0.0, %v1512
        %v1514 = vpop.f32.mrf.mxu0
        %v1515 = vadd.f32 0.0, %v1514
        %1516 = vmatmul.bf16.gmra.mxu0 %v1411
        %v1517 = vpop.f32.mrf.mxu0
        %v1518 = vadd.f32 0.0, %v1517
        %v1519 = vpop.f32.mrf.mxu0
        %v1520 = vadd.f32 0.0, %v1519
        %1521 = vmatmul.bf16.gmra.mxu0 %v1412
        %v1522 = vpop.f32.mrf.mxu0
        %v1523 = vadd.f32 0.0, %v1522
        %v1524 = vpop.f32.mrf.mxu0
        %v1525 = vadd.f32 0.0, %v1524
        %1526 = vmatmul.bf16.gmra.mxu0 %v1413
        %v1527 = vpop.f32.mrf.mxu0
        %v1528 = vadd.f32 0.0, %v1527
        %v1529 = vpop.f32.mrf.mxu0
        %v1530 = vadd.f32 0.0, %v1529
        %1531 = vmatmul.bf16.gmra.mxu0 %v1414
        %v1532 = vpop.f32.mrf.mxu0
        %v1533 = vadd.f32 0.0, %v1532
        %v1534 = vpop.f32.mrf.mxu0
        %v1535 = vadd.f32 0.0, %v1534
        %1536 = vmatmul.bf16.gmra.mxu0 %v1415
        %v1537 = vpop.f32.mrf.mxu0
        %v1538 = vadd.f32 0.0, %v1537
        %v1539 = vpop.f32.mrf.mxu0
        %v1540 = vadd.f32 0.0, %v1539
        %1541 = vmatmul.bf16.gmra.mxu0 %v1416
        %v1542 = vpop.f32.mrf.mxu0
        %v1543 = vadd.f32 0.0, %v1542
        %v1544 = vpop.f32.mrf.mxu0
        %v1545 = vadd.f32 0.0, %v1544
        %1546 = vmatmul.bf16.gmra.mxu0 %v1417
        %v1547 = vpop.f32.mrf.mxu0
        %v1548 = vadd.f32 0.0, %v1547
        %v1549 = vpop.f32.mrf.mxu0
        %v1550 = vadd.f32 0.0, %v1549
        %1551 = vmatmul.bf16.gmra.mxu0 %v1418
        %v1552 = vpop.f32.mrf.mxu0
        %v1553 = vadd.f32 0.0, %v1552
        %v1554 = vpop.f32.mrf.mxu0
        %v1555 = vadd.f32 0.0, %v1554
        %1556 = vmatmul.bf16.gmra.mxu0 %v1419
        %v1557 = vpop.f32.mrf.mxu0
        %v1558 = vadd.f32 0.0, %v1557
        %v1559 = vpop.f32.mrf.mxu0
        %v1560 = vadd.f32 0.0, %v1559
        %1561 = vmatmul.bf16.gmra.mxu0 %v1420
        %v1562 = vpop.f32.mrf.mxu0
        %v1563 = vadd.f32 0.0, %v1562
        %v1564 = vpop.f32.mrf.mxu0
        %v1565 = vadd.f32 0.0, %v1564
        %1566 = vmatmul.bf16.gmra.mxu0 %v1421
        %v1567 = vpop.f32.mrf.mxu0
        %v1568 = vadd.f32 0.0, %v1567
        %v1569 = vpop.f32.mrf.mxu0
        %v1570 = vadd.f32 0.0, %v1569
        %1571 = vmatmul.bf16.gmra.mxu0 %v1422
        %v1572 = vpop.f32.mrf.mxu0
        %v1573 = vadd.f32 0.0, %v1572
        %v1574 = vpop.f32.mrf.mxu0
        %v1575 = vadd.f32 0.0, %v1574
        %1576 = vdwg.mxu0
        %v1577 = vadd.f32 %v1280, %v1498
        %v1578 = vadd.f32 %v1283, %v1500
        %v1579 = vadd.f32 %v1286, %v1503
        %v1580 = vadd.f32 %v1289, %v1505
        %v1581 = vadd.f32 %v1292, %v1508
        %v1582 = vadd.f32 %v1295, %v1510
        %v1583 = vadd.f32 %v1298, %v1513
        %v1584 = vadd.f32 %v1301, %v1515
        %v1585 = vadd.f32 %v1304, %v1518
        %v1586 = vadd.f32 %v1307, %v1520
        %v1587 = vadd.f32 %v1310, %v1523
        %v1588 = vadd.f32 %v1313, %v1525
        %v1589 = vadd.f32 %v1316, %v1528
        %v1590 = vadd.f32 %v1319, %v1530
        %v1591 = vadd.f32 %v1322, %v1533
        %v1592 = vadd.f32 %v1325, %v1535
        %v1593 = vadd.f32 %v1328, %v1538
        %v1594 = vadd.f32 %v1331, %v1540
        %v1595 = vadd.f32 %v1334, %v1543
        %v1596 = vadd.f32 %v1337, %v1545
        %v1597 = vadd.f32 %v1340, %v1548
        %v1598 = vadd.f32 %v1343, %v1550
        %v1599 = vadd.f32 %v1346, %v1553
        %v1600 = vadd.f32 %v1349, %v1555
        %v1601 = vadd.f32 %v1352, %v1558
        %v1602 = vadd.f32 %v1355, %v1560
        %v1603 = vadd.f32 %v1358, %v1563
        %v1604 = vadd.f32 %v1361, %v1565
        %v1605 = vadd.f32 %v1364, %v1568
        %v1606 = vadd.f32 %v1367, %v1570
        %v1607 = vadd.f32 %v1370, %v1573
        %v1608 = vadd.f32 %v1373, %v1575
        %v1609 = vld [vmem:[#allocation2 + $0x9] sm:$0xff]
        %v1610 = vld [vmem:[#allocation2 + $0x11] sm:$0xff]
        %v1611 = vld [vmem:[#allocation2 + $0x29] sm:$0xff]
        %v1612 = vld [vmem:[#allocation2 + $0x31] sm:$0xff]
        %v1613 = vld [vmem:[#allocation2 + $0x49] sm:$0xff]
        %v1614 = vld [vmem:[#allocation2 + $0x51] sm:$0xff]
        %v1615 = vld [vmem:[#allocation2 + $0x69] sm:$0xff]
        %v1616 = vld [vmem:[#allocation2 + $0x71] sm:$0xff]
        %v1617 = vld [vmem:[#allocation2 + $0x89] sm:$0xff]
        %v1618 = vld [vmem:[#allocation2 + $0x91] sm:$0xff]
        %v1619 = vld [vmem:[#allocation2 + $0xa9] sm:$0xff]
        %v1620 = vld [vmem:[#allocation2 + $0xb1] sm:$0xff]
        %v1621 = vld [vmem:[#allocation2 + $0xc9] sm:$0xff]
        %v1622 = vld [vmem:[#allocation2 + $0xd1] sm:$0xff]
        %v1623 = vld [vmem:[#allocation2 + $0xe9] sm:$0xff]
        %v1624 = vld [vmem:[#allocation2 + $0xf1] sm:$0xff]
        %v1625 = vld [vmem:[#allocation2 + $0x109] sm:$0xff]
        %v1626 = vld [vmem:[#allocation2 + $0x111] sm:$0xff]
        %v1627 = vld [vmem:[#allocation2 + $0x129] sm:$0xff]
        %v1628 = vld [vmem:[#allocation2 + $0x131] sm:$0xff]
        %v1629 = vld [vmem:[#allocation2 + $0x149] sm:$0xff]
        %v1630 = vld [vmem:[#allocation2 + $0x151] sm:$0xff]
        %v1631 = vld [vmem:[#allocation2 + $0x169] sm:$0xff]
        %v1632 = vld [vmem:[#allocation2 + $0x171] sm:$0xff]
        %v1633 = vld [vmem:[#allocation2 + $0x189] sm:$0xff]
        %v1634 = vld [vmem:[#allocation2 + $0x191] sm:$0xff]
        %v1635 = vld [vmem:[#allocation2 + $0x1a9] sm:$0xff]
        %v1636 = vld [vmem:[#allocation2 + $0x1b1] sm:$0xff]
        %v1637 = vld [vmem:[#allocation2 + $0x1c9] sm:$0xff]
        %v1638 = vld [vmem:[#allocation2 + $0x1d1] sm:$0xff]
        %v1639 = vld [vmem:[#allocation2 + $0x1e9] sm:$0xff]
        %v1640 = vld [vmem:[#allocation2 + $0x1f1] sm:$0xff]
        %v1641 = vpack.c.bf16 %v1610, %v1609
        %v1642 = vpack.c.bf16 %v1612, %v1611
        %v1643 = vpack.c.bf16 %v1614, %v1613
        %v1644 = vpack.c.bf16 %v1616, %v1615
        %v1645 = vpack.c.bf16 %v1618, %v1617
        %v1646 = vpack.c.bf16 %v1620, %v1619
        %v1647 = vpack.c.bf16 %v1622, %v1621
        %v1648 = vpack.c.bf16 %v1624, %v1623
        %v1649 = vpack.c.bf16 %v1626, %v1625
        %v1650 = vpack.c.bf16 %v1628, %v1627
        %v1651 = vpack.c.bf16 %v1630, %v1629
        %v1652 = vpack.c.bf16 %v1632, %v1631
        %v1653 = vpack.c.bf16 %v1634, %v1633
        %v1654 = vpack.c.bf16 %v1636, %v1635
        %v1655 = vpack.c.bf16 %v1638, %v1637
        %v1656 = vpack.c.bf16 %v1640, %v1639
        %s1657 = scalar_lea.vmem [#allocation11], 128
        %v1658 = vld [vmem:[%s1657] sm:$0xf]
        %v1659 = vld [vmem:[%s1657 + $0x4] sm:$0xf]
        %v1660 = vld [vmem:[%s1657 + $0x8] sm:$0xf]
        %v1661 = vld [vmem:[%s1657 + $0xc] sm:$0xf]
        %v1662 = vld [vmem:[%s1657 + $0x10] sm:$0xf]
        %v1663 = vld [vmem:[%s1657 + $0x14] sm:$0xf]
        %v1664 = vld [vmem:[%s1657 + $0x18] sm:$0xf]
        %v1665 = vld [vmem:[%s1657 + $0x1c] sm:$0xf]
        %v1666 = vld [vmem:[%s1657 + $0x20] sm:$0xf]
        %v1667 = vld [vmem:[%s1657 + $0x24] sm:$0xf]
        %v1668 = vld [vmem:[%s1657 + $0x28] sm:$0xf]
        %v1669 = vld [vmem:[%s1657 + $0x2c] sm:$0xf]
        %v1670 = vld [vmem:[%s1657 + $0x30] sm:$0xf]
        %v1671 = vld [vmem:[%s1657 + $0x34] sm:$0xf]
        %v1672 = vld [vmem:[%s1657 + $0x38] sm:$0xf]
        %v1673 = vld [vmem:[%s1657 + $0x3c] sm:$0xf]
        %v1690 = vunpack.c.l.b16 %v1658
        %v1691 = vunpack.c.l.b16 %v1659
        %v1692 = vunpack.c.l.b16 %v1660
        %v1693 = vunpack.c.l.b16 %v1661
        %v1694 = vunpack.c.l.b16 %v1662
        %v1695 = vunpack.c.l.b16 %v1663
        %v1696 = vunpack.c.l.b16 %v1664
        %v1697 = vunpack.c.l.b16 %v1665
        %v1698 = vunpack.c.l.b16 %v1666
        %v1699 = vunpack.c.l.b16 %v1667
        %v1700 = vunpack.c.l.b16 %v1668
        %v1701 = vunpack.c.l.b16 %v1669
        %v1702 = vunpack.c.l.b16 %v1670
        %v1703 = vunpack.c.l.b16 %v1671
        %v1704 = vunpack.c.l.b16 %v1672
        %v1705 = vunpack.c.l.b16 %v1673
        %v1706 = vpack.c.b16 %v1691, %v1690
        %v1707 = vpack.c.b16 %v1693, %v1692
        %v1708 = vpack.c.b16 %v1695, %v1694
        %v1709 = vpack.c.b16 %v1697, %v1696
        %v1710 = vpack.c.b16 %v1699, %v1698
        %v1711 = vpack.c.b16 %v1701, %v1700
        %v1712 = vpack.c.b16 %v1703, %v1702
        %v1713 = vpack.c.b16 %v1705, %v1704
        %1722 = vmatpush.bf16.msra.mxu0 %v1713
        %1723 = vmatpush.bf16.msra.mxu0 %v1712
        %1724 = vmatpush.bf16.msra.mxu0 %v1711
        %1725 = vmatpush.bf16.msra.mxu0 %v1710
        %1726 = vmatpush.bf16.msra.mxu0 %v1709
        %1727 = vmatpush.bf16.msra.mxu0 %v1708
        %1728 = vmatpush.bf16.msra.mxu0 %v1707
        %1729 = vmatpush.bf16.msra.mxu0 %v1706
        %1730 = vmatmul.bf16.gmra.mxu0 %v1641
        %v1731 = vpop.f32.mrf.mxu0
        %v1732 = vadd.f32 0.0, %v1731
        %v1733 = vpop.f32.mrf.mxu0
        %v1734 = vadd.f32 0.0, %v1733
        %1735 = vmatmul.bf16.gmra.mxu0 %v1642
        %v1736 = vpop.f32.mrf.mxu0
        %v1737 = vadd.f32 0.0, %v1736
        %v1738 = vpop.f32.mrf.mxu0
        %v1739 = vadd.f32 0.0, %v1738
        %1740 = vmatmul.bf16.gmra.mxu0 %v1643
        %v1741 = vpop.f32.mrf.mxu0
        %v1742 = vadd.f32 0.0, %v1741
        %v1743 = vpop.f32.mrf.mxu0
        %v1744 = vadd.f32 0.0, %v1743
        %1745 = vmatmul.bf16.gmra.mxu0 %v1644
        %v1746 = vpop.f32.mrf.mxu0
        %v1747 = vadd.f32 0.0, %v1746
        %v1748 = vpop.f32.mrf.mxu0
        %v1749 = vadd.f32 0.0, %v1748
        %1750 = vmatmul.bf16.gmra.mxu0 %v1645
        %v1751 = vpop.f32.mrf.mxu0
        %v1752 = vadd.f32 0.0, %v1751
        %v1753 = vpop.f32.mrf.mxu0
        %v1754 = vadd.f32 0.0, %v1753
        %1755 = vmatmul.bf16.gmra.mxu0 %v1646
        %v1756 = vpop.f32.mrf.mxu0
        %v1757 = vadd.f32 0.0, %v1756
        %v1758 = vpop.f32.mrf.mxu0
        %v1759 = vadd.f32 0.0, %v1758
        %1760 = vmatmul.bf16.gmra.mxu0 %v1647
        %v1761 = vpop.f32.mrf.mxu0
        %v1762 = vadd.f32 0.0, %v1761
        %v1763 = vpop.f32.mrf.mxu0
        %v1764 = vadd.f32 0.0, %v1763
        %1765 = vmatmul.bf16.gmra.mxu0 %v1648
        %v1766 = vpop.f32.mrf.mxu0
        %v1767 = vadd.f32 0.0, %v1766
        %v1768 = vpop.f32.mrf.mxu0
        %v1769 = vadd.f32 0.0, %v1768
        %1770 = vmatmul.bf16.gmra.mxu0 %v1649
        %v1771 = vpop.f32.mrf.mxu0
        %v1772 = vadd.f32 0.0, %v1771
        %v1773 = vpop.f32.mrf.mxu0
        %v1774 = vadd.f32 0.0, %v1773
        %1775 = vmatmul.bf16.gmra.mxu0 %v1650
        %v1776 = vpop.f32.mrf.mxu0
        %v1777 = vadd.f32 0.0, %v1776
        %v1778 = vpop.f32.mrf.mxu0
        %v1779 = vadd.f32 0.0, %v1778
        %1780 = vmatmul.bf16.gmra.mxu0 %v1651
        %v1781 = vpop.f32.mrf.mxu0
        %v1782 = vadd.f32 0.0, %v1781
        %v1783 = vpop.f32.mrf.mxu0
        %v1784 = vadd.f32 0.0, %v1783
        %1785 = vmatmul.bf16.gmra.mxu0 %v1652
        %v1786 = vpop.f32.mrf.mxu0
        %v1787 = vadd.f32 0.0, %v1786
        %v1788 = vpop.f32.mrf.mxu0
        %v1789 = vadd.f32 0.0, %v1788
        %1790 = vmatmul.bf16.gmra.mxu0 %v1653
        %v1791 = vpop.f32.mrf.mxu0
        %v1792 = vadd.f32 0.0, %v1791
        %v1793 = vpop.f32.mrf.mxu0
        %v1794 = vadd.f32 0.0, %v1793
        %1795 = vmatmul.bf16.gmra.mxu0 %v1654
        %v1796 = vpop.f32.mrf.mxu0
        %v1797 = vadd.f32 0.0, %v1796
        %v1798 = vpop.f32.mrf.mxu0
        %v1799 = vadd.f32 0.0, %v1798
        %1800 = vmatmul.bf16.gmra.mxu0 %v1655
        %v1801 = vpop.f32.mrf.mxu0
        %v1802 = vadd.f32 0.0, %v1801
        %v1803 = vpop.f32.mrf.mxu0
        %v1804 = vadd.f32 0.0, %v1803
        %1805 = vmatmul.bf16.gmra.mxu0 %v1656
        %v1806 = vpop.f32.mrf.mxu0
        %v1807 = vadd.f32 0.0, %v1806
        %v1808 = vpop.f32.mrf.mxu0
        %v1809 = vadd.f32 0.0, %v1808
        %1810 = vdwg.mxu0
        %v1811 = vadd.f32 %v1577, %v1732
        %v1812 = vadd.f32 %v1578, %v1734
        %v1813 = vadd.f32 %v1579, %v1737
        %v1814 = vadd.f32 %v1580, %v1739
        %v1815 = vadd.f32 %v1581, %v1742
        %v1816 = vadd.f32 %v1582, %v1744
        %v1817 = vadd.f32 %v1583, %v1747
        %v1818 = vadd.f32 %v1584, %v1749
        %v1819 = vadd.f32 %v1585, %v1752
        %v1820 = vadd.f32 %v1586, %v1754
        %v1821 = vadd.f32 %v1587, %v1757
        %v1822 = vadd.f32 %v1588, %v1759
        %v1823 = vadd.f32 %v1589, %v1762
        %v1824 = vadd.f32 %v1590, %v1764
        %v1825 = vadd.f32 %v1591, %v1767
        %v1826 = vadd.f32 %v1592, %v1769
        %v1827 = vadd.f32 %v1593, %v1772
        %v1828 = vadd.f32 %v1594, %v1774
        %v1829 = vadd.f32 %v1595, %v1777
        %v1830 = vadd.f32 %v1596, %v1779
        %v1831 = vadd.f32 %v1597, %v1782
        %v1832 = vadd.f32 %v1598, %v1784
        %v1833 = vadd.f32 %v1599, %v1787
        %v1834 = vadd.f32 %v1600, %v1789
        %v1835 = vadd.f32 %v1601, %v1792
        %v1836 = vadd.f32 %v1602, %v1794
        %v1837 = vadd.f32 %v1603, %v1797
        %v1838 = vadd.f32 %v1604, %v1799
        %v1839 = vadd.f32 %v1605, %v1802
        %v1840 = vadd.f32 %v1606, %v1804
        %v1841 = vadd.f32 %v1607, %v1807
        %v1842 = vadd.f32 %v1608, %v1809
        %v1843 = vld [vmem:[%s920 + $0x7] sm:$0xff]
        %v1844 = vld [vmem:[%s920 + $0xf] sm:$0xff]
        %v1845 = vld [vmem:[%s920 + $0x27] sm:$0xff]
        %v1846 = vld [vmem:[%s920 + $0x2f] sm:$0xff]
        %v1847 = vld [vmem:[%s920 + $0x47] sm:$0xff]
        %v1848 = vld [vmem:[%s920 + $0x4f] sm:$0xff]
        %v1849 = vld [vmem:[%s920 + $0x67] sm:$0xff]
        %v1850 = vld [vmem:[%s920 + $0x6f] sm:$0xff]
        %v1851 = vld [vmem:[%s920 + $0x87] sm:$0xff]
        %v1852 = vld [vmem:[%s920 + $0x8f] sm:$0xff]
        %v1853 = vld [vmem:[%s920 + $0xa7] sm:$0xff]
        %v1854 = vld [vmem:[%s920 + $0xaf] sm:$0xff]
        %v1855 = vld [vmem:[%s920 + $0xc7] sm:$0xff]
        %v1856 = vld [vmem:[%s920 + $0xcf] sm:$0xff]
        %v1857 = vld [vmem:[%s920 + $0xe7] sm:$0xff]
        %v1858 = vld [vmem:[%s920 + $0xef] sm:$0xff]
        %v1859 = vld [vmem:[%s920 + $0x107] sm:$0xff]
        %v1860 = vld [vmem:[%s920 + $0x10f] sm:$0xff]
        %v1861 = vld [vmem:[%s920 + $0x127] sm:$0xff]
        %v1862 = vld [vmem:[%s920 + $0x12f] sm:$0xff]
        %v1863 = vld [vmem:[%s920 + $0x147] sm:$0xff]
        %v1864 = vld [vmem:[%s920 + $0x14f] sm:$0xff]
        %v1865 = vld [vmem:[%s920 + $0x167] sm:$0xff]
        %v1866 = vld [vmem:[%s920 + $0x16f] sm:$0xff]
        %v1867 = vld [vmem:[%s920 + $0x187] sm:$0xff]
        %v1868 = vld [vmem:[%s920 + $0x18f] sm:$0xff]
        %v1869 = vld [vmem:[%s920 + $0x1a7] sm:$0xff]
        %v1870 = vld [vmem:[%s920 + $0x1af] sm:$0xff]
        %v1871 = vld [vmem:[%s920 + $0x1c7] sm:$0xff]
        %v1872 = vld [vmem:[%s920 + $0x1cf] sm:$0xff]
        %v1873 = vld [vmem:[%s920 + $0x1e7] sm:$0xff]
        %v1874 = vld [vmem:[%s920 + $0x1ef] sm:$0xff]
        %v1875 = vpack.c.bf16 %v1844, %v1843
        %v1876 = vpack.c.bf16 %v1846, %v1845
        %v1877 = vpack.c.bf16 %v1848, %v1847
        %v1878 = vpack.c.bf16 %v1850, %v1849
        %v1879 = vpack.c.bf16 %v1852, %v1851
        %v1880 = vpack.c.bf16 %v1854, %v1853
        %v1881 = vpack.c.bf16 %v1856, %v1855
        %v1882 = vpack.c.bf16 %v1858, %v1857
        %v1883 = vpack.c.bf16 %v1860, %v1859
        %v1884 = vpack.c.bf16 %v1862, %v1861
        %v1885 = vpack.c.bf16 %v1864, %v1863
        %v1886 = vpack.c.bf16 %v1866, %v1865
        %v1887 = vpack.c.bf16 %v1868, %v1867
        %v1888 = vpack.c.bf16 %v1870, %v1869
        %v1889 = vpack.c.bf16 %v1872, %v1871
        %v1890 = vpack.c.bf16 %v1874, %v1873
        %s1891 = scalar_lea.vmem [#allocation11], 192
        %v1892 = vld [vmem:[%s1891] sm:$0xf]
        %v1893 = vld [vmem:[%s1891 + $0x4] sm:$0xf]
        %v1894 = vld [vmem:[%s1891 + $0x8] sm:$0xf]
        %v1895 = vld [vmem:[%s1891 + $0xc] sm:$0xf]
        %v1896 = vld [vmem:[%s1891 + $0x10] sm:$0xf]
        %v1897 = vld [vmem:[%s1891 + $0x14] sm:$0xf]
        %v1898 = vld [vmem:[%s1891 + $0x18] sm:$0xf]
        %v1899 = vld [vmem:[%s1891 + $0x1c] sm:$0xf]
        %v1900 = vld [vmem:[%s1891 + $0x20] sm:$0xf]
        %v1901 = vld [vmem:[%s1891 + $0x24] sm:$0xf]
        %v1902 = vld [vmem:[%s1891 + $0x28] sm:$0xf]
        %v1903 = vld [vmem:[%s1891 + $0x2c] sm:$0xf]
        %v1904 = vld [vmem:[%s1891 + $0x30] sm:$0xf]
        %v1905 = vld [vmem:[%s1891 + $0x34] sm:$0xf]
        %v1906 = vld [vmem:[%s1891 + $0x38] sm:$0xf]
        %v1907 = vld [vmem:[%s1891 + $0x3c] sm:$0xf]
        %v1924 = vunpack.c.l.b16 %v1892
        %v1925 = vunpack.c.l.b16 %v1893
        %v1926 = vunpack.c.l.b16 %v1894
        %v1927 = vunpack.c.l.b16 %v1895
        %v1928 = vunpack.c.l.b16 %v1896
        %v1929 = vunpack.c.l.b16 %v1897
        %v1930 = vunpack.c.l.b16 %v1898
        %v1931 = vunpack.c.l.b16 %v1899
        %v1932 = vunpack.c.l.b16 %v1900
        %v1933 = vunpack.c.l.b16 %v1901
        %v1934 = vunpack.c.l.b16 %v1902
        %v1935 = vunpack.c.l.b16 %v1903
        %v1936 = vunpack.c.l.b16 %v1904
        %v1937 = vunpack.c.l.b16 %v1905
        %v1938 = vunpack.c.l.b16 %v1906
        %v1939 = vunpack.c.l.b16 %v1907
        %v1940 = vpack.c.b16 %v1925, %v1924
        %v1941 = vpack.c.b16 %v1927, %v1926
        %v1942 = vpack.c.b16 %v1929, %v1928
        %v1943 = vpack.c.b16 %v1931, %v1930
        %v1944 = vpack.c.b16 %v1933, %v1932
        %v1945 = vpack.c.b16 %v1935, %v1934
        %v1946 = vpack.c.b16 %v1937, %v1936
        %v1947 = vpack.c.b16 %v1939, %v1938
        %1956 = vmatpush.bf16.msra.mxu0 %v1947
        %1957 = vmatpush.bf16.msra.mxu0 %v1946
        %1958 = vmatpush.bf16.msra.mxu0 %v1945
        %1959 = vmatpush.bf16.msra.mxu0 %v1944
        %1960 = vmatpush.bf16.msra.mxu0 %v1943
        %1961 = vmatpush.bf16.msra.mxu0 %v1942
        %1962 = vmatpush.bf16.msra.mxu0 %v1941
        %1963 = vmatpush.bf16.msra.mxu0 %v1940
        %1964 = vmatmul.bf16.gmra.mxu0 %v1875
        %v1965 = vpop.f32.mrf.mxu0
        %v1966 = vadd.f32 0.0, %v1965
        %v1967 = vpop.f32.mrf.mxu0
        %v1968 = vadd.f32 0.0, %v1967
        %1969 = vmatmul.bf16.gmra.mxu0 %v1876
        %v1970 = vpop.f32.mrf.mxu0
        %v1971 = vadd.f32 0.0, %v1970
        %v1972 = vpop.f32.mrf.mxu0
        %v1973 = vadd.f32 0.0, %v1972
        %1974 = vmatmul.bf16.gmra.mxu0 %v1877
        %v1975 = vpop.f32.mrf.mxu0
        %v1976 = vadd.f32 0.0, %v1975
        %v1977 = vpop.f32.mrf.mxu0
        %v1978 = vadd.f32 0.0, %v1977
        %1979 = vmatmul.bf16.gmra.mxu0 %v1878
        %v1980 = vpop.f32.mrf.mxu0
        %v1981 = vadd.f32 0.0, %v1980
        %v1982 = vpop.f32.mrf.mxu0
        %v1983 = vadd.f32 0.0, %v1982
        %1984 = vmatmul.bf16.gmra.mxu0 %v1879
        %v1985 = vpop.f32.mrf.mxu0
        %v1986 = vadd.f32 0.0, %v1985
        %v1987 = vpop.f32.mrf.mxu0
        %v1988 = vadd.f32 0.0, %v1987
        %1989 = vmatmul.bf16.gmra.mxu0 %v1880
        %v1990 = vpop.f32.mrf.mxu0
        %v1991 = vadd.f32 0.0, %v1990
        %v1992 = vpop.f32.mrf.mxu0
        %v1993 = vadd.f32 0.0, %v1992
        %1994 = vmatmul.bf16.gmra.mxu0 %v1881
        %v1995 = vpop.f32.mrf.mxu0
        %v1996 = vadd.f32 0.0, %v1995
        %v1997 = vpop.f32.mrf.mxu0
        %v1998 = vadd.f32 0.0, %v1997
        %1999 = vmatmul.bf16.gmra.mxu0 %v1882
        %v2000 = vpop.f32.mrf.mxu0
        %v2001 = vadd.f32 0.0, %v2000
        %v2002 = vpop.f32.mrf.mxu0
        %v2003 = vadd.f32 0.0, %v2002
        %2004 = vmatmul.bf16.gmra.mxu0 %v1883
        %v2005 = vpop.f32.mrf.mxu0
        %v2006 = vadd.f32 0.0, %v2005
        %v2007 = vpop.f32.mrf.mxu0
        %v2008 = vadd.f32 0.0, %v2007
        %2009 = vmatmul.bf16.gmra.mxu0 %v1884
        %v2010 = vpop.f32.mrf.mxu0
        %v2011 = vadd.f32 0.0, %v2010
        %v2012 = vpop.f32.mrf.mxu0
        %v2013 = vadd.f32 0.0, %v2012
        %2014 = vmatmul.bf16.gmra.mxu0 %v1885
        %v2015 = vpop.f32.mrf.mxu0
        %v2016 = vadd.f32 0.0, %v2015
        %v2017 = vpop.f32.mrf.mxu0
        %v2018 = vadd.f32 0.0, %v2017
        %2019 = vmatmul.bf16.gmra.mxu0 %v1886
        %v2020 = vpop.f32.mrf.mxu0
        %v2021 = vadd.f32 0.0, %v2020
        %v2022 = vpop.f32.mrf.mxu0
        %v2023 = vadd.f32 0.0, %v2022
        %2024 = vmatmul.bf16.gmra.mxu0 %v1887
        %v2025 = vpop.f32.mrf.mxu0
        %v2026 = vadd.f32 0.0, %v2025
        %v2027 = vpop.f32.mrf.mxu0
        %v2028 = vadd.f32 0.0, %v2027
        %2029 = vmatmul.bf16.gmra.mxu0 %v1888
        %v2030 = vpop.f32.mrf.mxu0
        %v2031 = vadd.f32 0.0, %v2030
        %v2032 = vpop.f32.mrf.mxu0
        %v2033 = vadd.f32 0.0, %v2032
        %2034 = vmatmul.bf16.gmra.mxu0 %v1889
        %v2035 = vpop.f32.mrf.mxu0
        %v2036 = vadd.f32 0.0, %v2035
        %v2037 = vpop.f32.mrf.mxu0
        %v2038 = vadd.f32 0.0, %v2037
        %2039 = vmatmul.bf16.gmra.mxu0 %v1890
        %v2040 = vpop.f32.mrf.mxu0
        %v2041 = vadd.f32 0.0, %v2040
        %v2042 = vpop.f32.mrf.mxu0
        %v2043 = vadd.f32 0.0, %v2042
        %2044 = vdwg.mxu0
        %v2045 = vadd.f32 %v1811, %v1966
        %v2046 = vadd.f32 %v1812, %v1968
        %v2047 = vadd.f32 %v1813, %v1971
        %v2048 = vadd.f32 %v1814, %v1973
        %v2049 = vadd.f32 %v1815, %v1976
        %v2050 = vadd.f32 %v1816, %v1978
        %v2051 = vadd.f32 %v1817, %v1981
        %v2052 = vadd.f32 %v1818, %v1983
        %v2053 = vadd.f32 %v1819, %v1986
        %v2054 = vadd.f32 %v1820, %v1988
        %v2055 = vadd.f32 %v1821, %v1991
        %v2056 = vadd.f32 %v1822, %v1993
        %v2057 = vadd.f32 %v1823, %v1996
        %v2058 = vadd.f32 %v1824, %v1998
        %v2059 = vadd.f32 %v1825, %v2001
        %v2060 = vadd.f32 %v1826, %v2003
        %v2061 = vadd.f32 %v1827, %v2006
        %v2062 = vadd.f32 %v1828, %v2008
        %v2063 = vadd.f32 %v1829, %v2011
        %v2064 = vadd.f32 %v1830, %v2013
        %v2065 = vadd.f32 %v1831, %v2016
        %v2066 = vadd.f32 %v1832, %v2018
        %v2067 = vadd.f32 %v1833, %v2021
        %v2068 = vadd.f32 %v1834, %v2023
        %v2069 = vadd.f32 %v1835, %v2026
        %v2070 = vadd.f32 %v1836, %v2028
        %v2071 = vadd.f32 %v1837, %v2031
        %v2072 = vadd.f32 %v1838, %v2033
        %v2073 = vadd.f32 %v1839, %v2036
        %v2074 = vadd.f32 %v1840, %v2038
        %v2075 = vadd.f32 %v1841, %v2041
        %v2076 = vadd.f32 %v1842, %v2043
        %v2077 = vld [vmem:[%s920 + $0x8] sm:$0xff]
        %v2078 = vld [vmem:[%s920 + $0x10] sm:$0xff]
        %v2079 = vld [vmem:[%s920 + $0x28] sm:$0xff]
        %v2080 = vld [vmem:[%s920 + $0x30] sm:$0xff]
        %v2081 = vld [vmem:[%s920 + $0x48] sm:$0xff]
        %v2082 = vld [vmem:[%s920 + $0x50] sm:$0xff]
        %v2083 = vld [vmem:[%s920 + $0x68] sm:$0xff]
        %v2084 = vld [vmem:[%s920 + $0x70] sm:$0xff]
        %v2085 = vld [vmem:[%s920 + $0x88] sm:$0xff]
        %v2086 = vld [vmem:[%s920 + $0x90] sm:$0xff]
        %v2087 = vld [vmem:[%s920 + $0xa8] sm:$0xff]
        %v2088 = vld [vmem:[%s920 + $0xb0] sm:$0xff]
        %v2089 = vld [vmem:[%s920 + $0xc8] sm:$0xff]
        %v2090 = vld [vmem:[%s920 + $0xd0] sm:$0xff]
        %v2091 = vld [vmem:[%s920 + $0xe8] sm:$0xff]
        %v2092 = vld [vmem:[%s920 + $0xf0] sm:$0xff]
        %v2093 = vld [vmem:[%s920 + $0x108] sm:$0xff]
        %v2094 = vld [vmem:[%s920 + $0x110] sm:$0xff]
        %v2095 = vld [vmem:[%s920 + $0x128] sm:$0xff]
        %v2096 = vld [vmem:[%s920 + $0x130] sm:$0xff]
        %v2097 = vld [vmem:[%s920 + $0x148] sm:$0xff]
        %v2098 = vld [vmem:[%s920 + $0x150] sm:$0xff]
        %v2099 = vld [vmem:[%s920 + $0x168] sm:$0xff]
        %v2100 = vld [vmem:[%s920 + $0x170] sm:$0xff]
        %v2101 = vld [vmem:[%s920 + $0x188] sm:$0xff]
        %v2102 = vld [vmem:[%s920 + $0x190] sm:$0xff]
        %v2103 = vld [vmem:[%s920 + $0x1a8] sm:$0xff]
        %v2104 = vld [vmem:[%s920 + $0x1b0] sm:$0xff]
        %v2105 = vld [vmem:[%s920 + $0x1c8] sm:$0xff]
        %v2106 = vld [vmem:[%s920 + $0x1d0] sm:$0xff]
        %v2107 = vld [vmem:[%s920 + $0x1e8] sm:$0xff]
        %v2108 = vld [vmem:[%s920 + $0x1f0] sm:$0xff]
        %v2109 = vpack.c.bf16 %v2078, %v2077
        %v2110 = vpack.c.bf16 %v2080, %v2079
        %v2111 = vpack.c.bf16 %v2082, %v2081
        %v2112 = vpack.c.bf16 %v2084, %v2083
        %v2113 = vpack.c.bf16 %v2086, %v2085
        %v2114 = vpack.c.bf16 %v2088, %v2087
        %v2115 = vpack.c.bf16 %v2090, %v2089
        %v2116 = vpack.c.bf16 %v2092, %v2091
        %v2117 = vpack.c.bf16 %v2094, %v2093
        %v2118 = vpack.c.bf16 %v2096, %v2095
        %v2119 = vpack.c.bf16 %v2098, %v2097
        %v2120 = vpack.c.bf16 %v2100, %v2099
        %v2121 = vpack.c.bf16 %v2102, %v2101
        %v2122 = vpack.c.bf16 %v2104, %v2103
        %v2123 = vpack.c.bf16 %v2106, %v2105
        %v2124 = vpack.c.bf16 %v2108, %v2107
        %s2125 = scalar_lea.vmem [#allocation11], 256
        %v2126 = vld [vmem:[%s2125] sm:$0xf]
        %v2127 = vld [vmem:[%s2125 + $0x4] sm:$0xf]
        %v2128 = vld [vmem:[%s2125 + $0x8] sm:$0xf]
        %v2129 = vld [vmem:[%s2125 + $0xc] sm:$0xf]
        %v2130 = vld [vmem:[%s2125 + $0x10] sm:$0xf]
        %v2131 = vld [vmem:[%s2125 + $0x14] sm:$0xf]
        %v2132 = vld [vmem:[%s2125 + $0x18] sm:$0xf]
        %v2133 = vld [vmem:[%s2125 + $0x1c] sm:$0xf]
        %v2134 = vld [vmem:[%s2125 + $0x20] sm:$0xf]
        %v2135 = vld [vmem:[%s2125 + $0x24] sm:$0xf]
        %v2136 = vld [vmem:[%s2125 + $0x28] sm:$0xf]
        %v2137 = vld [vmem:[%s2125 + $0x2c] sm:$0xf]
        %v2138 = vld [vmem:[%s2125 + $0x30] sm:$0xf]
        %v2139 = vld [vmem:[%s2125 + $0x34] sm:$0xf]
        %v2140 = vld [vmem:[%s2125 + $0x38] sm:$0xf]
        %v2141 = vld [vmem:[%s2125 + $0x3c] sm:$0xf]
        %v2158 = vunpack.c.l.b16 %v2126
        %v2159 = vunpack.c.l.b16 %v2127
        %v2160 = vunpack.c.l.b16 %v2128
        %v2161 = vunpack.c.l.b16 %v2129
        %v2162 = vunpack.c.l.b16 %v2130
        %v2163 = vunpack.c.l.b16 %v2131
        %v2164 = vunpack.c.l.b16 %v2132
        %v2165 = vunpack.c.l.b16 %v2133
        %v2166 = vunpack.c.l.b16 %v2134
        %v2167 = vunpack.c.l.b16 %v2135
        %v2168 = vunpack.c.l.b16 %v2136
        %v2169 = vunpack.c.l.b16 %v2137
        %v2170 = vunpack.c.l.b16 %v2138
        %v2171 = vunpack.c.l.b16 %v2139
        %v2172 = vunpack.c.l.b16 %v2140
        %v2173 = vunpack.c.l.b16 %v2141
        %v2174 = vpack.c.b16 %v2159, %v2158
        %v2175 = vpack.c.b16 %v2161, %v2160
        %v2176 = vpack.c.b16 %v2163, %v2162
        %v2177 = vpack.c.b16 %v2165, %v2164
        %v2178 = vpack.c.b16 %v2167, %v2166
        %v2179 = vpack.c.b16 %v2169, %v2168
        %v2180 = vpack.c.b16 %v2171, %v2170
        %v2181 = vpack.c.b16 %v2173, %v2172
        %2190 = vmatpush.bf16.msra.mxu0 %v2181
        %2191 = vmatpush.bf16.msra.mxu0 %v2180
        %2192 = vmatpush.bf16.msra.mxu0 %v2179
        %2193 = vmatpush.bf16.msra.mxu0 %v2178
        %2194 = vmatpush.bf16.msra.mxu0 %v2177
        %2195 = vmatpush.bf16.msra.mxu0 %v2176
        %2196 = vmatpush.bf16.msra.mxu0 %v2175
        %2197 = vmatpush.bf16.msra.mxu0 %v2174
        %2198 = vmatmul.bf16.gmra.mxu0 %v2109
        %v2199 = vpop.f32.mrf.mxu0
        %v2200 = vadd.f32 0.0, %v2199
        %v2201 = vpop.f32.mrf.mxu0
        %v2202 = vadd.f32 0.0, %v2201
        %2203 = vmatmul.bf16.gmra.mxu0 %v2110
        %v2204 = vpop.f32.mrf.mxu0
        %v2205 = vadd.f32 0.0, %v2204
        %v2206 = vpop.f32.mrf.mxu0
        %v2207 = vadd.f32 0.0, %v2206
        %2208 = vmatmul.bf16.gmra.mxu0 %v2111
        %v2209 = vpop.f32.mrf.mxu0
        %v2210 = vadd.f32 0.0, %v2209
        %v2211 = vpop.f32.mrf.mxu0
        %v2212 = vadd.f32 0.0, %v2211
        %2213 = vmatmul.bf16.gmra.mxu0 %v2112
        %v2214 = vpop.f32.mrf.mxu0
        %v2215 = vadd.f32 0.0, %v2214
        %v2216 = vpop.f32.mrf.mxu0
        %v2217 = vadd.f32 0.0, %v2216
        %2218 = vmatmul.bf16.gmra.mxu0 %v2113
        %v2219 = vpop.f32.mrf.mxu0
        %v2220 = vadd.f32 0.0, %v2219
        %v2221 = vpop.f32.mrf.mxu0
        %v2222 = vadd.f32 0.0, %v2221
        %2223 = vmatmul.bf16.gmra.mxu0 %v2114
        %v2224 = vpop.f32.mrf.mxu0
        %v2225 = vadd.f32 0.0, %v2224
        %v2226 = vpop.f32.mrf.mxu0
        %v2227 = vadd.f32 0.0, %v2226
        %2228 = vmatmul.bf16.gmra.mxu0 %v2115
        %v2229 = vpop.f32.mrf.mxu0
        %v2230 = vadd.f32 0.0, %v2229
        %v2231 = vpop.f32.mrf.mxu0
        %v2232 = vadd.f32 0.0, %v2231
        %2233 = vmatmul.bf16.gmra.mxu0 %v2116
        %v2234 = vpop.f32.mrf.mxu0
        %v2235 = vadd.f32 0.0, %v2234
        %v2236 = vpop.f32.mrf.mxu0
        %v2237 = vadd.f32 0.0, %v2236
        %2238 = vmatmul.bf16.gmra.mxu0 %v2117
        %v2239 = vpop.f32.mrf.mxu0
        %v2240 = vadd.f32 0.0, %v2239
        %v2241 = vpop.f32.mrf.mxu0
        %v2242 = vadd.f32 0.0, %v2241
        %2243 = vmatmul.bf16.gmra.mxu0 %v2118
        %v2244 = vpop.f32.mrf.mxu0
        %v2245 = vadd.f32 0.0, %v2244
        %v2246 = vpop.f32.mrf.mxu0
        %v2247 = vadd.f32 0.0, %v2246
        %2248 = vmatmul.bf16.gmra.mxu0 %v2119
        %v2249 = vpop.f32.mrf.mxu0
        %v2250 = vadd.f32 0.0, %v2249
        %v2251 = vpop.f32.mrf.mxu0
        %v2252 = vadd.f32 0.0, %v2251
        %2253 = vmatmul.bf16.gmra.mxu0 %v2120
        %v2254 = vpop.f32.mrf.mxu0
        %v2255 = vadd.f32 0.0, %v2254
        %v2256 = vpop.f32.mrf.mxu0
        %v2257 = vadd.f32 0.0, %v2256
        %2258 = vmatmul.bf16.gmra.mxu0 %v2121
        %v2259 = vpop.f32.mrf.mxu0
        %v2260 = vadd.f32 0.0, %v2259
        %v2261 = vpop.f32.mrf.mxu0
        %v2262 = vadd.f32 0.0, %v2261
        %2263 = vmatmul.bf16.gmra.mxu0 %v2122
        %v2264 = vpop.f32.mrf.mxu0
        %v2265 = vadd.f32 0.0, %v2264
        %v2266 = vpop.f32.mrf.mxu0
        %v2267 = vadd.f32 0.0, %v2266
        %2268 = vmatmul.bf16.gmra.mxu0 %v2123
        %v2269 = vpop.f32.mrf.mxu0
        %v2270 = vadd.f32 0.0, %v2269
        %v2271 = vpop.f32.mrf.mxu0
        %v2272 = vadd.f32 0.0, %v2271
        %2273 = vmatmul.bf16.gmra.mxu0 %v2124
        %v2274 = vpop.f32.mrf.mxu0
        %v2275 = vadd.f32 0.0, %v2274
        %v2276 = vpop.f32.mrf.mxu0
        %v2277 = vadd.f32 0.0, %v2276
        %2278 = vdwg.mxu0
        %v2279 = vadd.f32 %v2045, %v2200
        %v2280 = vadd.f32 %v2046, %v2202
        %v2281 = vadd.f32 %v2047, %v2205
        %v2282 = vadd.f32 %v2048, %v2207
        %v2283 = vadd.f32 %v2049, %v2210
        %v2284 = vadd.f32 %v2050, %v2212
        %v2285 = vadd.f32 %v2051, %v2215
        %v2286 = vadd.f32 %v2052, %v2217
        %v2287 = vadd.f32 %v2053, %v2220
        %v2288 = vadd.f32 %v2054, %v2222
        %v2289 = vadd.f32 %v2055, %v2225
        %v2290 = vadd.f32 %v2056, %v2227
        %v2291 = vadd.f32 %v2057, %v2230
        %v2292 = vadd.f32 %v2058, %v2232
        %v2293 = vadd.f32 %v2059, %v2235
        %v2294 = vadd.f32 %v2060, %v2237
        %v2295 = vadd.f32 %v2061, %v2240
        %v2296 = vadd.f32 %v2062, %v2242
        %v2297 = vadd.f32 %v2063, %v2245
        %v2298 = vadd.f32 %v2064, %v2247
        %v2299 = vadd.f32 %v2065, %v2250
        %v2300 = vadd.f32 %v2066, %v2252
        %v2301 = vadd.f32 %v2067, %v2255
        %v2302 = vadd.f32 %v2068, %v2257
        %v2303 = vadd.f32 %v2069, %v2260
        %v2304 = vadd.f32 %v2070, %v2262
        %v2305 = vadd.f32 %v2071, %v2265
        %v2306 = vadd.f32 %v2072, %v2267
        %v2307 = vadd.f32 %v2073, %v2270
        %v2308 = vadd.f32 %v2074, %v2272
        %v2309 = vadd.f32 %v2075, %v2275
        %v2310 = vadd.f32 %v2076, %v2277
        %v2311 = vld [vmem:[%s920 + $0x9] sm:$0xff]
        %v2312 = vld [vmem:[%s920 + $0x11] sm:$0xff]
        %v2313 = vld [vmem:[%s920 + $0x29] sm:$0xff]
        %v2314 = vld [vmem:[%s920 + $0x31] sm:$0xff]
        %v2315 = vld [vmem:[%s920 + $0x49] sm:$0xff]
        %v2316 = vld [vmem:[%s920 + $0x51] sm:$0xff]
        %v2317 = vld [vmem:[%s920 + $0x69] sm:$0xff]
        %v2318 = vld [vmem:[%s920 + $0x71] sm:$0xff]
        %v2319 = vld [vmem:[%s920 + $0x89] sm:$0xff]
        %v2320 = vld [vmem:[%s920 + $0x91] sm:$0xff]
        %v2321 = vld [vmem:[%s920 + $0xa9] sm:$0xff]
        %v2322 = vld [vmem:[%s920 + $0xb1] sm:$0xff]
        %v2323 = vld [vmem:[%s920 + $0xc9] sm:$0xff]
        %v2324 = vld [vmem:[%s920 + $0xd1] sm:$0xff]
        %v2325 = vld [vmem:[%s920 + $0xe9] sm:$0xff]
        %v2326 = vld [vmem:[%s920 + $0xf1] sm:$0xff]
        %v2327 = vld [vmem:[%s920 + $0x109] sm:$0xff]
        %v2328 = vld [vmem:[%s920 + $0x111] sm:$0xff]
        %v2329 = vld [vmem:[%s920 + $0x129] sm:$0xff]
        %v2330 = vld [vmem:[%s920 + $0x131] sm:$0xff]
        %v2331 = vld [vmem:[%s920 + $0x149] sm:$0xff]
        %v2332 = vld [vmem:[%s920 + $0x151] sm:$0xff]
        %v2333 = vld [vmem:[%s920 + $0x169] sm:$0xff]
        %v2334 = vld [vmem:[%s920 + $0x171] sm:$0xff]
        %v2335 = vld [vmem:[%s920 + $0x189] sm:$0xff]
        %v2336 = vld [vmem:[%s920 + $0x191] sm:$0xff]
        %v2337 = vld [vmem:[%s920 + $0x1a9] sm:$0xff]
        %v2338 = vld [vmem:[%s920 + $0x1b1] sm:$0xff]
        %v2339 = vld [vmem:[%s920 + $0x1c9] sm:$0xff]
        %v2340 = vld [vmem:[%s920 + $0x1d1] sm:$0xff]
        %v2341 = vld [vmem:[%s920 + $0x1e9] sm:$0xff]
        %v2342 = vld [vmem:[%s920 + $0x1f1] sm:$0xff]
        %v2343 = vpack.c.bf16 %v2312, %v2311
        %v2344 = vpack.c.bf16 %v2314, %v2313
        %v2345 = vpack.c.bf16 %v2316, %v2315
        %v2346 = vpack.c.bf16 %v2318, %v2317
        %v2347 = vpack.c.bf16 %v2320, %v2319
        %v2348 = vpack.c.bf16 %v2322, %v2321
        %v2349 = vpack.c.bf16 %v2324, %v2323
        %v2350 = vpack.c.bf16 %v2326, %v2325
        %v2351 = vpack.c.bf16 %v2328, %v2327
        %v2352 = vpack.c.bf16 %v2330, %v2329
        %v2353 = vpack.c.bf16 %v2332, %v2331
        %v2354 = vpack.c.bf16 %v2334, %v2333
        %v2355 = vpack.c.bf16 %v2336, %v2335
        %v2356 = vpack.c.bf16 %v2338, %v2337
        %v2357 = vpack.c.bf16 %v2340, %v2339
        %v2358 = vpack.c.bf16 %v2342, %v2341
        %s2359 = scalar_lea.vmem [#allocation11], 320
        %v2360 = vld [vmem:[%s2359] sm:$0xf]
        %v2361 = vld [vmem:[%s2359 + $0x4] sm:$0xf]
        %v2362 = vld [vmem:[%s2359 + $0x8] sm:$0xf]
        %v2363 = vld [vmem:[%s2359 + $0xc] sm:$0xf]
        %v2364 = vld [vmem:[%s2359 + $0x10] sm:$0xf]
        %v2365 = vld [vmem:[%s2359 + $0x14] sm:$0xf]
        %v2366 = vld [vmem:[%s2359 + $0x18] sm:$0xf]
        %v2367 = vld [vmem:[%s2359 + $0x1c] sm:$0xf]
        %v2368 = vld [vmem:[%s2359 + $0x20] sm:$0xf]
        %v2369 = vld [vmem:[%s2359 + $0x24] sm:$0xf]
        %v2370 = vld [vmem:[%s2359 + $0x28] sm:$0xf]
        %v2371 = vld [vmem:[%s2359 + $0x2c] sm:$0xf]
        %v2372 = vld [vmem:[%s2359 + $0x30] sm:$0xf]
        %v2373 = vld [vmem:[%s2359 + $0x34] sm:$0xf]
        %v2374 = vld [vmem:[%s2359 + $0x38] sm:$0xf]
        %v2375 = vld [vmem:[%s2359 + $0x3c] sm:$0xf]
        %v2392 = vunpack.c.l.b16 %v2360
        %v2393 = vunpack.c.l.b16 %v2361
        %v2394 = vunpack.c.l.b16 %v2362
        %v2395 = vunpack.c.l.b16 %v2363
        %v2396 = vunpack.c.l.b16 %v2364
        %v2397 = vunpack.c.l.b16 %v2365
        %v2398 = vunpack.c.l.b16 %v2366
        %v2399 = vunpack.c.l.b16 %v2367
        %v2400 = vunpack.c.l.b16 %v2368
        %v2401 = vunpack.c.l.b16 %v2369
        %v2402 = vunpack.c.l.b16 %v2370
        %v2403 = vunpack.c.l.b16 %v2371
        %v2404 = vunpack.c.l.b16 %v2372
        %v2405 = vunpack.c.l.b16 %v2373
        %v2406 = vunpack.c.l.b16 %v2374
        %v2407 = vunpack.c.l.b16 %v2375
        %v2408 = vpack.c.b16 %v2393, %v2392
        %v2409 = vpack.c.b16 %v2395, %v2394
        %v2410 = vpack.c.b16 %v2397, %v2396
        %v2411 = vpack.c.b16 %v2399, %v2398
        %v2412 = vpack.c.b16 %v2401, %v2400
        %v2413 = vpack.c.b16 %v2403, %v2402
        %v2414 = vpack.c.b16 %v2405, %v2404
        %v2415 = vpack.c.b16 %v2407, %v2406
        %2424 = vmatpush.bf16.msra.mxu0 %v2415
        %2425 = vmatpush.bf16.msra.mxu0 %v2414
        %2426 = vmatpush.bf16.msra.mxu0 %v2413
        %2427 = vmatpush.bf16.msra.mxu0 %v2412
        %2428 = vmatpush.bf16.msra.mxu0 %v2411
        %2429 = vmatpush.bf16.msra.mxu0 %v2410
        %2430 = vmatpush.bf16.msra.mxu0 %v2409
        %2431 = vmatpush.bf16.msra.mxu0 %v2408
        %2432 = vmatmul.bf16.gmra.mxu0 %v2343
        %v2433 = vpop.f32.mrf.mxu0
        %v2434 = vadd.f32 0.0, %v2433
        %v2435 = vpop.f32.mrf.mxu0
        %v2436 = vadd.f32 0.0, %v2435
        %2437 = vmatmul.bf16.gmra.mxu0 %v2344
        %v2438 = vpop.f32.mrf.mxu0
        %v2439 = vadd.f32 0.0, %v2438
        %v2440 = vpop.f32.mrf.mxu0
        %v2441 = vadd.f32 0.0, %v2440
        %2442 = vmatmul.bf16.gmra.mxu0 %v2345
        %v2443 = vpop.f32.mrf.mxu0
        %v2444 = vadd.f32 0.0, %v2443
        %v2445 = vpop.f32.mrf.mxu0
        %v2446 = vadd.f32 0.0, %v2445
        %2447 = vmatmul.bf16.gmra.mxu0 %v2346
        %v2448 = vpop.f32.mrf.mxu0
        %v2449 = vadd.f32 0.0, %v2448
        %v2450 = vpop.f32.mrf.mxu0
        %v2451 = vadd.f32 0.0, %v2450
        %2452 = vmatmul.bf16.gmra.mxu0 %v2347
        %v2453 = vpop.f32.mrf.mxu0
        %v2454 = vadd.f32 0.0, %v2453
        %v2455 = vpop.f32.mrf.mxu0
        %v2456 = vadd.f32 0.0, %v2455
        %2457 = vmatmul.bf16.gmra.mxu0 %v2348
        %v2458 = vpop.f32.mrf.mxu0
        %v2459 = vadd.f32 0.0, %v2458
        %v2460 = vpop.f32.mrf.mxu0
        %v2461 = vadd.f32 0.0, %v2460
        %2462 = vmatmul.bf16.gmra.mxu0 %v2349
        %v2463 = vpop.f32.mrf.mxu0
        %v2464 = vadd.f32 0.0, %v2463
        %v2465 = vpop.f32.mrf.mxu0
        %v2466 = vadd.f32 0.0, %v2465
        %2467 = vmatmul.bf16.gmra.mxu0 %v2350
        %v2468 = vpop.f32.mrf.mxu0
        %v2469 = vadd.f32 0.0, %v2468
        %v2470 = vpop.f32.mrf.mxu0
        %v2471 = vadd.f32 0.0, %v2470
        %2472 = vmatmul.bf16.gmra.mxu0 %v2351
        %v2473 = vpop.f32.mrf.mxu0
        %v2474 = vadd.f32 0.0, %v2473
        %v2475 = vpop.f32.mrf.mxu0
        %v2476 = vadd.f32 0.0, %v2475
        %2477 = vmatmul.bf16.gmra.mxu0 %v2352
        %v2478 = vpop.f32.mrf.mxu0
        %v2479 = vadd.f32 0.0, %v2478
        %v2480 = vpop.f32.mrf.mxu0
        %v2481 = vadd.f32 0.0, %v2480
        %2482 = vmatmul.bf16.gmra.mxu0 %v2353
        %v2483 = vpop.f32.mrf.mxu0
        %v2484 = vadd.f32 0.0, %v2483
        %v2485 = vpop.f32.mrf.mxu0
        %v2486 = vadd.f32 0.0, %v2485
        %2487 = vmatmul.bf16.gmra.mxu0 %v2354
        %v2488 = vpop.f32.mrf.mxu0
        %v2489 = vadd.f32 0.0, %v2488
        %v2490 = vpop.f32.mrf.mxu0
        %v2491 = vadd.f32 0.0, %v2490
        %2492 = vmatmul.bf16.gmra.mxu0 %v2355
        %v2493 = vpop.f32.mrf.mxu0
        %v2494 = vadd.f32 0.0, %v2493
        %v2495 = vpop.f32.mrf.mxu0
        %v2496 = vadd.f32 0.0, %v2495
        %2497 = vmatmul.bf16.gmra.mxu0 %v2356
        %v2498 = vpop.f32.mrf.mxu0
        %v2499 = vadd.f32 0.0, %v2498
        %v2500 = vpop.f32.mrf.mxu0
        %v2501 = vadd.f32 0.0, %v2500
        %2502 = vmatmul.bf16.gmra.mxu0 %v2357
        %v2503 = vpop.f32.mrf.mxu0
        %v2504 = vadd.f32 0.0, %v2503
        %v2505 = vpop.f32.mrf.mxu0
        %v2506 = vadd.f32 0.0, %v2505
        %2507 = vmatmul.bf16.gmra.mxu0 %v2358
        %v2508 = vpop.f32.mrf.mxu0
        %v2509 = vadd.f32 0.0, %v2508
        %v2510 = vpop.f32.mrf.mxu0
        %v2511 = vadd.f32 0.0, %v2510
        %2512 = vdwg.mxu0
        %v2513 = vadd.f32 %v2279, %v2434
        %v2514 = vadd.f32 %v2280, %v2436
        %v2515 = vadd.f32 %v2281, %v2439
        %v2516 = vadd.f32 %v2282, %v2441
        %v2517 = vadd.f32 %v2283, %v2444
        %v2518 = vadd.f32 %v2284, %v2446
        %v2519 = vadd.f32 %v2285, %v2449
        %v2520 = vadd.f32 %v2286, %v2451
        %v2521 = vadd.f32 %v2287, %v2454
        %v2522 = vadd.f32 %v2288, %v2456
        %v2523 = vadd.f32 %v2289, %v2459
        %v2524 = vadd.f32 %v2290, %v2461
        %v2525 = vadd.f32 %v2291, %v2464
        %v2526 = vadd.f32 %v2292, %v2466
        %v2527 = vadd.f32 %v2293, %v2469
        %v2528 = vadd.f32 %v2294, %v2471
        %v2529 = vadd.f32 %v2295, %v2474
        %v2530 = vadd.f32 %v2296, %v2476
        %v2531 = vadd.f32 %v2297, %v2479
        %v2532 = vadd.f32 %v2298, %v2481
        %v2533 = vadd.f32 %v2299, %v2484
        %v2534 = vadd.f32 %v2300, %v2486
        %v2535 = vadd.f32 %v2301, %v2489
        %v2536 = vadd.f32 %v2302, %v2491
        %v2537 = vadd.f32 %v2303, %v2494
        %v2538 = vadd.f32 %v2304, %v2496
        %v2539 = vadd.f32 %v2305, %v2499
        %v2540 = vadd.f32 %v2306, %v2501
        %v2541 = vadd.f32 %v2307, %v2504
        %v2542 = vadd.f32 %v2308, %v2506
        %v2543 = vadd.f32 %v2309, %v2509
        %v2544 = vadd.f32 %v2310, %v2511
        %s2545 = scalar_lea.vmem [#allocation2], 64
        %v2546 = vld [vmem:[%s2545 + $0x7] sm:$0xff]
        %v2547 = vld [vmem:[%s2545 + $0xf] sm:$0xff]
        %v2548 = vld [vmem:[%s2545 + $0x27] sm:$0xff]
        %v2549 = vld [vmem:[%s2545 + $0x2f] sm:$0xff]
        %v2550 = vld [vmem:[%s2545 + $0x47] sm:$0xff]
        %v2551 = vld [vmem:[%s2545 + $0x4f] sm:$0xff]
        %v2552 = vld [vmem:[%s2545 + $0x67] sm:$0xff]
        %v2553 = vld [vmem:[%s2545 + $0x6f] sm:$0xff]
        %v2554 = vld [vmem:[%s2545 + $0x87] sm:$0xff]
        %v2555 = vld [vmem:[%s2545 + $0x8f] sm:$0xff]
        %v2556 = vld [vmem:[%s2545 + $0xa7] sm:$0xff]
        %v2557 = vld [vmem:[%s2545 + $0xaf] sm:$0xff]
        %v2558 = vld [vmem:[%s2545 + $0xc7] sm:$0xff]
        %v2559 = vld [vmem:[%s2545 + $0xcf] sm:$0xff]
        %v2560 = vld [vmem:[%s2545 + $0xe7] sm:$0xff]
        %v2561 = vld [vmem:[%s2545 + $0xef] sm:$0xff]
        %v2562 = vld [vmem:[%s2545 + $0x107] sm:$0xff]
        %v2563 = vld [vmem:[%s2545 + $0x10f] sm:$0xff]
        %v2564 = vld [vmem:[%s2545 + $0x127] sm:$0xff]
        %v2565 = vld [vmem:[%s2545 + $0x12f] sm:$0xff]
        %v2566 = vld [vmem:[%s2545 + $0x147] sm:$0xff]
        %v2567 = vld [vmem:[%s2545 + $0x14f] sm:$0xff]
        %v2568 = vld [vmem:[%s2545 + $0x167] sm:$0xff]
        %v2569 = vld [vmem:[%s2545 + $0x16f] sm:$0xff]
        %v2570 = vld [vmem:[%s2545 + $0x187] sm:$0xff]
        %v2571 = vld [vmem:[%s2545 + $0x18f] sm:$0xff]
        %v2572 = vld [vmem:[%s2545 + $0x1a7] sm:$0xff]
        %v2573 = vld [vmem:[%s2545 + $0x1af] sm:$0xff]
        %v2574 = vld [vmem:[%s2545 + $0x1c7] sm:$0xff]
        %v2575 = vld [vmem:[%s2545 + $0x1cf] sm:$0xff]
        %v2576 = vld [vmem:[%s2545 + $0x1e7] sm:$0xff]
        %v2577 = vld [vmem:[%s2545 + $0x1ef] sm:$0xff]
        %v2578 = vpack.c.bf16 %v2547, %v2546
        %v2579 = vpack.c.bf16 %v2549, %v2548
        %v2580 = vpack.c.bf16 %v2551, %v2550
        %v2581 = vpack.c.bf16 %v2553, %v2552
        %v2582 = vpack.c.bf16 %v2555, %v2554
        %v2583 = vpack.c.bf16 %v2557, %v2556
        %v2584 = vpack.c.bf16 %v2559, %v2558
        %v2585 = vpack.c.bf16 %v2561, %v2560
        %v2586 = vpack.c.bf16 %v2563, %v2562
        %v2587 = vpack.c.bf16 %v2565, %v2564
        %v2588 = vpack.c.bf16 %v2567, %v2566
        %v2589 = vpack.c.bf16 %v2569, %v2568
        %v2590 = vpack.c.bf16 %v2571, %v2570
        %v2591 = vpack.c.bf16 %v2573, %v2572
        %v2592 = vpack.c.bf16 %v2575, %v2574
        %v2593 = vpack.c.bf16 %v2577, %v2576
        %s2594 = scalar_lea.vmem [#allocation11], 384
        %v2595 = vld [vmem:[%s2594] sm:$0xf]
        %v2596 = vld [vmem:[%s2594 + $0x4] sm:$0xf]
        %v2597 = vld [vmem:[%s2594 + $0x8] sm:$0xf]
        %v2598 = vld [vmem:[%s2594 + $0xc] sm:$0xf]
        %v2599 = vld [vmem:[%s2594 + $0x10] sm:$0xf]
        %v2600 = vld [vmem:[%s2594 + $0x14] sm:$0xf]
        %v2601 = vld [vmem:[%s2594 + $0x18] sm:$0xf]
        %v2602 = vld [vmem:[%s2594 + $0x1c] sm:$0xf]
        %v2603 = vld [vmem:[%s2594 + $0x20] sm:$0xf]
        %v2604 = vld [vmem:[%s2594 + $0x24] sm:$0xf]
        %v2605 = vld [vmem:[%s2594 + $0x28] sm:$0xf]
        %v2606 = vld [vmem:[%s2594 + $0x2c] sm:$0xf]
        %v2607 = vld [vmem:[%s2594 + $0x30] sm:$0xf]
        %v2608 = vld [vmem:[%s2594 + $0x34] sm:$0xf]
        %v2609 = vld [vmem:[%s2594 + $0x38] sm:$0xf]
        %v2610 = vld [vmem:[%s2594 + $0x3c] sm:$0xf]
        %v2627 = vunpack.c.l.b16 %v2595
        %v2628 = vunpack.c.l.b16 %v2596
        %v2629 = vunpack.c.l.b16 %v2597
        %v2630 = vunpack.c.l.b16 %v2598
        %v2631 = vunpack.c.l.b16 %v2599
        %v2632 = vunpack.c.l.b16 %v2600
        %v2633 = vunpack.c.l.b16 %v2601
        %v2634 = vunpack.c.l.b16 %v2602
        %v2635 = vunpack.c.l.b16 %v2603
        %v2636 = vunpack.c.l.b16 %v2604
        %v2637 = vunpack.c.l.b16 %v2605
        %v2638 = vunpack.c.l.b16 %v2606
        %v2639 = vunpack.c.l.b16 %v2607
        %v2640 = vunpack.c.l.b16 %v2608
        %v2641 = vunpack.c.l.b16 %v2609
        %v2642 = vunpack.c.l.b16 %v2610
        %v2643 = vpack.c.b16 %v2628, %v2627
        %v2644 = vpack.c.b16 %v2630, %v2629
        %v2645 = vpack.c.b16 %v2632, %v2631
        %v2646 = vpack.c.b16 %v2634, %v2633
        %v2647 = vpack.c.b16 %v2636, %v2635
        %v2648 = vpack.c.b16 %v2638, %v2637
        %v2649 = vpack.c.b16 %v2640, %v2639
        %v2650 = vpack.c.b16 %v2642, %v2641
        %2659 = vmatpush.bf16.msra.mxu0 %v2650
        %2660 = vmatpush.bf16.msra.mxu0 %v2649
        %2661 = vmatpush.bf16.msra.mxu0 %v2648
        %2662 = vmatpush.bf16.msra.mxu0 %v2647
        %2663 = vmatpush.bf16.msra.mxu0 %v2646
        %2664 = vmatpush.bf16.msra.mxu0 %v2645
        %2665 = vmatpush.bf16.msra.mxu0 %v2644
        %2666 = vmatpush.bf16.msra.mxu0 %v2643
        %2667 = vmatmul.bf16.gmra.mxu0 %v2578
        %v2668 = vpop.f32.mrf.mxu0
        %v2669 = vadd.f32 0.0, %v2668
        %v2670 = vpop.f32.mrf.mxu0
        %v2671 = vadd.f32 0.0, %v2670
        %2672 = vmatmul.bf16.gmra.mxu0 %v2579
        %v2673 = vpop.f32.mrf.mxu0
        %v2674 = vadd.f32 0.0, %v2673
        %v2675 = vpop.f32.mrf.mxu0
        %v2676 = vadd.f32 0.0, %v2675
        %2677 = vmatmul.bf16.gmra.mxu0 %v2580
        %v2678 = vpop.f32.mrf.mxu0
        %v2679 = vadd.f32 0.0, %v2678
        %v2680 = vpop.f32.mrf.mxu0
        %v2681 = vadd.f32 0.0, %v2680
        %2682 = vmatmul.bf16.gmra.mxu0 %v2581
        %v2683 = vpop.f32.mrf.mxu0
        %v2684 = vadd.f32 0.0, %v2683
        %v2685 = vpop.f32.mrf.mxu0
        %v2686 = vadd.f32 0.0, %v2685
        %2687 = vmatmul.bf16.gmra.mxu0 %v2582
        %v2688 = vpop.f32.mrf.mxu0
        %v2689 = vadd.f32 0.0, %v2688
        %v2690 = vpop.f32.mrf.mxu0
        %v2691 = vadd.f32 0.0, %v2690
        %2692 = vmatmul.bf16.gmra.mxu0 %v2583
        %v2693 = vpop.f32.mrf.mxu0
        %v2694 = vadd.f32 0.0, %v2693
        %v2695 = vpop.f32.mrf.mxu0
        %v2696 = vadd.f32 0.0, %v2695
        %2697 = vmatmul.bf16.gmra.mxu0 %v2584
        %v2698 = vpop.f32.mrf.mxu0
        %v2699 = vadd.f32 0.0, %v2698
        %v2700 = vpop.f32.mrf.mxu0
        %v2701 = vadd.f32 0.0, %v2700
        %2702 = vmatmul.bf16.gmra.mxu0 %v2585
        %v2703 = vpop.f32.mrf.mxu0
        %v2704 = vadd.f32 0.0, %v2703
        %v2705 = vpop.f32.mrf.mxu0
        %v2706 = vadd.f32 0.0, %v2705
        %2707 = vmatmul.bf16.gmra.mxu0 %v2586
        %v2708 = vpop.f32.mrf.mxu0
        %v2709 = vadd.f32 0.0, %v2708
        %v2710 = vpop.f32.mrf.mxu0
        %v2711 = vadd.f32 0.0, %v2710
        %2712 = vmatmul.bf16.gmra.mxu0 %v2587
        %v2713 = vpop.f32.mrf.mxu0
        %v2714 = vadd.f32 0.0, %v2713
        %v2715 = vpop.f32.mrf.mxu0
        %v2716 = vadd.f32 0.0, %v2715
        %2717 = vmatmul.bf16.gmra.mxu0 %v2588
        %v2718 = vpop.f32.mrf.mxu0
        %v2719 = vadd.f32 0.0, %v2718
        %v2720 = vpop.f32.mrf.mxu0
        %v2721 = vadd.f32 0.0, %v2720
        %2722 = vmatmul.bf16.gmra.mxu0 %v2589
        %v2723 = vpop.f32.mrf.mxu0
        %v2724 = vadd.f32 0.0, %v2723
        %v2725 = vpop.f32.mrf.mxu0
        %v2726 = vadd.f32 0.0, %v2725
        %2727 = vmatmul.bf16.gmra.mxu0 %v2590
        %v2728 = vpop.f32.mrf.mxu0
        %v2729 = vadd.f32 0.0, %v2728
        %v2730 = vpop.f32.mrf.mxu0
        %v2731 = vadd.f32 0.0, %v2730
        %2732 = vmatmul.bf16.gmra.mxu0 %v2591
        %v2733 = vpop.f32.mrf.mxu0
        %v2734 = vadd.f32 0.0, %v2733
        %v2735 = vpop.f32.mrf.mxu0
        %v2736 = vadd.f32 0.0, %v2735
        %2737 = vmatmul.bf16.gmra.mxu0 %v2592
        %v2738 = vpop.f32.mrf.mxu0
        %v2739 = vadd.f32 0.0, %v2738
        %v2740 = vpop.f32.mrf.mxu0
        %v2741 = vadd.f32 0.0, %v2740
        %2742 = vmatmul.bf16.gmra.mxu0 %v2593
        %v2743 = vpop.f32.mrf.mxu0
        %v2744 = vadd.f32 0.0, %v2743
        %v2745 = vpop.f32.mrf.mxu0
        %v2746 = vadd.f32 0.0, %v2745
        %2747 = vdwg.mxu0
        %v2748 = vadd.f32 %v2513, %v2669
        %v2749 = vadd.f32 %v2514, %v2671
        %v2750 = vadd.f32 %v2515, %v2674
        %v2751 = vadd.f32 %v2516, %v2676
        %v2752 = vadd.f32 %v2517, %v2679
        %v2753 = vadd.f32 %v2518, %v2681
        %v2754 = vadd.f32 %v2519, %v2684
        %v2755 = vadd.f32 %v2520, %v2686
        %v2756 = vadd.f32 %v2521, %v2689
        %v2757 = vadd.f32 %v2522, %v2691
        %v2758 = vadd.f32 %v2523, %v2694
        %v2759 = vadd.f32 %v2524, %v2696
        %v2760 = vadd.f32 %v2525, %v2699
        %v2761 = vadd.f32 %v2526, %v2701
        %v2762 = vadd.f32 %v2527, %v2704
        %v2763 = vadd.f32 %v2528, %v2706
        %v2764 = vadd.f32 %v2529, %v2709
        %v2765 = vadd.f32 %v2530, %v2711
        %v2766 = vadd.f32 %v2531, %v2714
        %v2767 = vadd.f32 %v2532, %v2716
        %v2768 = vadd.f32 %v2533, %v2719
        %v2769 = vadd.f32 %v2534, %v2721
        %v2770 = vadd.f32 %v2535, %v2724
        %v2771 = vadd.f32 %v2536, %v2726
        %v2772 = vadd.f32 %v2537, %v2729
        %v2773 = vadd.f32 %v2538, %v2731
        %v2774 = vadd.f32 %v2539, %v2734
        %v2775 = vadd.f32 %v2540, %v2736
        %v2776 = vadd.f32 %v2541, %v2739
        %v2777 = vadd.f32 %v2542, %v2741
        %v2778 = vadd.f32 %v2543, %v2744
        %v2779 = vadd.f32 %v2544, %v2746
        %v2780 = vld [vmem:[%s2545 + $0x8] sm:$0xff]
        %v2781 = vld [vmem:[%s2545 + $0x10] sm:$0xff]
        %v2782 = vld [vmem:[%s2545 + $0x28] sm:$0xff]
        %v2783 = vld [vmem:[%s2545 + $0x30] sm:$0xff]
        %v2784 = vld [vmem:[%s2545 + $0x48] sm:$0xff]
        %v2785 = vld [vmem:[%s2545 + $0x50] sm:$0xff]
        %v2786 = vld [vmem:[%s2545 + $0x68] sm:$0xff]
        %v2787 = vld [vmem:[%s2545 + $0x70] sm:$0xff]
        %v2788 = vld [vmem:[%s2545 + $0x88] sm:$0xff]
        %v2789 = vld [vmem:[%s2545 + $0x90] sm:$0xff]
        %v2790 = vld [vmem:[%s2545 + $0xa8] sm:$0xff]
        %v2791 = vld [vmem:[%s2545 + $0xb0] sm:$0xff]
        %v2792 = vld [vmem:[%s2545 + $0xc8] sm:$0xff]
        %v2793 = vld [vmem:[%s2545 + $0xd0] sm:$0xff]
        %v2794 = vld [vmem:[%s2545 + $0xe8] sm:$0xff]
        %v2795 = vld [vmem:[%s2545 + $0xf0] sm:$0xff]
        %v2796 = vld [vmem:[%s2545 + $0x108] sm:$0xff]
        %v2797 = vld [vmem:[%s2545 + $0x110] sm:$0xff]
        %v2798 = vld [vmem:[%s2545 + $0x128] sm:$0xff]
        %v2799 = vld [vmem:[%s2545 + $0x130] sm:$0xff]
        %v2800 = vld [vmem:[%s2545 + $0x148] sm:$0xff]
        %v2801 = vld [vmem:[%s2545 + $0x150] sm:$0xff]
        %v2802 = vld [vmem:[%s2545 + $0x168] sm:$0xff]
        %v2803 = vld [vmem:[%s2545 + $0x170] sm:$0xff]
        %v2804 = vld [vmem:[%s2545 + $0x188] sm:$0xff]
        %v2805 = vld [vmem:[%s2545 + $0x190] sm:$0xff]
        %v2806 = vld [vmem:[%s2545 + $0x1a8] sm:$0xff]
        %v2807 = vld [vmem:[%s2545 + $0x1b0] sm:$0xff]
        %v2808 = vld [vmem:[%s2545 + $0x1c8] sm:$0xff]
        %v2809 = vld [vmem:[%s2545 + $0x1d0] sm:$0xff]
        %v2810 = vld [vmem:[%s2545 + $0x1e8] sm:$0xff]
        %v2811 = vld [vmem:[%s2545 + $0x1f0] sm:$0xff]
        %v2812 = vpack.c.bf16 %v2781, %v2780
        %v2813 = vpack.c.bf16 %v2783, %v2782
        %v2814 = vpack.c.bf16 %v2785, %v2784
        %v2815 = vpack.c.bf16 %v2787, %v2786
        %v2816 = vpack.c.bf16 %v2789, %v2788
        %v2817 = vpack.c.bf16 %v2791, %v2790
        %v2818 = vpack.c.bf16 %v2793, %v2792
        %v2819 = vpack.c.bf16 %v2795, %v2794
        %v2820 = vpack.c.bf16 %v2797, %v2796
        %v2821 = vpack.c.bf16 %v2799, %v2798
        %v2822 = vpack.c.bf16 %v2801, %v2800
        %v2823 = vpack.c.bf16 %v2803, %v2802
        %v2824 = vpack.c.bf16 %v2805, %v2804
        %v2825 = vpack.c.bf16 %v2807, %v2806
        %v2826 = vpack.c.bf16 %v2809, %v2808
        %v2827 = vpack.c.bf16 %v2811, %v2810
        %s2828 = scalar_lea.vmem [#allocation11], 448
        %v2829 = vld [vmem:[%s2828] sm:$0xf]
        %v2830 = vld [vmem:[%s2828 + $0x4] sm:$0xf]
        %v2831 = vld [vmem:[%s2828 + $0x8] sm:$0xf]
        %v2832 = vld [vmem:[%s2828 + $0xc] sm:$0xf]
        %v2833 = vld [vmem:[%s2828 + $0x10] sm:$0xf]
        %v2834 = vld [vmem:[%s2828 + $0x14] sm:$0xf]
        %v2835 = vld [vmem:[%s2828 + $0x18] sm:$0xf]
        %v2836 = vld [vmem:[%s2828 + $0x1c] sm:$0xf]
        %v2837 = vld [vmem:[%s2828 + $0x20] sm:$0xf]
        %v2838 = vld [vmem:[%s2828 + $0x24] sm:$0xf]
        %v2839 = vld [vmem:[%s2828 + $0x28] sm:$0xf]
        %v2840 = vld [vmem:[%s2828 + $0x2c] sm:$0xf]
        %v2841 = vld [vmem:[%s2828 + $0x30] sm:$0xf]
        %v2842 = vld [vmem:[%s2828 + $0x34] sm:$0xf]
        %v2843 = vld [vmem:[%s2828 + $0x38] sm:$0xf]
        %v2844 = vld [vmem:[%s2828 + $0x3c] sm:$0xf]
        %v2861 = vunpack.c.l.b16 %v2829
        %v2862 = vunpack.c.l.b16 %v2830
        %v2863 = vunpack.c.l.b16 %v2831
        %v2864 = vunpack.c.l.b16 %v2832
        %v2865 = vunpack.c.l.b16 %v2833
        %v2866 = vunpack.c.l.b16 %v2834
        %v2867 = vunpack.c.l.b16 %v2835
        %v2868 = vunpack.c.l.b16 %v2836
        %v2869 = vunpack.c.l.b16 %v2837
        %v2870 = vunpack.c.l.b16 %v2838
        %v2871 = vunpack.c.l.b16 %v2839
        %v2872 = vunpack.c.l.b16 %v2840
        %v2873 = vunpack.c.l.b16 %v2841
        %v2874 = vunpack.c.l.b16 %v2842
        %v2875 = vunpack.c.l.b16 %v2843
        %v2876 = vunpack.c.l.b16 %v2844
        %v2877 = vpack.c.b16 %v2862, %v2861
        %v2878 = vpack.c.b16 %v2864, %v2863
        %v2879 = vpack.c.b16 %v2866, %v2865
        %v2880 = vpack.c.b16 %v2868, %v2867
        %v2881 = vpack.c.b16 %v2870, %v2869
        %v2882 = vpack.c.b16 %v2872, %v2871
        %v2883 = vpack.c.b16 %v2874, %v2873
        %v2884 = vpack.c.b16 %v2876, %v2875
        %2893 = vmatpush.bf16.msra.mxu0 %v2884
        %2894 = vmatpush.bf16.msra.mxu0 %v2883
        %2895 = vmatpush.bf16.msra.mxu0 %v2882
        %2896 = vmatpush.bf16.msra.mxu0 %v2881
        %2897 = vmatpush.bf16.msra.mxu0 %v2880
        %2898 = vmatpush.bf16.msra.mxu0 %v2879
        %2899 = vmatpush.bf16.msra.mxu0 %v2878
        %2900 = vmatpush.bf16.msra.mxu0 %v2877
        %2901 = vmatmul.bf16.gmra.mxu0 %v2812
        %v2902 = vpop.f32.mrf.mxu0
        %v2903 = vadd.f32 0.0, %v2902
        %v2904 = vpop.f32.mrf.mxu0
        %v2905 = vadd.f32 0.0, %v2904
        %2906 = vmatmul.bf16.gmra.mxu0 %v2813
        %v2907 = vpop.f32.mrf.mxu0
        %v2908 = vadd.f32 0.0, %v2907
        %v2909 = vpop.f32.mrf.mxu0
        %v2910 = vadd.f32 0.0, %v2909
        %2911 = vmatmul.bf16.gmra.mxu0 %v2814
        %v2912 = vpop.f32.mrf.mxu0
        %v2913 = vadd.f32 0.0, %v2912
        %v2914 = vpop.f32.mrf.mxu0
        %v2915 = vadd.f32 0.0, %v2914
        %2916 = vmatmul.bf16.gmra.mxu0 %v2815
        %v2917 = vpop.f32.mrf.mxu0
        %v2918 = vadd.f32 0.0, %v2917
        %v2919 = vpop.f32.mrf.mxu0
        %v2920 = vadd.f32 0.0, %v2919
        %2921 = vmatmul.bf16.gmra.mxu0 %v2816
        %v2922 = vpop.f32.mrf.mxu0
        %v2923 = vadd.f32 0.0, %v2922
        %v2924 = vpop.f32.mrf.mxu0
        %v2925 = vadd.f32 0.0, %v2924
        %2926 = vmatmul.bf16.gmra.mxu0 %v2817
        %v2927 = vpop.f32.mrf.mxu0
        %v2928 = vadd.f32 0.0, %v2927
        %v2929 = vpop.f32.mrf.mxu0
        %v2930 = vadd.f32 0.0, %v2929
        %2931 = vmatmul.bf16.gmra.mxu0 %v2818
        %v2932 = vpop.f32.mrf.mxu0
        %v2933 = vadd.f32 0.0, %v2932
        %v2934 = vpop.f32.mrf.mxu0
        %v2935 = vadd.f32 0.0, %v2934
        %2936 = vmatmul.bf16.gmra.mxu0 %v2819
        %v2937 = vpop.f32.mrf.mxu0
        %v2938 = vadd.f32 0.0, %v2937
        %v2939 = vpop.f32.mrf.mxu0
        %v2940 = vadd.f32 0.0, %v2939
        %2941 = vmatmul.bf16.gmra.mxu0 %v2820
        %v2942 = vpop.f32.mrf.mxu0
        %v2943 = vadd.f32 0.0, %v2942
        %v2944 = vpop.f32.mrf.mxu0
        %v2945 = vadd.f32 0.0, %v2944
        %2946 = vmatmul.bf16.gmra.mxu0 %v2821
        %v2947 = vpop.f32.mrf.mxu0
        %v2948 = vadd.f32 0.0, %v2947
        %v2949 = vpop.f32.mrf.mxu0
        %v2950 = vadd.f32 0.0, %v2949
        %2951 = vmatmul.bf16.gmra.mxu0 %v2822
        %v2952 = vpop.f32.mrf.mxu0
        %v2953 = vadd.f32 0.0, %v2952
        %v2954 = vpop.f32.mrf.mxu0
        %v2955 = vadd.f32 0.0, %v2954
        %2956 = vmatmul.bf16.gmra.mxu0 %v2823
        %v2957 = vpop.f32.mrf.mxu0
        %v2958 = vadd.f32 0.0, %v2957
        %v2959 = vpop.f32.mrf.mxu0
        %v2960 = vadd.f32 0.0, %v2959
        %2961 = vmatmul.bf16.gmra.mxu0 %v2824
        %v2962 = vpop.f32.mrf.mxu0
        %v2963 = vadd.f32 0.0, %v2962
        %v2964 = vpop.f32.mrf.mxu0
        %v2965 = vadd.f32 0.0, %v2964
        %2966 = vmatmul.bf16.gmra.mxu0 %v2825
        %v2967 = vpop.f32.mrf.mxu0
        %v2968 = vadd.f32 0.0, %v2967
        %v2969 = vpop.f32.mrf.mxu0
        %v2970 = vadd.f32 0.0, %v2969
        %2971 = vmatmul.bf16.gmra.mxu0 %v2826
        %v2972 = vpop.f32.mrf.mxu0
        %v2973 = vadd.f32 0.0, %v2972
        %v2974 = vpop.f32.mrf.mxu0
        %v2975 = vadd.f32 0.0, %v2974
        %2976 = vmatmul.bf16.gmra.mxu0 %v2827
        %v2977 = vpop.f32.mrf.mxu0
        %v2978 = vadd.f32 0.0, %v2977
        %v2979 = vpop.f32.mrf.mxu0
        %v2980 = vadd.f32 0.0, %v2979
        %2981 = vdwg.mxu0
        %v2982 = vadd.f32 %v2748, %v2903
        %v2983 = vadd.f32 %v2749, %v2905
        %v2984 = vadd.f32 %v2750, %v2908
        %v2985 = vadd.f32 %v2751, %v2910
        %v2986 = vadd.f32 %v2752, %v2913
        %v2987 = vadd.f32 %v2753, %v2915
        %v2988 = vadd.f32 %v2754, %v2918
        %v2989 = vadd.f32 %v2755, %v2920
        %v2990 = vadd.f32 %v2756, %v2923
        %v2991 = vadd.f32 %v2757, %v2925
        %v2992 = vadd.f32 %v2758, %v2928
        %v2993 = vadd.f32 %v2759, %v2930
        %v2994 = vadd.f32 %v2760, %v2933
        %v2995 = vadd.f32 %v2761, %v2935
        %v2996 = vadd.f32 %v2762, %v2938
        %v2997 = vadd.f32 %v2763, %v2940
        %v2998 = vadd.f32 %v2764, %v2943
        %v2999 = vadd.f32 %v2765, %v2945
        %v3000 = vadd.f32 %v2766, %v2948
        %v3001 = vadd.f32 %v2767, %v2950
        %v3002 = vadd.f32 %v2768, %v2953
        %v3003 = vadd.f32 %v2769, %v2955
        %v3004 = vadd.f32 %v2770, %v2958
        %v3005 = vadd.f32 %v2771, %v2960
        %v3006 = vadd.f32 %v2772, %v2963
        %v3007 = vadd.f32 %v2773, %v2965
        %v3008 = vadd.f32 %v2774, %v2968
        %v3009 = vadd.f32 %v2775, %v2970
        %v3010 = vadd.f32 %v2776, %v2973
        %v3011 = vadd.f32 %v2777, %v2975
        %v3012 = vadd.f32 %v2778, %v2978
        %v3013 = vadd.f32 %v2779, %v2980
        %v3014 = vld [vmem:[%s2545 + $0x9] sm:$0xff]
        %v3015 = vld [vmem:[%s2545 + $0x11] sm:$0xff]
        %v3016 = vld [vmem:[%s2545 + $0x29] sm:$0xff]
        %v3017 = vld [vmem:[%s2545 + $0x31] sm:$0xff]
        %v3018 = vld [vmem:[%s2545 + $0x49] sm:$0xff]
        %v3019 = vld [vmem:[%s2545 + $0x51] sm:$0xff]
        %v3020 = vld [vmem:[%s2545 + $0x69] sm:$0xff]
        %v3021 = vld [vmem:[%s2545 + $0x71] sm:$0xff]
        %v3022 = vld [vmem:[%s2545 + $0x89] sm:$0xff]
        %v3023 = vld [vmem:[%s2545 + $0x91] sm:$0xff]
        %v3024 = vld [vmem:[%s2545 + $0xa9] sm:$0xff]
        %v3025 = vld [vmem:[%s2545 + $0xb1] sm:$0xff]
        %v3026 = vld [vmem:[%s2545 + $0xc9] sm:$0xff]
        %v3027 = vld [vmem:[%s2545 + $0xd1] sm:$0xff]
        %v3028 = vld [vmem:[%s2545 + $0xe9] sm:$0xff]
        %v3029 = vld [vmem:[%s2545 + $0xf1] sm:$0xff]
        %v3030 = vld [vmem:[%s2545 + $0x109] sm:$0xff]
        %v3031 = vld [vmem:[%s2545 + $0x111] sm:$0xff]
        %v3032 = vld [vmem:[%s2545 + $0x129] sm:$0xff]
        %v3033 = vld [vmem:[%s2545 + $0x131] sm:$0xff]
        %v3034 = vld [vmem:[%s2545 + $0x149] sm:$0xff]
        %v3035 = vld [vmem:[%s2545 + $0x151] sm:$0xff]
        %v3036 = vld [vmem:[%s2545 + $0x169] sm:$0xff]
        %v3037 = vld [vmem:[%s2545 + $0x171] sm:$0xff]
        %v3038 = vld [vmem:[%s2545 + $0x189] sm:$0xff]
        %v3039 = vld [vmem:[%s2545 + $0x191] sm:$0xff]
        %v3040 = vld [vmem:[%s2545 + $0x1a9] sm:$0xff]
        %v3041 = vld [vmem:[%s2545 + $0x1b1] sm:$0xff]
        %v3042 = vld [vmem:[%s2545 + $0x1c9] sm:$0xff]
        %v3043 = vld [vmem:[%s2545 + $0x1d1] sm:$0xff]
        %v3044 = vld [vmem:[%s2545 + $0x1e9] sm:$0xff]
        %v3045 = vld [vmem:[%s2545 + $0x1f1] sm:$0xff]
        %v3046 = vpack.c.bf16 %v3015, %v3014
        %v3047 = vpack.c.bf16 %v3017, %v3016
        %v3048 = vpack.c.bf16 %v3019, %v3018
        %v3049 = vpack.c.bf16 %v3021, %v3020
        %v3050 = vpack.c.bf16 %v3023, %v3022
        %v3051 = vpack.c.bf16 %v3025, %v3024
        %v3052 = vpack.c.bf16 %v3027, %v3026
        %v3053 = vpack.c.bf16 %v3029, %v3028
        %v3054 = vpack.c.bf16 %v3031, %v3030
        %v3055 = vpack.c.bf16 %v3033, %v3032
        %v3056 = vpack.c.bf16 %v3035, %v3034
        %v3057 = vpack.c.bf16 %v3037, %v3036
        %v3058 = vpack.c.bf16 %v3039, %v3038
        %v3059 = vpack.c.bf16 %v3041, %v3040
        %v3060 = vpack.c.bf16 %v3043, %v3042
        %v3061 = vpack.c.bf16 %v3045, %v3044
        %s3062 = scalar_lea.vmem [#allocation11], 512
        %v3063 = vld [vmem:[%s3062] sm:$0xf]
        %v3064 = vld [vmem:[%s3062 + $0x4] sm:$0xf]
        %v3065 = vld [vmem:[%s3062 + $0x8] sm:$0xf]
        %v3066 = vld [vmem:[%s3062 + $0xc] sm:$0xf]
        %v3067 = vld [vmem:[%s3062 + $0x10] sm:$0xf]
        %v3068 = vld [vmem:[%s3062 + $0x14] sm:$0xf]
        %v3069 = vld [vmem:[%s3062 + $0x18] sm:$0xf]
        %v3070 = vld [vmem:[%s3062 + $0x1c] sm:$0xf]
        %v3071 = vld [vmem:[%s3062 + $0x20] sm:$0xf]
        %v3072 = vld [vmem:[%s3062 + $0x24] sm:$0xf]
        %v3073 = vld [vmem:[%s3062 + $0x28] sm:$0xf]
        %v3074 = vld [vmem:[%s3062 + $0x2c] sm:$0xf]
        %v3075 = vld [vmem:[%s3062 + $0x30] sm:$0xf]
        %v3076 = vld [vmem:[%s3062 + $0x34] sm:$0xf]
        %v3077 = vld [vmem:[%s3062 + $0x38] sm:$0xf]
        %v3078 = vld [vmem:[%s3062 + $0x3c] sm:$0xf]
        %v3095 = vunpack.c.l.b16 %v3063
        %v3096 = vunpack.c.l.b16 %v3064
        %v3097 = vunpack.c.l.b16 %v3065
        %v3098 = vunpack.c.l.b16 %v3066
        %v3099 = vunpack.c.l.b16 %v3067
        %v3100 = vunpack.c.l.b16 %v3068
        %v3101 = vunpack.c.l.b16 %v3069
        %v3102 = vunpack.c.l.b16 %v3070
        %v3103 = vunpack.c.l.b16 %v3071
        %v3104 = vunpack.c.l.b16 %v3072
        %v3105 = vunpack.c.l.b16 %v3073
        %v3106 = vunpack.c.l.b16 %v3074
        %v3107 = vunpack.c.l.b16 %v3075
        %v3108 = vunpack.c.l.b16 %v3076
        %v3109 = vunpack.c.l.b16 %v3077
        %v3110 = vunpack.c.l.b16 %v3078
        %v3111 = vpack.c.b16 %v3096, %v3095
        %v3112 = vpack.c.b16 %v3098, %v3097
        %v3113 = vpack.c.b16 %v3100, %v3099
        %v3114 = vpack.c.b16 %v3102, %v3101
        %v3115 = vpack.c.b16 %v3104, %v3103
        %v3116 = vpack.c.b16 %v3106, %v3105
        %v3117 = vpack.c.b16 %v3108, %v3107
        %v3118 = vpack.c.b16 %v3110, %v3109
        %3127 = vmatpush.bf16.msra.mxu0 %v3118
        %3128 = vmatpush.bf16.msra.mxu0 %v3117
        %3129 = vmatpush.bf16.msra.mxu0 %v3116
        %3130 = vmatpush.bf16.msra.mxu0 %v3115
        %3131 = vmatpush.bf16.msra.mxu0 %v3114
        %3132 = vmatpush.bf16.msra.mxu0 %v3113
        %3133 = vmatpush.bf16.msra.mxu0 %v3112
        %3134 = vmatpush.bf16.msra.mxu0 %v3111
        %3135 = vmatmul.bf16.gmra.mxu0 %v3046
        %v3136 = vpop.f32.mrf.mxu0
        %v3137 = vadd.f32 0.0, %v3136
        %v3138 = vpop.f32.mrf.mxu0
        %v3139 = vadd.f32 0.0, %v3138
        %3140 = vmatmul.bf16.gmra.mxu0 %v3047
        %v3141 = vpop.f32.mrf.mxu0
        %v3142 = vadd.f32 0.0, %v3141
        %v3143 = vpop.f32.mrf.mxu0
        %v3144 = vadd.f32 0.0, %v3143
        %3145 = vmatmul.bf16.gmra.mxu0 %v3048
        %v3146 = vpop.f32.mrf.mxu0
        %v3147 = vadd.f32 0.0, %v3146
        %v3148 = vpop.f32.mrf.mxu0
        %v3149 = vadd.f32 0.0, %v3148
        %3150 = vmatmul.bf16.gmra.mxu0 %v3049
        %v3151 = vpop.f32.mrf.mxu0
        %v3152 = vadd.f32 0.0, %v3151
        %v3153 = vpop.f32.mrf.mxu0
        %v3154 = vadd.f32 0.0, %v3153
        %3155 = vmatmul.bf16.gmra.mxu0 %v3050
        %v3156 = vpop.f32.mrf.mxu0
        %v3157 = vadd.f32 0.0, %v3156
        %v3158 = vpop.f32.mrf.mxu0
        %v3159 = vadd.f32 0.0, %v3158
        %3160 = vmatmul.bf16.gmra.mxu0 %v3051
        %v3161 = vpop.f32.mrf.mxu0
        %v3162 = vadd.f32 0.0, %v3161
        %v3163 = vpop.f32.mrf.mxu0
        %v3164 = vadd.f32 0.0, %v3163
        %3165 = vmatmul.bf16.gmra.mxu0 %v3052
        %v3166 = vpop.f32.mrf.mxu0
        %v3167 = vadd.f32 0.0, %v3166
        %v3168 = vpop.f32.mrf.mxu0
        %v3169 = vadd.f32 0.0, %v3168
        %3170 = vmatmul.bf16.gmra.mxu0 %v3053
        %v3171 = vpop.f32.mrf.mxu0
        %v3172 = vadd.f32 0.0, %v3171
        %v3173 = vpop.f32.mrf.mxu0
        %v3174 = vadd.f32 0.0, %v3173
        %3175 = vmatmul.bf16.gmra.mxu0 %v3054
        %v3176 = vpop.f32.mrf.mxu0
        %v3177 = vadd.f32 0.0, %v3176
        %v3178 = vpop.f32.mrf.mxu0
        %v3179 = vadd.f32 0.0, %v3178
        %3180 = vmatmul.bf16.gmra.mxu0 %v3055
        %v3181 = vpop.f32.mrf.mxu0
        %v3182 = vadd.f32 0.0, %v3181
        %v3183 = vpop.f32.mrf.mxu0
        %v3184 = vadd.f32 0.0, %v3183
        %3185 = vmatmul.bf16.gmra.mxu0 %v3056
        %v3186 = vpop.f32.mrf.mxu0
        %v3187 = vadd.f32 0.0, %v3186
        %v3188 = vpop.f32.mrf.mxu0
        %v3189 = vadd.f32 0.0, %v3188
        %3190 = vmatmul.bf16.gmra.mxu0 %v3057
        %v3191 = vpop.f32.mrf.mxu0
        %v3192 = vadd.f32 0.0, %v3191
        %v3193 = vpop.f32.mrf.mxu0
        %v3194 = vadd.f32 0.0, %v3193
        %3195 = vmatmul.bf16.gmra.mxu0 %v3058
        %v3196 = vpop.f32.mrf.mxu0
        %v3197 = vadd.f32 0.0, %v3196
        %v3198 = vpop.f32.mrf.mxu0
        %v3199 = vadd.f32 0.0, %v3198
        %3200 = vmatmul.bf16.gmra.mxu0 %v3059
        %v3201 = vpop.f32.mrf.mxu0
        %v3202 = vadd.f32 0.0, %v3201
        %v3203 = vpop.f32.mrf.mxu0
        %v3204 = vadd.f32 0.0, %v3203
        %3205 = vmatmul.bf16.gmra.mxu0 %v3060
        %v3206 = vpop.f32.mrf.mxu0
        %v3207 = vadd.f32 0.0, %v3206
        %v3208 = vpop.f32.mrf.mxu0
        %v3209 = vadd.f32 0.0, %v3208
        %3210 = vmatmul.bf16.gmra.mxu0 %v3061
        %v3211 = vpop.f32.mrf.mxu0
        %v3212 = vadd.f32 0.0, %v3211
        %v3213 = vpop.f32.mrf.mxu0
        %v3214 = vadd.f32 0.0, %v3213
        %3215 = vdwg.mxu0
        %v3216 = vadd.f32 %v2982, %v3137
        %v3217 = vadd.f32 %v2983, %v3139
        %v3218 = vadd.f32 %v2984, %v3142
        %v3219 = vadd.f32 %v2985, %v3144
        %v3220 = vadd.f32 %v2986, %v3147
        %v3221 = vadd.f32 %v2987, %v3149
        %v3222 = vadd.f32 %v2988, %v3152
        %v3223 = vadd.f32 %v2989, %v3154
        %v3224 = vadd.f32 %v2990, %v3157
        %v3225 = vadd.f32 %v2991, %v3159
        %v3226 = vadd.f32 %v2992, %v3162
        %v3227 = vadd.f32 %v2993, %v3164
        %v3228 = vadd.f32 %v2994, %v3167
        %v3229 = vadd.f32 %v2995, %v3169
        %v3230 = vadd.f32 %v2996, %v3172
        %v3231 = vadd.f32 %v2997, %v3174
        %v3232 = vadd.f32 %v2998, %v3177
        %v3233 = vadd.f32 %v2999, %v3179
        %v3234 = vadd.f32 %v3000, %v3182
        %v3235 = vadd.f32 %v3001, %v3184
        %v3236 = vadd.f32 %v3002, %v3187
        %v3237 = vadd.f32 %v3003, %v3189
        %v3238 = vadd.f32 %v3004, %v3192
        %v3239 = vadd.f32 %v3005, %v3194
        %v3240 = vadd.f32 %v3006, %v3197
        %v3241 = vadd.f32 %v3007, %v3199
        %v3242 = vadd.f32 %v3008, %v3202
        %v3243 = vadd.f32 %v3009, %v3204
        %v3244 = vadd.f32 %v3010, %v3207
        %v3245 = vadd.f32 %v3011, %v3209
        %v3246 = vadd.f32 %v3012, %v3212
        %v3247 = vadd.f32 %v3013, %v3214
        %3248 = vst [vmem:[%s404] sm:$0xff] %v3216
        %3249 = vst [vmem:[%s404 + $0x8] sm:$0xff] %v3217
        %3250 = vst [vmem:[%s404 + $0x10] sm:$0xff] %v3218
        %3251 = vst [vmem:[%s404 + $0x18] sm:$0xff] %v3219
        %3252 = vst [vmem:[%s404 + $0x20] sm:$0xff] %v3220
        %3253 = vst [vmem:[%s404 + $0x28] sm:$0xff] %v3221
        %3254 = vst [vmem:[%s404 + $0x30] sm:$0xff] %v3222
        %3255 = vst [vmem:[%s404 + $0x38] sm:$0xff] %v3223
        %3256 = vst [vmem:[%s404 + $0x40] sm:$0xff] %v3224
        %3257 = vst [vmem:[%s404 + $0x48] sm:$0xff] %v3225
        %3258 = vst [vmem:[%s404 + $0x50] sm:$0xff] %v3226
        %3259 = vst [vmem:[%s404 + $0x58] sm:$0xff] %v3227
        %3260 = vst [vmem:[%s404 + $0x60] sm:$0xff] %v3228
        %3261 = vst [vmem:[%s404 + $0x68] sm:$0xff] %v3229
        %3262 = vst [vmem:[%s404 + $0x70] sm:$0xff] %v3230
        %3263 = vst [vmem:[%s404 + $0x78] sm:$0xff] %v3231
        %3264 = vst [vmem:[%s404 + $0x80] sm:$0xff] %v3232
        %3265 = vst [vmem:[%s404 + $0x88] sm:$0xff] %v3233
        %3266 = vst [vmem:[%s404 + $0x90] sm:$0xff] %v3234
        %3267 = vst [vmem:[%s404 + $0x98] sm:$0xff] %v3235
        %3268 = vst [vmem:[%s404 + $0xa0] sm:$0xff] %v3236
        %3269 = vst [vmem:[%s404 + $0xa8] sm:$0xff] %v3237
        %3270 = vst [vmem:[%s404 + $0xb0] sm:$0xff] %v3238
        %3271 = vst [vmem:[%s404 + $0xb8] sm:$0xff] %v3239
        %3272 = vst [vmem:[%s404 + $0xc0] sm:$0xff] %v3240
        %3273 = vst [vmem:[%s404 + $0xc8] sm:$0xff] %v3241
        %3274 = vst [vmem:[%s404 + $0xd0] sm:$0xff] %v3242
        %3275 = vst [vmem:[%s404 + $0xd8] sm:$0xff] %v3243
        %3276 = vst [vmem:[%s404 + $0xe0] sm:$0xff] %v3244
        %3277 = vst [vmem:[%s404 + $0xe8] sm:$0xff] %v3245
        %3278 = vst [vmem:[%s404 + $0xf0] sm:$0xff] %v3246
        %3279 = vst [vmem:[%s404 + $0xf8] sm:$0xff] %v3247
        %s3280 = sand.u32 %s209, 1
        %s3281 = scalar_lea.sflag [#allocation5], %s3280
        %s3282 = sand.u32 %s209, 1
        %s3283 = smul.addr %s3282, 256
        %s3284 = scalar_lea.vmem [#allocation14], %s3283
        // Predicated region
        $region77: #{bottleneck_forward.1} parent=51 // pred_check
          %p3285 = pneg %p219
        $region78: #{bottleneck_forward.1} parent=51 // pred_check_branch
          %3287 = sbr.rel (%p3285) target = $region80
        $region79: #{bottleneck_forward.1} parent=51 // pred_region
          %3289 = vsyncadd %s3281, 0
          %s3290 = smul.addr %s28, 32
          %s3291 = smul.addr %s3290, 8
          %s3292 = scalar_lea.hbm %s8, %s3291
          %s3293 = sshll.u32 %s3284, 4
          %s3294 = int_to_ptr.vmem [resolvable:$true] %s3293
          %s3295 = sshll.u32 %s3292, 4
          %s3296 = int_to_ptr.hbm [resolvable:$true] %s3295
          %3301 = dma.vmem_to_hbm [thread:$0]  %s3294, 4096, %s3296, %s3281, 128, 128, 8
        $region80: #{bottleneck_forward.1} parent=51 // pred_fallthru
          _
      $region52: #{bottleneck_forward.1} parent=5 // pred_fallthru
        _
      %p3302 = scmp.le.s32.totalorder 2, %s23
      // Predicated region
      $region81: #{bottleneck_forward.1} parent=5 // pred_check
        %p3303 = pneg %p3302
      $region82: #{bottleneck_forward.1} parent=5 // pred_check_branch
        %3305 = sbr.rel (%p3303) target = $region84
      $region83: #{bottleneck_forward.1} parent=5 // pred_region
        %s3306 = ssub.s32 %s23, 2
        // Predicated region
        $region85: #{bottleneck_forward.1} parent=83 // pred_check
          %p3307 = pneg %p225
        $region86: #{bottleneck_forward.1} parent=83 // pred_check_branch
          %3309 = sbr.rel (%p3307) target = $region88
        $region87: #{bottleneck_forward.1} parent=83 // pred_region
          %s3310 = sand.u32 %s210, 1
          %s3311 = scalar_lea.sflag [#allocation5], %s3310
          %s3312 = sand.u32 %s210, 1
          %s3313 = smul.addr %s3312, 256
          %s3314 = scalar_lea.vmem [#allocation14], %s3313
          %3316 = dma.done %s3311, 4096
        $region88: #{bottleneck_forward.1} parent=83 // pred_fallthru
          _
      $region84: #{bottleneck_forward.1} parent=5 // pred_fallthru
        _
    $region6: #{bottleneck_forward.1} parent=1 // loop_footer
      %s27 = sadd.s32 1, %s23
    $region7: #{bottleneck_forward.1} parent=1 // loop_footer_branch
      %22 = sbr.rel target = $region3
    $region8: #{bottleneck_forward.1} parent=1 // loop_exit
      _
    %3317 = vsyncpa [#allocation4], 1
    %s3318 = scalar_lea.sflag [#allocation4], 1
    %3319 = vsyncpa %s3318, 1
    %3320 = vsyncpa [#allocation7], 1
    %3321 = vsyncpa [#allocation10], 1
    %3322 = vsyncpa [#allocation13], 1
    %3323 = vsyncpa [#allocation5], 1
    %s3324 = scalar_lea.sflag [#allocation5], 1
    %3325 = vsyncpa %s3324, 1

</llo_original>
